<compile_context>
chip_gen: v6e
topology: v6e:2x2x1
jax: 0.10.0
libtpu: 0.0.40
codegen_flags: <defaults>
</compile_context>

<pallas_src>
import functools

import jax
import jax.numpy as jnp
import numpy as np
from jax import lax
from jax.experimental import pallas as pl
from jax.experimental.pallas import tpu as pltpu

EPS = 1e-5
CP = 128  # padded channel count: lane-dense layout + full MXU N dimension


def _round_up(a, b):
    return (a + b - 1) // b * b


# ------------------------------ Pallas kernel -------------------------------

def _encoder_kernel(x1_ref, w1_ref, t1_ref, w2_ref, t2_ref, o_ref, pool_scr,
                    *, width, row_tile):
    # x1_ref : (l1, k1p)  bf16  conv1 im2col patches for this row tile (+ halos)
    # w1_ref : (k1p, CP)  bf16  conv1 weight, BN1 scale folded in
    # t1_ref : (1, CP)    f32   BN1 shift (conv1 bias folded in)
    # w2_ref : (9, CP, CP) bf16 conv2 weight per tap, BN2 scale folded in
    # t2_ref : (1, CP)    f32   BN2 shift
    # o_ref  : (row_tile, width//2, CP) bf16 pooled output tile
    # pool_scr: (row_tile, width, CP) f32 VMEM scratch for the pool compaction
    w = width
    l2 = 2 * row_tile * w            # full-resolution pixels owned by this tile
    l1 = l2 + 2 * w                  # + one halo row above and one below
    t = pl.program_id(1)
    nt = pl.num_programs(1)

    def shift_up(v, k):
        # result[i] = v[i + k] (cyclic).  Wrapped entries only ever land in rows
        # that are masked or discarded downstream.
        return pltpu.roll(v, v.shape[0] - k, axis=0)

    # ---------- stage 1: conv1 + BN1 + ReLU as ONE lane-dense MXU dot ----------
    y1 = jnp.dot(x1_ref[...], w1_ref[...], preferred_element_type=jnp.float32)
    y1 = jnp.maximum(y1 + t1_ref[...], 0.0)                       # (l1, CP) f32

    # Zero only the out-of-image halo rows (value mask, per-step -> megacore-safe;
    # interior rows are always fully recomputed, no scratch zero-fill pass).
    i = lax.broadcasted_iota(jnp.int32, (l1, 1), 0)
    halo_bad = jnp.logical_or(jnp.logical_and(t == 0, i < w),
                              jnp.logical_and(t == nt - 1, i >= l1 - w))
    y1 = jnp.where(halo_bad, 0.0, y1)

    # Column-shifted copies for conv2's taps: two XLU rolls + true zero padding at
    # the image's left/right edge; cast to bf16 once per variant (3 casts, not 36).
    col = i % w
    left = jnp.where(col == 0, 0.0, pltpu.roll(y1, 1, axis=0))     # column x-1
    right = jnp.where(col == w - 1, 0.0, shift_up(y1, 1))          # column x+1
    taps = (left.astype(jnp.bfloat16),
            y1.astype(jnp.bfloat16),
            right.astype(jnp.bfloat16))

    # ---------- stage 2: conv2 + BN2 + ReLU as 9 tap-accumulated dots ----------
    # No (rows, 9*128) patch matrix is materialized; every LHS is a sublane-aligned
    # slice of a VMEM-resident value.  f32 accumulation (MRB-friendly on v7x).
    acc = None
    for dy in range(3):
        for dx in range(3):
            lhs = taps[dx][dy * w:dy * w + l2]                     # (l2, CP) bf16
            d = jnp.dot(lhs, w2_ref[dy * 3 + dx],
                        preferred_element_type=jnp.float32)
            acc = d if acc is None else acc + d
    y2 = jnp.maximum(acc + t2_ref[...], 0.0)                       # (l2, CP) f32

    # ---------- 2x2 max-pool ----------
    # Column-pair then row-pair max via XLU rolls (valid at even x / even y; the
    # cyclically wrapped entries only land in discarded odd positions).
    cmax = jnp.maximum(y2, shift_up(y2, 1))      # max over columns (x, x+1)
    rmax = jnp.maximum(cmax, shift_up(cmax, w))  # max over rows    (y, y+1)
    # Keep only the even full-resolution rows (aligned view slice), then compact
    # the even columns with one stride-2 sublane read from VMEM scratch.
    pool_scr[...] = rmax.reshape(row_tile, 2 * w, CP)[:, :w, :]
    o_ref[...] = pool_scr[:, pl.ds(0, w // 2, 2), :].astype(o_ref.dtype)


# -------------------------------- JAX glue ----------------------------------

def _fold_conv1_bn(w, b, g, be, m, v, k1p):
    """Fold inference BN into conv1; flatten to a lane-dense (k1p, CP) bf16 matrix."""
    cout, cin = w.shape[0], w.shape[1]
    scale = g / jnp.sqrt(v + EPS)
    shift = (b - m) * scale + be
    wc = jnp.transpose(w, (2, 3, 1, 0)) * scale                 # (3, 3, cin, cout)
    wf = wc.reshape(9 * cin, cout)                              # row = (dy*3+dx)*cin + ci
    wf = jnp.pad(wf, ((0, k1p - 9 * cin), (0, CP - cout))).astype(jnp.bfloat16)
    tf = jnp.pad(shift, (0, CP - cout)).reshape(1, CP).astype(jnp.float32)
    return wf, tf


def _fold_conv2_bn(w, b, g, be, m, v):
    """Fold inference BN into conv2; per-tap (9, CP, CP) bf16 weights."""
    cout, cin2 = w.shape[0], w.shape[1]
    scale = g / jnp.sqrt(v + EPS)
    shift = (b - m) * scale + be
    wc = jnp.transpose(w, (2, 3, 1, 0)) * scale                 # (3, 3, cin2, cout)
    wc = jnp.pad(wc, ((0, 0), (0, 0), (0, CP - cin2), (0, CP - cout)))
    wf = wc.reshape(9, CP, CP).astype(jnp.bfloat16)
    tf = jnp.pad(shift, (0, CP - cout)).reshape(1, CP).astype(jnp.float32)
    return wf, tf


def _pick_row_tile(hh, w, k1p, budget_bytes):
    """Largest divisor of hh (pooled rows) whose per-step VMEM footprint fits."""
    for th in range(hh, 0, -1):
        if hh % th:
            continue
        l2 = 2 * th * w
        l1 = l2 + 2 * w
        est = (2 * l1 * k1p * 2                                # conv1 patches (dbl buf)
               + 2 * (k1p * CP + 9 * CP * CP + 2 * CP) * 2     # weights / shifts
               + 2 * th * (w // 2) * CP * 2                    # bf16 output (dbl buf)
               + th * w * CP * 4                               # pool scratch
               + 4 * l1 * CP * 4 + 3 * l2 * CP * 4             # f32 temporaries
               + 3 * l1 * CP * 2)                              # bf16 tap variants
        if est <= budget_bytes:
            return th
    return 1


def encoder_block_forward(x_nchw, params, *, row_tile=None, nchw_output=True,
                          vmem_budget_bytes=24 * 2 ** 20):
    # vmem_budget_bytes: conservative (v7x, 64 MiB physical); v5e/v6e can pass ~2x
    # larger budgets to take bigger row tiles and amortize per-step overhead.
    n, cin, h, w = x_nchw.shape
    cout = params["w1"].shape[0]
    assert h % 2 == 0 and w % 2 == 0 and w % 8 == 0
    assert cout <= CP, "TODO(synk): cout > 128 needs an output-channel tile axis"
    hh, ww = h // 2, w // 2
    k1p = _round_up(9 * cin, CP)                 # lane-dense conv1 contraction dim

    th = row_tile if row_tile is not None else _pick_row_tile(hh, w, k1p,
                                                              vmem_budget_bytes)
    assert hh % th == 0
    t_tiles = hh // th
    rows = 2 * th + 2                            # full-res rows per tile incl. halos
    l1 = rows * w

    # ---- wrapper-side packing (cheap XLA work): conv1 im2col + per-tile halos ----
    x_nhwc = jnp.transpose(x_nchw, (0, 2, 3, 1)).astype(jnp.float32)
    xp = jnp.pad(x_nhwc, ((0, 0), (1, 1), (1, 1), (0, 0)))
    imc = jnp.concatenate(
        [xp[:, dy:dy + h, dx:dx + w, :] for dy in range(3) for dx in range(3)],
        axis=-1)                                                  # (n, h, w, 9*cin)
    y_idx = jnp.clip(2 * th * jnp.arange(t_tiles)[:, None] - 1
                     + jnp.arange(rows)[None, :], 0, h - 1)       # (T, rows); clipped
    x1p = imc[:, y_idx].reshape(n, t_tiles, l1, 9 * cin)          # halo rows duplicated
    x1p = jnp.pad(x1p, ((0, 0), (0, 0), (0, 0), (0, k1p - 9 * cin)))
    x1p = x1p.astype(jnp.bfloat16)

    w1f, t1 = _fold_conv1_bn(params["w1"], params["b1"], params["g1"],
                             params["be1"], params["m1"], params["v1"], k1p)
    w2f, t2 = _fold_conv2_bn(params["w2"], params["b2"], params["g2"],
                             params["be2"], params["m2"], params["v2"])

    kernel = functools.partial(_encoder_kernel, width=w, row_tile=th)
    out = pl.pallas_call(
        kernel,
        out_shape=jax.ShapeDtypeStruct((n, hh, ww, CP), jnp.bfloat16),
        grid=(n, t_tiles),
        in_specs=[
            pl.BlockSpec((None, None, l1, k1p), lambda i, j: (i, j, 0, 0)),
            pl.BlockSpec((k1p, CP), lambda i, j: (0, 0)),
            pl.BlockSpec((1, CP), lambda i, j: (0, 0)),
            pl.BlockSpec((9, CP, CP), lambda i, j: (0, 0, 0)),
            pl.BlockSpec((1, CP), lambda i, j: (0, 0)),
        ],
        out_specs=pl.BlockSpec((None, th, ww, CP), lambda i, j: (i, j, 0, 0)),
        scratch_shapes=[pltpu.VMEM((th, w, CP), jnp.float32)],
        compiler_params=pltpu.CompilerParams(
            dimension_semantics=("parallel", "parallel"),
            vmem_limit_bytes=48 * 1024 * 1024,
        ),
    )(x1p, w1f, t1, w2f, t2)

    if not nchw_output:
        return out   # channel-padded NHWC bf16, ready to feed the next encoder block
    out = out[..., :cout].astype(jnp.float32)
    return jnp.transpose(out, (0, 3, 1, 2))


# ----------------------------- pure-JAX reference ----------------------------

def reference_forward(x_nchw, params):
    def cbr(x, wt, b, g, be, m, v):
        z = lax.conv_general_dilated(x, wt, (1, 1), "SAME",
                                     dimension_numbers=("NCHW", "OIHW", "NCHW"))
        z = z + b[None, :, None, None]
        z = (z - m[None, :, None, None]) / jnp.sqrt(v + EPS)[None, :, None, None]
        z = z * g[None, :, None, None] + be[None, :, None, None]
        return jnp.maximum(z, 0.0)

    y = cbr(x_nchw, params["w1"], params["b1"], params["g1"], params["be1"],
            params["m1"], params["v1"])
    y = cbr(y, params["w2"], params["b2"], params["g2"], params["be2"],
            params["m2"], params["v2"])
    return lax.reduce_window(y, -jnp.inf, lax.max, (1, 1, 2, 2), (1, 1, 2, 2), "VALID")


# ----------------------------------- main ------------------------------------

if __name__ == "__main__":
    N, CIN, COUT, H, W = 2, 4, 8, 16, 16

    key = jax.random.PRNGKey(0)
    keys = jax.random.split(key, 16)
    params = {
        "w1": 0.1 * jax.random.normal(keys[0], (COUT, CIN, 3, 3), jnp.float32),
        "b1": 0.1 * jax.random.normal(keys[1], (COUT,), jnp.float32),
        "g1": 1.0 + 0.1 * jax.random.normal(keys[2], (COUT,), jnp.float32),
        "be1": 0.1 * jax.random.normal(keys[3], (COUT,), jnp.float32),
        "m1": 0.1 * jax.random.normal(keys[4], (COUT,), jnp.float32),
        "v1": 0.5 + jax.random.uniform(keys[5], (COUT,), jnp.float32),
        "w2": 0.1 * jax.random.normal(keys[6], (COUT, COUT, 3, 3), jnp.float32),
        "b2": 0.1 * jax.random.normal(keys[7], (COUT,), jnp.float32),
        "g2": 1.0 + 0.1 * jax.random.normal(keys[8], (COUT,), jnp.float32),
        "be2": 0.1 * jax.random.normal(keys[9], (COUT,), jnp.float32),
        "m2": 0.1 * jax.random.normal(keys[10], (COUT,), jnp.float32),
        "v2": 0.5 + jax.random.uniform(keys[11], (COUT,), jnp.float32),
    }

    x = jax.random.normal(keys[12], (N, CIN, H, W), jnp.float32)
    ref = np.asarray(jax.block_until_ready(reference_forward(x, params)))

    # Default tiling (whole image fits in one row tile at this toy size).
    fwd = jax.jit(functools.partial(encoder_block_forward, nchw_output=True))
    out = np.asarray(jax.block_until_ready(fwd(x, params)), np.float32)
    assert out.shape == (N, COUT, H // 2, W // 2), out.shape
    # bf16 MXU operands + bf16 output -> looser tolerance than pure f32.
    assert np.allclose(out, ref, atol=3e-2, rtol=3e-2), (
        float(np.max(np.abs(out - ref))))

    # Also exercise the row-tiled path (2 row tiles -> halo recompute logic).
    fwd_tiled = jax.jit(functools.partial(encoder_block_forward,
                                          nchw_output=True, row_tile=4))
    out2 = np.asarray(jax.block_until_ready(fwd_tiled(x, params)), np.float32)
    assert np.allclose(out2, ref, atol=3e-2, rtol=3e-2), (
        float(np.max(np.abs(out2 - ref))))

    print("KERNEL_OK")
</pallas_src>

<mosaic_0001>
module attributes {stable_mosaic.version = 11 : i64} {
  func.func @_encoder_kernel(%arg0: i32, %arg1: i32, %arg2: memref<1x1x288x128xbf16, #tpu.memory_space<vmem>>, %arg3: memref<128x128xbf16, #tpu.memory_space<vmem>>, %arg4: memref<1x128xf32, #tpu.memory_space<vmem>>, %arg5: memref<9x128x128xbf16, #tpu.memory_space<vmem>>, %arg6: memref<1x128xf32, #tpu.memory_space<vmem>>, %arg7: memref<1x8x8x128xbf16, #tpu.memory_space<vmem>>, %arg8: memref<8x16x128xf32, #tpu.memory_space<vmem>>) attributes {dimension_semantics = [#tpu.dimension_semantics<parallel>, #tpu.dimension_semantics<parallel>], iteration_bounds = array<i64: 2, 1>, scalar_prefetch = 0 : i64, scratch_operands = 1 : i64, tpu.core_type = #tpu.core_type<tc>, window_params = [{transform_indices = @transform_0, window_bounds = array<i64: 1, 1, 288, 128>}, {pipeline_mode = #tpu.pipeline_mode<synchronous>, transform_indices = @transform_1, window_bounds = array<i64: 128, 128>}, {pipeline_mode = #tpu.pipeline_mode<synchronous>, transform_indices = @transform_2, window_bounds = array<i64: 1, 128>}, {pipeline_mode = #tpu.pipeline_mode<synchronous>, transform_indices = @transform_3, window_bounds = array<i64: 9, 128, 128>}, {pipeline_mode = #tpu.pipeline_mode<synchronous>, transform_indices = @transform_4, window_bounds = array<i64: 1, 128>}, {transform_indices = @transform_5, window_bounds = array<i64: 1, 8, 8, 128>}]} {
    %c0 = arith.constant 0 : index
    %c0_0 = arith.constant 0 : index
    %c0_1 = arith.constant 0 : index
    %c0_2 = arith.constant 0 : index
    %0 = vector.load %arg2[%c0, %c0_0, %c0_1, %c0_2] : memref<1x1x288x128xbf16, #tpu.memory_space<vmem>>, vector<1x1x288x128xbf16>
    %1 = vector.shape_cast %0 : vector<1x1x288x128xbf16> to vector<288x128xbf16>
    %c0_3 = arith.constant 0 : index
    %c0_4 = arith.constant 0 : index
    %2 = vector.load %arg3[%c0_3, %c0_4] : memref<128x128xbf16, #tpu.memory_space<vmem>>, vector<128x128xbf16>
    %cst = arith.constant dense<0.000000e+00> : vector<288x128xf32>
    %3 = tpu.matmul %1, %2, %cst {dimension_numbers = #tpu.dot_dimension_numbers<[1], [0], [0], [1], [0, 0, 1, 1], [], []>} : vector<288x128xbf16>, vector<128x128xbf16>, vector<288x128xf32> -> vector<288x128xf32>
    %c0_5 = arith.constant 0 : index
    %c0_6 = arith.constant 0 : index
    %4 = vector.load %arg4[%c0_5, %c0_6] : memref<1x128xf32, #tpu.memory_space<vmem>>, vector<1x128xf32>
    %5 = vector.broadcast %4 : vector<1x128xf32> to vector<288x128xf32>
    %6 = arith.addf %3, %5 : vector<288x128xf32>
    %cst_7 = arith.constant 0.000000e+00 : f32
    %7 = vector.broadcast %cst_7 : f32 to vector<288x128xf32>
    %8 = arith.maximumf %6, %7 : vector<288x128xf32>
    %9 = tpu.iota {dimensions = array<i32: 0>} : vector<288x1xi32>
    %c0_i32 = arith.constant 0 : i32
    %10 = arith.cmpi eq, %arg1, %c0_i32 : i32
    %c16_i32 = arith.constant 16 : i32
    %11 = vector.broadcast %c16_i32 : i32 to vector<288x1xi32>
    %12 = arith.cmpi slt, %9, %11 : vector<288x1xi32>
    %13 = vector.broadcast %10 : i1 to vector<288x1xi1>
    %14 = arith.andi %13, %12 : vector<288x1xi1>
    %c0_i32_8 = arith.constant 0 : i32
    %15 = arith.cmpi eq, %arg1, %c0_i32_8 : i32
    %c272_i32 = arith.constant 272 : i32
    %16 = vector.broadcast %c272_i32 : i32 to vector<288x1xi32>
    %17 = arith.cmpi sge, %9, %16 : vector<288x1xi32>
    %18 = vector.broadcast %15 : i1 to vector<288x1xi1>
    %19 = arith.andi %18, %17 : vector<288x1xi1>
    %20 = arith.ori %14, %19 : vector<288x1xi1>
    %cst_9 = arith.constant 0.000000e+00 : f32
    %21 = vector.shape_cast %20 : vector<288x1xi1> to vector<288x1xi1>
    %22 = vector.broadcast %21 : vector<288x1xi1> to vector<288x128xi1>
    %23 = vector.broadcast %cst_9 : f32 to vector<288x128xf32>
    %24 = arith.select %22, %23, %8 : vector<288x128xi1>, vector<288x128xf32>
    %c16_i32_10 = arith.constant 16 : i32
    %c0_i32_11 = arith.constant 0 : i32
    %25 = arith.cmpi eq, %c16_i32_10, %c0_i32_11 : i32
    %c1_i32 = arith.constant 1 : i32
    %26 = arith.select %25, %c1_i32, %c16_i32_10 : i32
    %27 = vector.broadcast %26 : i32 to vector<288x1xi32>
    %28 = arith.remsi %9, %27 : vector<288x1xi32>
    %c0_i32_12 = arith.constant 0 : i32
    %29 = vector.broadcast %c0_i32_12 : i32 to vector<288x1xi32>
    %30 = arith.cmpi ne, %28, %29 : vector<288x1xi32>
    %c0_i32_13 = arith.constant 0 : i32
    %31 = vector.broadcast %c0_i32_13 : i32 to vector<288x1xi32>
    %32 = arith.cmpi slt, %28, %31 : vector<288x1xi32>
    %c0_i32_14 = arith.constant 0 : i32
    %33 = arith.cmpi slt, %26, %c0_i32_14 : i32
    %34 = vector.broadcast %33 : i1 to vector<288x1xi1>
    %35 = vector.broadcast %34 : vector<288x1xi1> to vector<288x1xi1>
    %36 = arith.xori %32, %35 : vector<288x1xi1>
    %37 = arith.andi %36, %30 : vector<288x1xi1>
    %38 = vector.broadcast %26 : i32 to vector<288x1xi32>
    %39 = arith.addi %28, %38 : vector<288x1xi32>
    %40 = arith.select %37, %39, %28 : vector<288x1xi1>, vector<288x1xi32>
    %c0_i32_15 = arith.constant 0 : i32
    %41 = vector.broadcast %c0_i32_15 : i32 to vector<288x1xi32>
    %42 = arith.cmpi eq, %40, %41 : vector<288x1xi32>
    %c1_i32_16 = arith.constant 1 : i32
    %43 = tpu.dynamic_rotate %24 by %c1_i32_16 dim 0 : vector<288x128xf32>, i32 -> vector<288x128xf32>
    %cst_17 = arith.constant 0.000000e+00 : f32
    %44 = vector.shape_cast %42 : vector<288x1xi1> to vector<288x1xi1>
    %45 = vector.broadcast %44 : vector<288x1xi1> to vector<288x128xi1>
    %46 = vector.broadcast %cst_17 : f32 to vector<288x128xf32>
    %47 = arith.select %45, %46, %43 : vector<288x128xi1>, vector<288x128xf32>
    %c15_i32 = arith.constant 15 : i32
    %48 = vector.broadcast %c15_i32 : i32 to vector<288x1xi32>
    %49 = arith.cmpi eq, %40, %48 : vector<288x1xi32>
    %c287_i32 = arith.constant 287 : i32
    %50 = tpu.dynamic_rotate %24 by %c287_i32 dim 0 : vector<288x128xf32>, i32 -> vector<288x128xf32>
    %cst_18 = arith.constant 0.000000e+00 : f32
    %51 = vector.shape_cast %49 : vector<288x1xi1> to vector<288x1xi1>
    %52 = vector.broadcast %51 : vector<288x1xi1> to vector<288x128xi1>
    %53 = vector.broadcast %cst_18 : f32 to vector<288x128xf32>
    %54 = arith.select %52, %53, %50 : vector<288x128xi1>, vector<288x128xf32>
    %55 = arith.truncf %47 : vector<288x128xf32> to vector<288x128xbf16>
    %56 = arith.truncf %24 : vector<288x128xf32> to vector<288x128xbf16>
    %57 = arith.truncf %54 : vector<288x128xf32> to vector<288x128xbf16>
    %58 = vector.extract_strided_slice %55 {offsets = [0, 0], sizes = [256, 128], strides = [1, 1]} : vector<288x128xbf16> to vector<256x128xbf16>
    %c0_19 = arith.constant 0 : index
    %c0_20 = arith.constant 0 : index
    %c0_21 = arith.constant 0 : index
    %59 = vector.load %arg5[%c0_19, %c0_20, %c0_21] : memref<9x128x128xbf16, #tpu.memory_space<vmem>>, vector<1x128x128xbf16>
    %60 = vector.shape_cast %59 : vector<1x128x128xbf16> to vector<128x128xbf16>
    %cst_22 = arith.constant dense<0.000000e+00> : vector<256x128xf32>
    %61 = tpu.matmul %58, %60, %cst_22 {dimension_numbers = #tpu.dot_dimension_numbers<[1], [0], [0], [1], [0, 0, 1, 1], [], []>} : vector<256x128xbf16>, vector<128x128xbf16>, vector<256x128xf32> -> vector<256x128xf32>
    %62 = vector.extract_strided_slice %56 {offsets = [0, 0], sizes = [256, 128], strides = [1, 1]} : vector<288x128xbf16> to vector<256x128xbf16>
    %c1 = arith.constant 1 : index
    %c0_23 = arith.constant 0 : index
    %c0_24 = arith.constant 0 : index
    %63 = vector.load %arg5[%c1, %c0_23, %c0_24] : memref<9x128x128xbf16, #tpu.memory_space<vmem>>, vector<1x128x128xbf16>
    %64 = vector.shape_cast %63 : vector<1x128x128xbf16> to vector<128x128xbf16>
    %cst_25 = arith.constant dense<0.000000e+00> : vector<256x128xf32>
    %65 = tpu.matmul %62, %64, %cst_25 {dimension_numbers = #tpu.dot_dimension_numbers<[1], [0], [0], [1], [0, 0, 1, 1], [], []>} : vector<256x128xbf16>, vector<128x128xbf16>, vector<256x128xf32> -> vector<256x128xf32>
    %66 = arith.addf %61, %65 : vector<256x128xf32>
    %67 = vector.extract_strided_slice %57 {offsets = [0, 0], sizes = [256, 128], strides = [1, 1]} : vector<288x128xbf16> to vector<256x128xbf16>
    %c2 = arith.constant 2 : index
    %c0_26 = arith.constant 0 : index
    %c0_27 = arith.constant 0 : index
    %68 = vector.load %arg5[%c2, %c0_26, %c0_27] : memref<9x128x128xbf16, #tpu.memory_space<vmem>>, vector<1x128x128xbf16>
    %69 = vector.shape_cast %68 : vector<1x128x128xbf16> to vector<128x128xbf16>
    %cst_28 = arith.constant dense<0.000000e+00> : vector<256x128xf32>
    %70 = tpu.matmul %67, %69, %cst_28 {dimension_numbers = #tpu.dot_dimension_numbers<[1], [0], [0], [1], [0, 0, 1, 1], [], []>} : vector<256x128xbf16>, vector<128x128xbf16>, vector<256x128xf32> -> vector<256x128xf32>
    %71 = arith.addf %66, %70 : vector<256x128xf32>
    %72 = vector.extract_strided_slice %55 {offsets = [16, 0], sizes = [256, 128], strides = [1, 1]} : vector<288x128xbf16> to vector<256x128xbf16>
    %c3 = arith.constant 3 : index
    %c0_29 = arith.constant 0 : index
    %c0_30 = arith.constant 0 : index
    %73 = vector.load %arg5[%c3, %c0_29, %c0_30] : memref<9x128x128xbf16, #tpu.memory_space<vmem>>, vector<1x128x128xbf16>
    %74 = vector.shape_cast %73 : vector<1x128x128xbf16> to vector<128x128xbf16>
    %cst_31 = arith.constant dense<0.000000e+00> : vector<256x128xf32>
    %75 = tpu.matmul %72, %74, %cst_31 {dimension_numbers = #tpu.dot_dimension_numbers<[1], [0], [0], [1], [0, 0, 1, 1], [], []>} : vector<256x128xbf16>, vector<128x128xbf16>, vector<256x128xf32> -> vector<256x128xf32>
    %76 = arith.addf %71, %75 : vector<256x128xf32>
    %77 = vector.extract_strided_slice %56 {offsets = [16, 0], sizes = [256, 128], strides = [1, 1]} : vector<288x128xbf16> to vector<256x128xbf16>
    %c4 = arith.constant 4 : index
    %c0_32 = arith.constant 0 : index
    %c0_33 = arith.constant 0 : index
    %78 = vector.load %arg5[%c4, %c0_32, %c0_33] : memref<9x128x128xbf16, #tpu.memory_space<vmem>>, vector<1x128x128xbf16>
    %79 = vector.shape_cast %78 : vector<1x128x128xbf16> to vector<128x128xbf16>
    %cst_34 = arith.constant dense<0.000000e+00> : vector<256x128xf32>
    %80 = tpu.matmul %77, %79, %cst_34 {dimension_numbers = #tpu.dot_dimension_numbers<[1], [0], [0], [1], [0, 0, 1, 1], [], []>} : vector<256x128xbf16>, vector<128x128xbf16>, vector<256x128xf32> -> vector<256x128xf32>
    %81 = arith.addf %76, %80 : vector<256x128xf32>
    %82 = vector.extract_strided_slice %57 {offsets = [16, 0], sizes = [256, 128], strides = [1, 1]} : vector<288x128xbf16> to vector<256x128xbf16>
    %c5 = arith.constant 5 : index
    %c0_35 = arith.constant 0 : index
    %c0_36 = arith.constant 0 : index
    %83 = vector.load %arg5[%c5, %c0_35, %c0_36] : memref<9x128x128xbf16, #tpu.memory_space<vmem>>, vector<1x128x128xbf16>
    %84 = vector.shape_cast %83 : vector<1x128x128xbf16> to vector<128x128xbf16>
    %cst_37 = arith.constant dense<0.000000e+00> : vector<256x128xf32>
    %85 = tpu.matmul %82, %84, %cst_37 {dimension_numbers = #tpu.dot_dimension_numbers<[1], [0], [0], [1], [0, 0, 1, 1], [], []>} : vector<256x128xbf16>, vector<128x128xbf16>, vector<256x128xf32> -> vector<256x128xf32>
    %86 = arith.addf %81, %85 : vector<256x128xf32>
    %87 = vector.extract_strided_slice %55 {offsets = [32, 0], sizes = [256, 128], strides = [1, 1]} : vector<288x128xbf16> to vector<256x128xbf16>
    %c6 = arith.constant 6 : index
    %c0_38 = arith.constant 0 : index
    %c0_39 = arith.constant 0 : index
    %88 = vector.load %arg5[%c6, %c0_38, %c0_39] : memref<9x128x128xbf16, #tpu.memory_space<vmem>>, vector<1x128x128xbf16>
    %89 = vector.shape_cast %88 : vector<1x128x128xbf16> to vector<128x128xbf16>
    %cst_40 = arith.constant dense<0.000000e+00> : vector<256x128xf32>
    %90 = tpu.matmul %87, %89, %cst_40 {dimension_numbers = #tpu.dot_dimension_numbers<[1], [0], [0], [1], [0, 0, 1, 1], [], []>} : vector<256x128xbf16>, vector<128x128xbf16>, vector<256x128xf32> -> vector<256x128xf32>
    %91 = arith.addf %86, %90 : vector<256x128xf32>
    %92 = vector.extract_strided_slice %56 {offsets = [32, 0], sizes = [256, 128], strides = [1, 1]} : vector<288x128xbf16> to vector<256x128xbf16>
    %c7 = arith.constant 7 : index
    %c0_41 = arith.constant 0 : index
    %c0_42 = arith.constant 0 : index
    %93 = vector.load %arg5[%c7, %c0_41, %c0_42] : memref<9x128x128xbf16, #tpu.memory_space<vmem>>, vector<1x128x128xbf16>
    %94 = vector.shape_cast %93 : vector<1x128x128xbf16> to vector<128x128xbf16>
    %cst_43 = arith.constant dense<0.000000e+00> : vector<256x128xf32>
    %95 = tpu.matmul %92, %94, %cst_43 {dimension_numbers = #tpu.dot_dimension_numbers<[1], [0], [0], [1], [0, 0, 1, 1], [], []>} : vector<256x128xbf16>, vector<128x128xbf16>, vector<256x128xf32> -> vector<256x128xf32>
    %96 = arith.addf %91, %95 : vector<256x128xf32>
    %97 = vector.extract_strided_slice %57 {offsets = [32, 0], sizes = [256, 128], strides = [1, 1]} : vector<288x128xbf16> to vector<256x128xbf16>
    %c8 = arith.constant 8 : index
    %c0_44 = arith.constant 0 : index
    %c0_45 = arith.constant 0 : index
    %98 = vector.load %arg5[%c8, %c0_44, %c0_45] : memref<9x128x128xbf16, #tpu.memory_space<vmem>>, vector<1x128x128xbf16>
    %99 = vector.shape_cast %98 : vector<1x128x128xbf16> to vector<128x128xbf16>
    %cst_46 = arith.constant dense<0.000000e+00> : vector<256x128xf32>
    %100 = tpu.matmul %97, %99, %cst_46 {dimension_numbers = #tpu.dot_dimension_numbers<[1], [0], [0], [1], [0, 0, 1, 1], [], []>} : vector<256x128xbf16>, vector<128x128xbf16>, vector<256x128xf32> -> vector<256x128xf32>
    %101 = arith.addf %96, %100 : vector<256x128xf32>
    %c0_47 = arith.constant 0 : index
    %c0_48 = arith.constant 0 : index
    %102 = vector.load %arg6[%c0_47, %c0_48] : memref<1x128xf32, #tpu.memory_space<vmem>>, vector<1x128xf32>
    %103 = vector.broadcast %102 : vector<1x128xf32> to vector<256x128xf32>
    %104 = arith.addf %101, %103 : vector<256x128xf32>
    %cst_49 = arith.constant 0.000000e+00 : f32
    %105 = vector.broadcast %cst_49 : f32 to vector<256x128xf32>
    %106 = arith.maximumf %104, %105 : vector<256x128xf32>
    %c255_i32 = arith.constant 255 : i32
    %107 = tpu.dynamic_rotate %106 by %c255_i32 dim 0 : vector<256x128xf32>, i32 -> vector<256x128xf32>
    %108 = arith.maximumf %106, %107 : vector<256x128xf32>
    %c240_i32 = arith.constant 240 : i32
    %109 = tpu.dynamic_rotate %108 by %c240_i32 dim 0 : vector<256x128xf32>, i32 -> vector<256x128xf32>
    %110 = arith.maximumf %108, %109 : vector<256x128xf32>
    %111 = vector.shape_cast %110 : vector<256x128xf32> to vector<8x32x128xf32>
    %112 = vector.extract_strided_slice %111 {offsets = [0, 0, 0], sizes = [8, 16, 128], strides = [1, 1, 1]} : vector<8x32x128xf32> to vector<8x16x128xf32>
    %c0_50 = arith.constant 0 : index
    %c0_51 = arith.constant 0 : index
    %c0_52 = arith.constant 0 : index
    %113 = vector.load %arg8[%c0_50, %c0_51, %c0_52] : memref<8x16x128xf32, #tpu.memory_space<vmem>>, vector<8x16x128xf32>
    tpu.vector_store %arg8[%c0_50, %c0_51, %c0_52], %112 {strides = array<i32>} : memref<8x16x128xf32, #tpu.memory_space<vmem>>, vector<8x16x128xf32>,
    %c0_53 = arith.constant 0 : index
    %c0_54 = arith.constant 0 : index
    %c0_55 = arith.constant 0 : index
    %114 = tpu.strided_load %arg8[%c0_53, %c0_54, %c0_55] {strides = array<i32: 1, 2, 1>} : memref<8x16x128xf32, #tpu.memory_space<vmem>>, vector<8x8x128xf32>
    %115 = arith.truncf %114 : vector<8x8x128xf32> to vector<8x8x128xbf16>
    %c0_56 = arith.constant 0 : index
    %c0_57 = arith.constant 0 : index
    %c0_58 = arith.constant 0 : index
    %c0_59 = arith.constant 0 : index
    %116 = vector.load %arg7[%c0_56, %c0_57, %c0_58, %c0_59] : memref<1x8x8x128xbf16, #tpu.memory_space<vmem>>, vector<1x8x8x128xbf16>
    %117 = vector.shape_cast %116 : vector<1x8x8x128xbf16> to vector<8x8x128xbf16>
    %118 = vector.shape_cast %115 : vector<8x8x128xbf16> to vector<1x8x8x128xbf16>
    tpu.vector_store %arg7[%c0_56, %c0_57, %c0_58, %c0_59], %118 {strides = array<i32>} : memref<1x8x8x128xbf16, #tpu.memory_space<vmem>>, vector<1x8x8x128xbf16>,
    return
  }
  func.func @transform_0(%arg0: i32, %arg1: i32) -> (i32, i32, i32, i32) {
    %c0_i32 = arith.constant 0 : i32
    %c0_i32_0 = arith.constant 0 : i32
    %c0_i32_1 = arith.constant 0 : i32
    return %arg0, %arg1, %c0_i32, %c0_i32_0 : i32, i32, i32, i32
  }
  func.func @transform_1(%arg0: i32, %arg1: i32) -> (i32, i32) {
    %c0_i32 = arith.constant 0 : i32
    %c0_i32_0 = arith.constant 0 : i32
    %c0_i32_1 = arith.constant 0 : i32
    return %c0_i32, %c0_i32_0 : i32, i32
  }
  func.func @transform_2(%arg0: i32, %arg1: i32) -> (i32, i32) {
    %c0_i32 = arith.constant 0 : i32
    %c0_i32_0 = arith.constant 0 : i32
    %c0_i32_1 = arith.constant 0 : i32
    return %c0_i32, %c0_i32_0 : i32, i32
  }
  func.func @transform_3(%arg0: i32, %arg1: i32) -> (i32, i32, i32) {
    %c0_i32 = arith.constant 0 : i32
    %c0_i32_0 = arith.constant 0 : i32
    %c0_i32_1 = arith.constant 0 : i32
    %c0_i32_2 = arith.constant 0 : i32
    return %c0_i32, %c0_i32_0, %c0_i32_1 : i32, i32, i32
  }
  func.func @transform_4(%arg0: i32, %arg1: i32) -> (i32, i32) {
    %c0_i32 = arith.constant 0 : i32
    %c0_i32_0 = arith.constant 0 : i32
    %c0_i32_1 = arith.constant 0 : i32
    return %c0_i32, %c0_i32_0 : i32, i32
  }
  func.func @transform_5(%arg0: i32, %arg1: i32) -> (i32, i32, i32, i32) {
    %c0_i32 = arith.constant 0 : i32
    %c0_i32_0 = arith.constant 0 : i32
    %c0_i32_1 = arith.constant 0 : i32
    return %arg0, %arg1, %c0_i32, %c0_i32_0 : i32, i32, i32, i32
  }
}

</mosaic_0001>

<llo_original>
// kernel: encoder_block_forward.1
$region0: #{encoder_block_forward.1}
  #allocation0 [shape = 'u32[]', space=smem, size = 0x4, offset = 0x4, fixed_abs, tag = 'smem constant byte address 0x4 - core index']
  #allocation1 [shape = 'u32[144,128]{1,0:T(1,128)}', space=vmem, size = 0x12000, scoped, tag = 'internal scratch']
  #allocation2 [shape = 'f32[8,16,128]{2,1,0:T(8,128)}', space=vmem, size = 0x10000, scoped, tag = 'scratch operand']
  %s0 = inlined_call_operand.vmem [shape: bf16[2,1,288,128], index: 0, kind: input, shape index: {}]
  %s1 = inlined_call_operand.vmem [shape: bf16[128,128], index: 1, kind: input, shape index: {}]
  %s2 = inlined_call_operand.vmem [shape: f32[1,128], index: 2, kind: input, shape index: {}]
  %s3 = inlined_call_operand.vmem [shape: bf16[9,128,128], index: 3, kind: input, shape index: {}]
  %s4 = inlined_call_operand.vmem [shape: f32[1,128], index: 4, kind: input, shape index: {}]
  %s5 = inlined_call_operand.vmem [shape: bf16[2,8,8,128], index: 5, kind: output, shape index: {}]
  %s6 = sld [smem:[#allocation0]]
  $region53: #{encoder_block_forward.1} parent=0
    _
  %s8 = ssub.s32 1, %s6
  %s9 = scalar_select 0, %s8, %s6
  loop: start=0, step=1, limit=4
  $region2: #{encoder_block_forward.1} parent=0 // loop_pre_header
    _
  $region3: #{encoder_block_forward.1} parent=0 // loop_header
    %s11 = sphi 0, %s15
    %p12 = scmp.ge.s32.totalorder %s11, 4
    %s18 = sphi 0, %s30
    %s19 = sphi 0, %s26
    %s20 = sphi 0, %s18
    %s21 = sphi 0, %s19
    %s22 = sphi 0, %s20
    %s23 = sphi 0, %s21
    %s35 = sphi 0, %s37
    %s38 = sphi 0, %s35
    %s39 = sphi 0, %s38
    %s55 = sphi 0, %s39
    %s59 = sphi 0, %s59
    %s61 = sphi 0, %s59
    %s62 = sphi 0, %s61
    %s76 = sphi 0, %s62
    %s80 = sphi 0, %s80
    %s82 = sphi 0, %s80
    %s83 = sphi 0, %s82
    %s97 = sphi 0, %s83
    %s101 = sphi 0, %s101
    %s103 = sphi 0, %s101
    %s104 = sphi 0, %s103
    %s118 = sphi 0, %s104
    %s122 = sphi 0, %s122
    %s124 = sphi 0, %s122
    %s125 = sphi 0, %s124
    %s139 = sphi 0, %s125
    %s147 = sphi 0, %s149
    %s150 = sphi 0, %s147
    %s151 = sphi 0, %s150
    %s167 = sphi 0, %s151
  $region4: #{encoder_block_forward.1} parent=0 // loop_header_branch
    %14 = sbr.rel (%p12) target = $region8
  $region5: #{encoder_block_forward.1} parent=0 // loop_body
    %s16 = ssub.s32 %s11, 1
    %s17 = ssub.s32 %s11, 2
    %s24 = sadd.s32 1, %s19
    %p25 = scmp.ge.s32.totalorder %s24, 1
    %s26 = scalar_select %p25, 0, %s24
    %s27 = sadd.s32 1, %s18
    %s28 = scalar_select %p25, %s27, %s18
    %p29 = scmp.ge.s32.totalorder %s28, 2
    %s30 = scalar_select %p29, 0, %s28
    %s31 = ssub.s32 %s18, %s30
    %s32 = ssub.s32 %s19, %s26
    %s33 = sor.u32 %s31, %s32
    %p34 = scmp.eq.s32.totalorder %s33, 0
    %s36 = sadd.s32 %s35, 1
    %s37 = scalar_select %p34, %s35, %s36
    %p40 = pneg %p34
    %p41 = scmp.eq.s32.totalorder %s11, 1
    %p42 = por %p40, %p41
    %p43 = scmp.ne.s32.totalorder %s35, %s38
    %p44 = scmp.eq.s32.totalorder %s11, 0
    %p45 = por %p43, %p44
    %p46 = scmp.ne.s32.totalorder %s35, %s38
    %p47 = scmp.eq.s32.totalorder %s16, 1
    %p48 = por %p46, %p47
    %p49 = scmp.ne.s32.totalorder %s38, %s39
    %p50 = scmp.eq.s32.totalorder %s16, 0
    %p51 = por %p49, %p50
    %p52 = scmp.ne.s32.totalorder %s38, %s39
    %p53 = scmp.eq.s32.totalorder %s17, 1
    %p54 = por %p52, %p53
    %p56 = scmp.ne.s32.totalorder %s39, %s55
    %p57 = scmp.eq.s32.totalorder %s17, 0
    %p58 = por %p56, %p57
    %s60 = sadd.s32 %s59, 1
    %p63 = scmp.eq.s32.totalorder %s11, 1
    %p64 = scmp.ne.s32.totalorder %s59, %s61
    %p65 = scmp.eq.s32.totalorder %s11, 0
    %p66 = por %p64, %p65
    %p67 = scmp.ne.s32.totalorder %s59, %s61
    %p68 = scmp.eq.s32.totalorder %s16, 1
    %p69 = por %p67, %p68
    %p70 = scmp.ne.s32.totalorder %s61, %s62
    %p71 = scmp.eq.s32.totalorder %s16, 0
    %p72 = por %p70, %p71
    %p73 = scmp.ne.s32.totalorder %s61, %s62
    %p74 = scmp.eq.s32.totalorder %s17, 1
    %p75 = por %p73, %p74
    %p77 = scmp.ne.s32.totalorder %s62, %s76
    %p78 = scmp.eq.s32.totalorder %s17, 0
    %p79 = por %p77, %p78
    %s81 = sadd.s32 %s80, 1
    %p84 = scmp.eq.s32.totalorder %s11, 1
    %p85 = scmp.ne.s32.totalorder %s80, %s82
    %p86 = scmp.eq.s32.totalorder %s11, 0
    %p87 = por %p85, %p86
    %p88 = scmp.ne.s32.totalorder %s80, %s82
    %p89 = scmp.eq.s32.totalorder %s16, 1
    %p90 = por %p88, %p89
    %p91 = scmp.ne.s32.totalorder %s82, %s83
    %p92 = scmp.eq.s32.totalorder %s16, 0
    %p93 = por %p91, %p92
    %p94 = scmp.ne.s32.totalorder %s82, %s83
    %p95 = scmp.eq.s32.totalorder %s17, 1
    %p96 = por %p94, %p95
    %p98 = scmp.ne.s32.totalorder %s83, %s97
    %p99 = scmp.eq.s32.totalorder %s17, 0
    %p100 = por %p98, %p99
    %s102 = sadd.s32 %s101, 1
    %p105 = scmp.eq.s32.totalorder %s11, 1
    %p106 = scmp.ne.s32.totalorder %s101, %s103
    %p107 = scmp.eq.s32.totalorder %s11, 0
    %p108 = por %p106, %p107
    %p109 = scmp.ne.s32.totalorder %s101, %s103
    %p110 = scmp.eq.s32.totalorder %s16, 1
    %p111 = por %p109, %p110
    %p112 = scmp.ne.s32.totalorder %s103, %s104
    %p113 = scmp.eq.s32.totalorder %s16, 0
    %p114 = por %p112, %p113
    %p115 = scmp.ne.s32.totalorder %s103, %s104
    %p116 = scmp.eq.s32.totalorder %s17, 1
    %p117 = por %p115, %p116
    %p119 = scmp.ne.s32.totalorder %s104, %s118
    %p120 = scmp.eq.s32.totalorder %s17, 0
    %p121 = por %p119, %p120
    %s123 = sadd.s32 %s122, 1
    %p126 = scmp.eq.s32.totalorder %s11, 1
    %p127 = scmp.ne.s32.totalorder %s122, %s124
    %p128 = scmp.eq.s32.totalorder %s11, 0
    %p129 = por %p127, %p128
    %p130 = scmp.ne.s32.totalorder %s122, %s124
    %p131 = scmp.eq.s32.totalorder %s16, 1
    %p132 = por %p130, %p131
    %p133 = scmp.ne.s32.totalorder %s124, %s125
    %p134 = scmp.eq.s32.totalorder %s16, 0
    %p135 = por %p133, %p134
    %p136 = scmp.ne.s32.totalorder %s124, %s125
    %p137 = scmp.eq.s32.totalorder %s17, 1
    %p138 = por %p136, %p137
    %p140 = scmp.ne.s32.totalorder %s125, %s139
    %p141 = scmp.eq.s32.totalorder %s17, 0
    %p142 = por %p140, %p141
    %s143 = ssub.s32 %s18, %s30
    %s144 = ssub.s32 %s19, %s26
    %s145 = sor.u32 %s143, %s144
    %p146 = scmp.eq.s32.totalorder %s145, 0
    %s148 = sadd.s32 %s147, 1
    %s149 = scalar_select %p146, %s147, %s148
    %p152 = pneg %p146
    %p153 = scmp.eq.s32.totalorder %s11, 1
    %p154 = por %p152, %p153
    %p155 = scmp.ne.s32.totalorder %s147, %s150
    %p156 = scmp.eq.s32.totalorder %s11, 0
    %p157 = por %p155, %p156
    %p158 = scmp.ne.s32.totalorder %s147, %s150
    %p159 = scmp.eq.s32.totalorder %s16, 1
    %p160 = por %p158, %p159
    %p161 = scmp.ne.s32.totalorder %s150, %s151
    %p162 = scmp.eq.s32.totalorder %s16, 0
    %p163 = por %p161, %p162
    %p164 = scmp.ne.s32.totalorder %s150, %s151
    %p165 = scmp.eq.s32.totalorder %s17, 1
    %p166 = por %p164, %p165
    %p168 = scmp.ne.s32.totalorder %s151, %s167
    %p169 = scmp.eq.s32.totalorder %s17, 0
    %p170 = por %p168, %p169
    %p171 = scmp.le.s32.totalorder 1, %s11
    %p172 = scmp.lt.s32.totalorder %s11, 3
    %p173 = pnand %p171, %p172
    %p174 = pneg %p173
    // Predicated region
    $region9: #{encoder_block_forward.1} parent=5 // pred_check
      _
    $region10: #{encoder_block_forward.1} parent=5 // pred_check_branch
      %176 = sbr.rel (%p173) target = $region12
    $region11: #{encoder_block_forward.1} parent=5 // pred_region
      %s177 = ssub.s32 %s11, 1
      // Predicated region
      $region13: #{encoder_block_forward.1} parent=11 // pred_check
        %p178 = pneg %p72
      $region14: #{encoder_block_forward.1} parent=11 // pred_check_branch
        %180 = sbr.rel (%p178) target = $region16
      $region15: #{encoder_block_forward.1} parent=11 // pred_region
        _
      $region16: #{encoder_block_forward.1} parent=11 // pred_fallthru
        _
      // Predicated region
      $region17: #{encoder_block_forward.1} parent=11 // pred_check
        %p181 = pneg %p93
      $region18: #{encoder_block_forward.1} parent=11 // pred_check_branch
        %183 = sbr.rel (%p181) target = $region20
      $region19: #{encoder_block_forward.1} parent=11 // pred_region
        _
      $region20: #{encoder_block_forward.1} parent=11 // pred_fallthru
        _
      // Predicated region
      $region21: #{encoder_block_forward.1} parent=11 // pred_check
        %p184 = pneg %p114
      $region22: #{encoder_block_forward.1} parent=11 // pred_check_branch
        %186 = sbr.rel (%p184) target = $region24
      $region23: #{encoder_block_forward.1} parent=11 // pred_region
        _
      $region24: #{encoder_block_forward.1} parent=11 // pred_fallthru
        _
      // Predicated region
      $region25: #{encoder_block_forward.1} parent=11 // pred_check
        %p187 = pneg %p135
      $region26: #{encoder_block_forward.1} parent=11 // pred_check_branch
        %189 = sbr.rel (%p187) target = $region28
      $region27: #{encoder_block_forward.1} parent=11 // pred_region
        _
      $region28: #{encoder_block_forward.1} parent=11 // pred_fallthru
        _
    $region12: #{encoder_block_forward.1} parent=5 // pred_fallthru
      _
    %p190 = scmp.lt.s32.totalorder %s11, 2
    // Predicated region
    $region29: #{encoder_block_forward.1} parent=5 // pred_check
      %p191 = pneg %p190
    $region30: #{encoder_block_forward.1} parent=5 // pred_check_branch
      %193 = sbr.rel (%p191) target = $region32
    $region31: #{encoder_block_forward.1} parent=5 // pred_region
      // Predicated region
      $region33: #{encoder_block_forward.1} parent=31 // pred_check
        %p194 = pneg %p45
      $region34: #{encoder_block_forward.1} parent=31 // pred_check_branch
        %196 = sbr.rel (%p194) target = $region36
      $region35: #{encoder_block_forward.1} parent=31 // pred_region
        %p197 = scmp.lt.s32.totalorder %s18, 1
        %s198 = scalar_select %p197, %s18, 1
        %p199 = scmp.lt.s32.totalorder %s19, 0
        %s200 = scalar_select %p199, %s19, 0
        %s201 = smul.addr %s200, 36
        %s202 = smul.addr %s198, 36
        %s203 = sadd.s32 %s201, %s202
        %s204 = smul.addr %s203, 4
        %s205 = scalar_lea.vmem %s0, %s204
      $region36: #{encoder_block_forward.1} parent=31 // pred_fallthru
        _
    $region32: #{encoder_block_forward.1} parent=5 // pred_fallthru
      _
    %p206 = scmp.le.s32.totalorder 1, %s11
    %p207 = scmp.lt.s32.totalorder %s11, 3
    %p208 = pnand %p206, %p207
    %p209 = pneg %p208
    // Predicated region
    $region37: #{encoder_block_forward.1} parent=5 // pred_check
      _
    $region38: #{encoder_block_forward.1} parent=5 // pred_check_branch
      %211 = sbr.rel (%p208) target = $region40
    $region39: #{encoder_block_forward.1} parent=5 // pred_region
      %s212 = ssub.s32 %s11, 1
      %p213 = scmp.lt.s32.totalorder %s20, 1
      %s214 = scalar_select %p213, %s20, 1
      %p215 = scmp.lt.s32.totalorder %s21, 0
      %s216 = scalar_select %p215, %s21, 0
      %s217 = smul.addr %s216, 36
      %s218 = smul.addr %s214, 36
      %s219 = sadd.s32 %s217, %s218
      %s220 = smul.addr %s219, 4
      %s221 = scalar_lea.vmem %s0, %s220
      %p222 = pneg %p51
      %p223 = pneg %p48
      %p224 = pneg %p72
      %p225 = pneg %p69
      %p226 = pneg %p93
      %p227 = pneg %p90
      %p228 = pneg %p114
      %p229 = pneg %p111
      %p230 = pneg %p135
      %p231 = pneg %p132
      %p232 = pneg %p163
      %p233 = pneg %p160
      %s234 = smul.u32 8, %s21
      %p235 = scmp.lt.s32.totalorder %s20, 1
      %s236 = scalar_select %p235, %s20, 1
      %p237 = scmp.lt.s32.totalorder %s234, 7
      %s238 = scalar_select %p237, %s234, 7
      %s239 = smul.addr %s236, 8
      %s240 = sadd.s32 %s238, %s239
      %s241 = smul.addr %s240, 4
      %s242 = scalar_lea.vmem %s5, %s241
      %p243 = scmp.lt.s32.totalorder %s20, 1
      %s244 = scalar_select %p243, %s20, 1
      %p245 = scmp.lt.s32.totalorder %s21, 0
      %s246 = scalar_select %p245, %s21, 0
      %s247 = smul.addr %s246, 36
      %s248 = smul.addr %s244, 36
      %s249 = sadd.s32 %s247, %s248
      %s250 = smul.addr %s249, 4
      %s251 = scalar_lea.vmem %s0, %s250
      %s252 = smul.u32 8, %s21
      %p253 = scmp.lt.s32.totalorder %s20, 1
      %s254 = scalar_select %p253, %s20, 1
      %p255 = scmp.lt.s32.totalorder %s252, 7
      %s256 = scalar_select %p255, %s252, 7
      %s257 = smul.addr %s254, 8
      %s258 = sadd.s32 %s256, %s257
      %s259 = smul.addr %s258, 4
      %s260 = scalar_lea.vmem %s5, %s259
      %s261 = smul.u32 8, %s21
      %v263 = vld [vmem:[%s251] sm:$0xf]
      %v264 = vld [vmem:[%s251 + $0x4] sm:$0xf]
      %v265 = vld [vmem:[%s251 + $0x8] sm:$0xf]
      %v266 = vld [vmem:[%s251 + $0xc] sm:$0xf]
      %v267 = vld [vmem:[%s251 + $0x10] sm:$0xf]
      %v268 = vld [vmem:[%s251 + $0x14] sm:$0xf]
      %v269 = vld [vmem:[%s251 + $0x18] sm:$0xf]
      %v270 = vld [vmem:[%s251 + $0x1c] sm:$0xf]
      %v271 = vld [vmem:[%s251 + $0x20] sm:$0xf]
      %v272 = vld [vmem:[%s251 + $0x24] sm:$0xf]
      %v273 = vld [vmem:[%s251 + $0x28] sm:$0xf]
      %v274 = vld [vmem:[%s251 + $0x2c] sm:$0xf]
      %v275 = vld [vmem:[%s251 + $0x30] sm:$0xf]
      %v276 = vld [vmem:[%s251 + $0x34] sm:$0xf]
      %v277 = vld [vmem:[%s251 + $0x38] sm:$0xf]
      %v278 = vld [vmem:[%s251 + $0x3c] sm:$0xf]
      %v279 = vld [vmem:[%s251 + $0x40] sm:$0xf]
      %v280 = vld [vmem:[%s251 + $0x44] sm:$0xf]
      %v281 = vld [vmem:[%s251 + $0x48] sm:$0xf]
      %v282 = vld [vmem:[%s251 + $0x4c] sm:$0xf]
      %v283 = vld [vmem:[%s251 + $0x50] sm:$0xf]
      %v284 = vld [vmem:[%s251 + $0x54] sm:$0xf]
      %v285 = vld [vmem:[%s251 + $0x58] sm:$0xf]
      %v286 = vld [vmem:[%s251 + $0x5c] sm:$0xf]
      %v287 = vld [vmem:[%s251 + $0x60] sm:$0xf]
      %v288 = vld [vmem:[%s251 + $0x64] sm:$0xf]
      %v289 = vld [vmem:[%s251 + $0x68] sm:$0xf]
      %v290 = vld [vmem:[%s251 + $0x6c] sm:$0xf]
      %v291 = vld [vmem:[%s251 + $0x70] sm:$0xf]
      %v292 = vld [vmem:[%s251 + $0x74] sm:$0xf]
      %v293 = vld [vmem:[%s251 + $0x78] sm:$0xf]
      %v294 = vld [vmem:[%s251 + $0x7c] sm:$0xf]
      %v295 = vld [vmem:[%s251 + $0x80] sm:$0xf]
      %v296 = vld [vmem:[%s251 + $0x84] sm:$0xf]
      %v297 = vld [vmem:[%s251 + $0x88] sm:$0xf]
      %v298 = vld [vmem:[%s251 + $0x8c] sm:$0xf]
      %v299 = vld [vmem:[%s1] sm:$0xf]
      %v300 = vld [vmem:[%s1 + $0x4] sm:$0xf]
      %v301 = vld [vmem:[%s1 + $0x8] sm:$0xf]
      %v302 = vld [vmem:[%s1 + $0xc] sm:$0xf]
      %v303 = vld [vmem:[%s1 + $0x10] sm:$0xf]
      %v304 = vld [vmem:[%s1 + $0x14] sm:$0xf]
      %v305 = vld [vmem:[%s1 + $0x18] sm:$0xf]
      %v306 = vld [vmem:[%s1 + $0x1c] sm:$0xf]
      %v307 = vld [vmem:[%s1 + $0x20] sm:$0xf]
      %v308 = vld [vmem:[%s1 + $0x24] sm:$0xf]
      %v309 = vld [vmem:[%s1 + $0x28] sm:$0xf]
      %v310 = vld [vmem:[%s1 + $0x2c] sm:$0xf]
      %v311 = vld [vmem:[%s1 + $0x30] sm:$0xf]
      %v312 = vld [vmem:[%s1 + $0x34] sm:$0xf]
      %v313 = vld [vmem:[%s1 + $0x38] sm:$0xf]
      %v314 = vld [vmem:[%s1 + $0x3c] sm:$0xf]
      %v315 = vld [vmem:[%s2] sm:$0x1]
      %v317 = vlaneseq
      %v318 = vshrl.u32 %v317, 7
      %v319 = vsub.s32 0, %v318
      %v320 = vrot.slane %v315, %v319
      %v358 = vunpack.c.l.b16 %v263
      %v359 = vunpack.c.l.b16 %v264
      %v360 = vunpack.c.l.b16 %v265
      %v361 = vunpack.c.l.b16 %v266
      %v362 = vunpack.c.l.b16 %v267
      %v363 = vunpack.c.l.b16 %v268
      %v364 = vunpack.c.l.b16 %v269
      %v365 = vunpack.c.l.b16 %v270
      %v366 = vunpack.c.l.b16 %v271
      %v367 = vunpack.c.l.b16 %v272
      %v368 = vunpack.c.l.b16 %v273
      %v369 = vunpack.c.l.b16 %v274
      %v370 = vunpack.c.l.b16 %v275
      %v371 = vunpack.c.l.b16 %v276
      %v372 = vunpack.c.l.b16 %v277
      %v373 = vunpack.c.l.b16 %v278
      %v374 = vunpack.c.l.b16 %v279
      %v375 = vunpack.c.l.b16 %v280
      %v376 = vunpack.c.l.b16 %v281
      %v377 = vunpack.c.l.b16 %v282
      %v378 = vunpack.c.l.b16 %v283
      %v379 = vunpack.c.l.b16 %v284
      %v380 = vunpack.c.l.b16 %v285
      %v381 = vunpack.c.l.b16 %v286
      %v382 = vunpack.c.l.b16 %v287
      %v383 = vunpack.c.l.b16 %v288
      %v384 = vunpack.c.l.b16 %v289
      %v385 = vunpack.c.l.b16 %v290
      %v386 = vunpack.c.l.b16 %v291
      %v387 = vunpack.c.l.b16 %v292
      %v388 = vunpack.c.l.b16 %v293
      %v389 = vunpack.c.l.b16 %v294
      %v390 = vunpack.c.l.b16 %v295
      %v391 = vunpack.c.l.b16 %v296
      %v392 = vunpack.c.l.b16 %v297
      %v393 = vunpack.c.l.b16 %v298
      %v394 = vpack.c.b16 %v359, %v358
      %v395 = vpack.c.b16 %v361, %v360
      %v396 = vpack.c.b16 %v363, %v362
      %v397 = vpack.c.b16 %v365, %v364
      %v398 = vpack.c.b16 %v367, %v366
      %v399 = vpack.c.b16 %v369, %v368
      %v400 = vpack.c.b16 %v371, %v370
      %v401 = vpack.c.b16 %v373, %v372
      %v402 = vpack.c.b16 %v375, %v374
      %v403 = vpack.c.b16 %v377, %v376
      %v404 = vpack.c.b16 %v379, %v378
      %v405 = vpack.c.b16 %v381, %v380
      %v406 = vpack.c.b16 %v383, %v382
      %v407 = vpack.c.b16 %v385, %v384
      %v408 = vpack.c.b16 %v387, %v386
      %v409 = vpack.c.b16 %v389, %v388
      %v410 = vpack.c.b16 %v391, %v390
      %v411 = vpack.c.b16 %v393, %v392
      %v446 = vunpack.c.l.b16 %v299
      %v447 = vunpack.c.l.b16 %v300
      %v448 = vunpack.c.l.b16 %v301
      %v449 = vunpack.c.l.b16 %v302
      %v450 = vunpack.c.l.b16 %v303
      %v451 = vunpack.c.l.b16 %v304
      %v452 = vunpack.c.l.b16 %v305
      %v453 = vunpack.c.l.b16 %v306
      %v454 = vunpack.c.l.b16 %v307
      %v455 = vunpack.c.l.b16 %v308
      %v456 = vunpack.c.l.b16 %v309
      %v457 = vunpack.c.l.b16 %v310
      %v458 = vunpack.c.l.b16 %v311
      %v459 = vunpack.c.l.b16 %v312
      %v460 = vunpack.c.l.b16 %v313
      %v461 = vunpack.c.l.b16 %v314
      %v462 = vpack.c.b16 %v447, %v446
      %v463 = vpack.c.b16 %v449, %v448
      %v464 = vpack.c.b16 %v451, %v450
      %v465 = vpack.c.b16 %v453, %v452
      %v466 = vpack.c.b16 %v455, %v454
      %v467 = vpack.c.b16 %v457, %v456
      %v468 = vpack.c.b16 %v459, %v458
      %v469 = vpack.c.b16 %v461, %v460
      %478 = vmatprep.subr.bf16.mxu0 0
      %479 = vmatpush1.bf16.msra.mxu0 %v469
      %480 = vmatprep.subr.bf16.mxu0 0
      %481 = vmatpush1.bf16.msra.mxu0 %v468
      %482 = vmatprep.subr.bf16.mxu0 0
      %483 = vmatpush1.bf16.msra.mxu0 %v467
      %484 = vmatprep.subr.bf16.mxu0 0
      %485 = vmatpush1.bf16.msra.mxu0 %v466
      %486 = vmatprep.subr.bf16.mxu0 0
      %487 = vmatpush1.bf16.msra.mxu0 %v465
      %488 = vmatprep.subr.bf16.mxu0 0
      %489 = vmatpush1.bf16.msra.mxu0 %v464
      %490 = vmatprep.subr.bf16.mxu0 0
      %491 = vmatpush1.bf16.msra.mxu0 %v463
      %492 = vmatprep.subr.bf16.mxu0 0
      %493 = vmatpush1.bf16.msra.mxu0 %v462
      %494 = vmatprep.subr.bf16.mxu0 0
      %495 = vmatpush2.bf16.msra.mxu0 0
      %496 = vmatprep.subr.bf16.mxu0 0
      %497 = vmatpush2.bf16.msra.mxu0 0
      %498 = vmatprep.subr.bf16.mxu0 0
      %499 = vmatpush2.bf16.msra.mxu0 0
      %500 = vmatprep.subr.bf16.mxu0 0
      %501 = vmatpush2.bf16.msra.mxu0 0
      %502 = vmatprep.subr.bf16.mxu0 0
      %503 = vmatpush2.bf16.msra.mxu0 0
      %504 = vmatprep.subr.bf16.mxu0 0
      %505 = vmatpush2.bf16.msra.mxu0 0
      %506 = vmatprep.subr.bf16.mxu0 0
      %507 = vmatpush2.bf16.msra.mxu0 0
      %508 = vmatprep.subr.bf16.mxu0 0
      %509 = vmatpush2.bf16.msra.mxu0 0
      %510 = vmatprep.mubr.bf16.mxu0 0
      %511 = vmatmul.mubr.bf16.gmra.mxu0 %v394
      %v512 = vpop.f32.mrf.mxu0
      %v513 = vadd.f32 %v320, %v512
      %v514 = vpop.f32.mrf.mxu0
      %v515 = vpop.f32.mrf.mxu0
      %v516 = vadd.f32 %v320, %v515
      %v517 = vpop.f32.mrf.mxu0
      %518 = vmatprep.mubr.bf16.mxu0 0
      %519 = vmatmul.mubr.bf16.gmra.mxu0 %v395
      %v520 = vpop.f32.mrf.mxu0
      %v521 = vadd.f32 %v320, %v520
      %v522 = vpop.f32.mrf.mxu0
      %v523 = vpop.f32.mrf.mxu0
      %v524 = vadd.f32 %v320, %v523
      %v525 = vpop.f32.mrf.mxu0
      %526 = vmatprep.mubr.bf16.mxu0 0
      %527 = vmatmul.mubr.bf16.gmra.mxu0 %v396
      %v528 = vpop.f32.mrf.mxu0
      %v529 = vadd.f32 %v320, %v528
      %v530 = vpop.f32.mrf.mxu0
      %v531 = vpop.f32.mrf.mxu0
      %v532 = vadd.f32 %v320, %v531
      %v533 = vpop.f32.mrf.mxu0
      %534 = vmatprep.mubr.bf16.mxu0 0
      %535 = vmatmul.mubr.bf16.gmra.mxu0 %v397
      %v536 = vpop.f32.mrf.mxu0
      %v537 = vadd.f32 %v320, %v536
      %v538 = vpop.f32.mrf.mxu0
      %v539 = vpop.f32.mrf.mxu0
      %v540 = vadd.f32 %v320, %v539
      %v541 = vpop.f32.mrf.mxu0
      %542 = vmatprep.mubr.bf16.mxu0 0
      %543 = vmatmul.mubr.bf16.gmra.mxu0 %v398
      %v544 = vpop.f32.mrf.mxu0
      %v545 = vadd.f32 %v320, %v544
      %v546 = vpop.f32.mrf.mxu0
      %v547 = vpop.f32.mrf.mxu0
      %v548 = vadd.f32 %v320, %v547
      %v549 = vpop.f32.mrf.mxu0
      %550 = vmatprep.mubr.bf16.mxu0 0
      %551 = vmatmul.mubr.bf16.gmra.mxu0 %v399
      %v552 = vpop.f32.mrf.mxu0
      %v553 = vadd.f32 %v320, %v552
      %v554 = vpop.f32.mrf.mxu0
      %v555 = vpop.f32.mrf.mxu0
      %v556 = vadd.f32 %v320, %v555
      %v557 = vpop.f32.mrf.mxu0
      %558 = vmatprep.mubr.bf16.mxu0 0
      %559 = vmatmul.mubr.bf16.gmra.mxu0 %v400
      %v560 = vpop.f32.mrf.mxu0
      %v561 = vadd.f32 %v320, %v560
      %v562 = vpop.f32.mrf.mxu0
      %v563 = vpop.f32.mrf.mxu0
      %v564 = vadd.f32 %v320, %v563
      %v565 = vpop.f32.mrf.mxu0
      %566 = vmatprep.mubr.bf16.mxu0 0
      %567 = vmatmul.mubr.bf16.gmra.mxu0 %v401
      %v568 = vpop.f32.mrf.mxu0
      %v569 = vadd.f32 %v320, %v568
      %v570 = vpop.f32.mrf.mxu0
      %v571 = vpop.f32.mrf.mxu0
      %v572 = vadd.f32 %v320, %v571
      %v573 = vpop.f32.mrf.mxu0
      %574 = vmatprep.mubr.bf16.mxu0 0
      %575 = vmatmul.mubr.bf16.gmra.mxu0 %v402
      %v576 = vpop.f32.mrf.mxu0
      %v577 = vadd.f32 %v320, %v576
      %v578 = vpop.f32.mrf.mxu0
      %v579 = vpop.f32.mrf.mxu0
      %v580 = vadd.f32 %v320, %v579
      %v581 = vpop.f32.mrf.mxu0
      %582 = vmatprep.mubr.bf16.mxu0 0
      %583 = vmatmul.mubr.bf16.gmra.mxu0 %v403
      %v584 = vpop.f32.mrf.mxu0
      %v585 = vadd.f32 %v320, %v584
      %v586 = vpop.f32.mrf.mxu0
      %v587 = vpop.f32.mrf.mxu0
      %v588 = vadd.f32 %v320, %v587
      %v589 = vpop.f32.mrf.mxu0
      %590 = vmatprep.mubr.bf16.mxu0 0
      %591 = vmatmul.mubr.bf16.gmra.mxu0 %v404
      %v592 = vpop.f32.mrf.mxu0
      %v593 = vadd.f32 %v320, %v592
      %v594 = vpop.f32.mrf.mxu0
      %v595 = vpop.f32.mrf.mxu0
      %v596 = vadd.f32 %v320, %v595
      %v597 = vpop.f32.mrf.mxu0
      %598 = vmatprep.mubr.bf16.mxu0 0
      %599 = vmatmul.mubr.bf16.gmra.mxu0 %v405
      %v600 = vpop.f32.mrf.mxu0
      %v601 = vadd.f32 %v320, %v600
      %v602 = vpop.f32.mrf.mxu0
      %v603 = vpop.f32.mrf.mxu0
      %v604 = vadd.f32 %v320, %v603
      %v605 = vpop.f32.mrf.mxu0
      %606 = vmatprep.mubr.bf16.mxu0 0
      %607 = vmatmul.mubr.bf16.gmra.mxu0 %v406
      %v608 = vpop.f32.mrf.mxu0
      %v609 = vadd.f32 %v320, %v608
      %v610 = vpop.f32.mrf.mxu0
      %v611 = vpop.f32.mrf.mxu0
      %v612 = vadd.f32 %v320, %v611
      %v613 = vpop.f32.mrf.mxu0
      %614 = vmatprep.mubr.bf16.mxu0 0
      %615 = vmatmul.mubr.bf16.gmra.mxu0 %v407
      %v616 = vpop.f32.mrf.mxu0
      %v617 = vadd.f32 %v320, %v616
      %v618 = vpop.f32.mrf.mxu0
      %v619 = vpop.f32.mrf.mxu0
      %v620 = vadd.f32 %v320, %v619
      %v621 = vpop.f32.mrf.mxu0
      %622 = vmatprep.mubr.bf16.mxu0 0
      %623 = vmatmul.mubr.bf16.gmra.mxu0 %v408
      %v624 = vpop.f32.mrf.mxu0
      %v625 = vadd.f32 %v320, %v624
      %v626 = vpop.f32.mrf.mxu0
      %v627 = vpop.f32.mrf.mxu0
      %v628 = vadd.f32 %v320, %v627
      %v629 = vpop.f32.mrf.mxu0
      %630 = vmatprep.mubr.bf16.mxu0 0
      %631 = vmatmul.mubr.bf16.gmra.mxu0 %v409
      %v632 = vpop.f32.mrf.mxu0
      %v633 = vadd.f32 %v320, %v632
      %v634 = vpop.f32.mrf.mxu0
      %v635 = vpop.f32.mrf.mxu0
      %v636 = vadd.f32 %v320, %v635
      %v637 = vpop.f32.mrf.mxu0
      %638 = vmatprep.mubr.bf16.mxu0 0
      %639 = vmatmul.mubr.bf16.gmra.mxu0 %v410
      %v640 = vpop.f32.mrf.mxu0
      %v641 = vadd.f32 %v320, %v640
      %v642 = vpop.f32.mrf.mxu0
      %v643 = vpop.f32.mrf.mxu0
      %v644 = vadd.f32 %v320, %v643
      %v645 = vpop.f32.mrf.mxu0
      %646 = vmatprep.mubr.bf16.mxu0 0
      %647 = vmatmul.mubr.bf16.gmra.mxu0 %v411
      %v648 = vpop.f32.mrf.mxu0
      %v649 = vadd.f32 %v320, %v648
      %v650 = vpop.f32.mrf.mxu0
      %v651 = vpop.f32.mrf.mxu0
      %v652 = vadd.f32 %v320, %v651
      %v653 = vpop.f32.mrf.mxu0
      %654 = vdwg.mxu0
      %v655 = vmax.f32 %v513, 0.0
      %v656 = vmax.f32 %v516, 0.0
      %v657 = vmax.f32 %v521, 0.0
      %v658 = vmax.f32 %v524, 0.0
      %v659 = vmax.f32 %v529, 0.0
      %v660 = vmax.f32 %v532, 0.0
      %v661 = vmax.f32 %v537, 0.0
      %v662 = vmax.f32 %v540, 0.0
      %v663 = vmax.f32 %v545, 0.0
      %v664 = vmax.f32 %v548, 0.0
      %v665 = vmax.f32 %v553, 0.0
      %v666 = vmax.f32 %v556, 0.0
      %v667 = vmax.f32 %v561, 0.0
      %v668 = vmax.f32 %v564, 0.0
      %v669 = vmax.f32 %v569, 0.0
      %v670 = vmax.f32 %v572, 0.0
      %v671 = vmax.f32 %v577, 0.0
      %v672 = vmax.f32 %v580, 0.0
      %v673 = vmax.f32 %v585, 0.0
      %v674 = vmax.f32 %v588, 0.0
      %v675 = vmax.f32 %v593, 0.0
      %v676 = vmax.f32 %v596, 0.0
      %v677 = vmax.f32 %v601, 0.0
      %v678 = vmax.f32 %v604, 0.0
      %v679 = vmax.f32 %v609, 0.0
      %v680 = vmax.f32 %v612, 0.0
      %v681 = vmax.f32 %v617, 0.0
      %v682 = vmax.f32 %v620, 0.0
      %v683 = vmax.f32 %v625, 0.0
      %v684 = vmax.f32 %v628, 0.0
      %v685 = vmax.f32 %v633, 0.0
      %v686 = vmax.f32 %v636, 0.0
      %v687 = vmax.f32 %v641, 0.0
      %v688 = vmax.f32 %v644, 0.0
      %v689 = vmax.f32 %v649, 0.0
      %v690 = vmax.f32 %v652, 0.0
      %v691 = vlaneseq
      %v692 = vshrl.u32 %v691, 7
      %v693 = vadd.s32 %v692, 8
      %v694 = vadd.s32 %v692, 16
      %v695 = vadd.s32 %v692, 24
      %v696 = vadd.s32 %v692, 32
      %v697 = vadd.s32 %v692, 40
      %v698 = vadd.s32 %v692, 48
      %v699 = vadd.s32 %v692, 56
      %v700 = vadd.s32 %v692, 64
      %v701 = vadd.s32 %v692, 72
      %v702 = vadd.s32 %v692, 80
      %v703 = vadd.s32 %v692, 88
      %v704 = vadd.s32 %v692, 96
      %v705 = vadd.s32 %v692, 104
      %v706 = vadd.s32 %v692, 112
      %v707 = vadd.s32 %v692, 120
      %v708 = vadd.s32 %v692, 128
      %v709 = vadd.s32 %v692, 136
      %v710 = vadd.s32 %v692, 144
      %v711 = vadd.s32 %v692, 152
      %v712 = vadd.s32 %v692, 160
      %v713 = vadd.s32 %v692, 168
      %v714 = vadd.s32 %v692, 176
      %v715 = vadd.s32 %v692, 184
      %v716 = vadd.s32 %v692, 192
      %v717 = vadd.s32 %v692, 200
      %v718 = vadd.s32 %v692, 208
      %v719 = vadd.s32 %v692, 216
      %v720 = vadd.s32 %v692, 224
      %v721 = vadd.s32 %v692, 232
      %v722 = vadd.s32 %v692, 240
      %v723 = vadd.s32 %v692, 248
      %v724 = vadd.s32 %v692, 256
      %v725 = vadd.s32 %v692, 264
      %v726 = vadd.s32 %v692, 272
      %v727 = vadd.s32 %v692, 280
      %p728 = scmp.eq.s32.totalorder %s21, 0
      %vm729 = vcmp.lt.s32.totalorder %v692, 16
      %vm730 = vcmp.lt.s32.totalorder %v693, 16
      %vm731 = vcmp.lt.s32.totalorder %v694, 16
      %vm732 = vcmp.lt.s32.totalorder %v695, 16
      %vm733 = vcmp.lt.s32.totalorder %v696, 16
      %vm734 = vcmp.lt.s32.totalorder %v697, 16
      %vm735 = vcmp.lt.s32.totalorder %v698, 16
      %vm736 = vcmp.lt.s32.totalorder %v699, 16
      %vm737 = vcmp.lt.s32.totalorder %v700, 16
      %vm738 = vcmp.lt.s32.totalorder %v701, 16
      %vm739 = vcmp.lt.s32.totalorder %v702, 16
      %vm740 = vcmp.lt.s32.totalorder %v703, 16
      %vm741 = vcmp.lt.s32.totalorder %v704, 16
      %vm742 = vcmp.lt.s32.totalorder %v705, 16
      %vm743 = vcmp.lt.s32.totalorder %v706, 16
      %vm744 = vcmp.lt.s32.totalorder %v707, 16
      %vm745 = vcmp.lt.s32.totalorder %v708, 16
      %vm746 = vcmp.lt.s32.totalorder %v709, 16
      %vm747 = vcmp.lt.s32.totalorder %v710, 16
      %vm748 = vcmp.lt.s32.totalorder %v711, 16
      %vm749 = vcmp.lt.s32.totalorder %v712, 16
      %vm750 = vcmp.lt.s32.totalorder %v713, 16
      %vm751 = vcmp.lt.s32.totalorder %v714, 16
      %vm752 = vcmp.lt.s32.totalorder %v715, 16
      %vm753 = vcmp.lt.s32.totalorder %v716, 16
      %vm754 = vcmp.lt.s32.totalorder %v717, 16
      %vm755 = vcmp.lt.s32.totalorder %v718, 16
      %vm756 = vcmp.lt.s32.totalorder %v719, 16
      %vm757 = vcmp.lt.s32.totalorder %v720, 16
      %vm758 = vcmp.lt.s32.totalorder %v721, 16
      %vm759 = vcmp.lt.s32.totalorder %v722, 16
      %vm760 = vcmp.lt.s32.totalorder %v723, 16
      %vm761 = vcmp.lt.s32.totalorder %v724, 16
      %vm762 = vcmp.lt.s32.totalorder %v725, 16
      %vm763 = vcmp.lt.s32.totalorder %v726, 16
      %vm764 = vcmp.lt.s32.totalorder %v727, 16
      %s765 = scalar_select %p728, 1, 0
      %v766 = vstv %s765
      %vm767 = vcmp.eq.s32.totalorder %v766, 1
      %vm768 = vmand %vm767, %vm729
      %vm769 = vmand %vm767, %vm730
      %vm770 = vmand %vm767, %vm731
      %vm771 = vmand %vm767, %vm732
      %vm772 = vmand %vm767, %vm733
      %vm773 = vmand %vm767, %vm734
      %vm774 = vmand %vm767, %vm735
      %vm775 = vmand %vm767, %vm736
      %vm776 = vmand %vm767, %vm737
      %vm777 = vmand %vm767, %vm738
      %vm778 = vmand %vm767, %vm739
      %vm779 = vmand %vm767, %vm740
      %vm780 = vmand %vm767, %vm741
      %vm781 = vmand %vm767, %vm742
      %vm782 = vmand %vm767, %vm743
      %vm783 = vmand %vm767, %vm744
      %vm784 = vmand %vm767, %vm745
      %vm785 = vmand %vm767, %vm746
      %vm786 = vmand %vm767, %vm747
      %vm787 = vmand %vm767, %vm748
      %vm788 = vmand %vm767, %vm749
      %vm789 = vmand %vm767, %vm750
      %vm790 = vmand %vm767, %vm751
      %vm791 = vmand %vm767, %vm752
      %vm792 = vmand %vm767, %vm753
      %vm793 = vmand %vm767, %vm754
      %vm794 = vmand %vm767, %vm755
      %vm795 = vmand %vm767, %vm756
      %vm796 = vmand %vm767, %vm757
      %vm797 = vmand %vm767, %vm758
      %vm798 = vmand %vm767, %vm759
      %vm799 = vmand %vm767, %vm760
      %vm800 = vmand %vm767, %vm761
      %vm801 = vmand %vm767, %vm762
      %vm802 = vmand %vm767, %vm763
      %vm803 = vmand %vm767, %vm764
      %vm804 = vcmp.ge.s32.totalorder %v692, 272
      %vm805 = vcmp.ge.s32.totalorder %v693, 272
      %vm806 = vcmp.ge.s32.totalorder %v694, 272
      %vm807 = vcmp.ge.s32.totalorder %v695, 272
      %vm808 = vcmp.ge.s32.totalorder %v696, 272
      %vm809 = vcmp.ge.s32.totalorder %v697, 272
      %vm810 = vcmp.ge.s32.totalorder %v698, 272
      %vm811 = vcmp.ge.s32.totalorder %v699, 272
      %vm812 = vcmp.ge.s32.totalorder %v700, 272
      %vm813 = vcmp.ge.s32.totalorder %v701, 272
      %vm814 = vcmp.ge.s32.totalorder %v702, 272
      %vm815 = vcmp.ge.s32.totalorder %v703, 272
      %vm816 = vcmp.ge.s32.totalorder %v704, 272
      %vm817 = vcmp.ge.s32.totalorder %v705, 272
      %vm818 = vcmp.ge.s32.totalorder %v706, 272
      %vm819 = vcmp.ge.s32.totalorder %v707, 272
      %vm820 = vcmp.ge.s32.totalorder %v708, 272
      %vm821 = vcmp.ge.s32.totalorder %v709, 272
      %vm822 = vcmp.ge.s32.totalorder %v710, 272
      %vm823 = vcmp.ge.s32.totalorder %v711, 272
      %vm824 = vcmp.ge.s32.totalorder %v712, 272
      %vm825 = vcmp.ge.s32.totalorder %v713, 272
      %vm826 = vcmp.ge.s32.totalorder %v714, 272
      %vm827 = vcmp.ge.s32.totalorder %v715, 272
      %vm828 = vcmp.ge.s32.totalorder %v716, 272
      %vm829 = vcmp.ge.s32.totalorder %v717, 272
      %vm830 = vcmp.ge.s32.totalorder %v718, 272
      %vm831 = vcmp.ge.s32.totalorder %v719, 272
      %vm832 = vcmp.ge.s32.totalorder %v720, 272
      %vm833 = vcmp.ge.s32.totalorder %v721, 272
      %vm834 = vcmp.ge.s32.totalorder %v722, 272
      %vm835 = vcmp.ge.s32.totalorder %v723, 272
      %vm836 = vcmp.ge.s32.totalorder %v724, 272
      %vm837 = vcmp.ge.s32.totalorder %v725, 272
      %vm838 = vcmp.ge.s32.totalorder %v726, 272
      %vm839 = vcmp.ge.s32.totalorder %v727, 272
      %vm840 = vmand %vm767, %vm804
      %vm841 = vmand %vm767, %vm805
      %vm842 = vmand %vm767, %vm806
      %vm843 = vmand %vm767, %vm807
      %vm844 = vmand %vm767, %vm808
      %vm845 = vmand %vm767, %vm809
      %vm846 = vmand %vm767, %vm810
      %vm847 = vmand %vm767, %vm811
      %vm848 = vmand %vm767, %vm812
      %vm849 = vmand %vm767, %vm813
      %vm850 = vmand %vm767, %vm814
      %vm851 = vmand %vm767, %vm815
      %vm852 = vmand %vm767, %vm816
      %vm853 = vmand %vm767, %vm817
      %vm854 = vmand %vm767, %vm818
      %vm855 = vmand %vm767, %vm819
      %vm856 = vmand %vm767, %vm820
      %vm857 = vmand %vm767, %vm821
      %vm858 = vmand %vm767, %vm822
      %vm859 = vmand %vm767, %vm823
      %vm860 = vmand %vm767, %vm824
      %vm861 = vmand %vm767, %vm825
      %vm862 = vmand %vm767, %vm826
      %vm863 = vmand %vm767, %vm827
      %vm864 = vmand %vm767, %vm828
      %vm865 = vmand %vm767, %vm829
      %vm866 = vmand %vm767, %vm830
      %vm867 = vmand %vm767, %vm831
      %vm868 = vmand %vm767, %vm832
      %vm869 = vmand %vm767, %vm833
      %vm870 = vmand %vm767, %vm834
      %vm871 = vmand %vm767, %vm835
      %vm872 = vmand %vm767, %vm836
      %vm873 = vmand %vm767, %vm837
      %vm874 = vmand %vm767, %vm838
      %vm875 = vmand %vm767, %vm839
      %vm876 = vmor %vm768, %vm840
      %vm877 = vmor %vm769, %vm841
      %vm878 = vmor %vm770, %vm842
      %vm879 = vmor %vm771, %vm843
      %vm880 = vmor %vm772, %vm844
      %vm881 = vmor %vm773, %vm845
      %vm882 = vmor %vm774, %vm846
      %vm883 = vmor %vm775, %vm847
      %vm884 = vmor %vm776, %vm848
      %vm885 = vmor %vm777, %vm849
      %vm886 = vmor %vm778, %vm850
      %vm887 = vmor %vm779, %vm851
      %vm888 = vmor %vm780, %vm852
      %vm889 = vmor %vm781, %vm853
      %vm890 = vmor %vm782, %vm854
      %vm891 = vmor %vm783, %vm855
      %vm892 = vmor %vm784, %vm856
      %vm893 = vmor %vm785, %vm857
      %vm894 = vmor %vm786, %vm858
      %vm895 = vmor %vm787, %vm859
      %vm896 = vmor %vm788, %vm860
      %vm897 = vmor %vm789, %vm861
      %vm898 = vmor %vm790, %vm862
      %vm899 = vmor %vm791, %vm863
      %vm900 = vmor %vm792, %vm864
      %vm901 = vmor %vm793, %vm865
      %vm902 = vmor %vm794, %vm866
      %vm903 = vmor %vm795, %vm867
      %vm904 = vmor %vm796, %vm868
      %vm905 = vmor %vm797, %vm869
      %vm906 = vmor %vm798, %vm870
      %vm907 = vmor %vm799, %vm871
      %vm908 = vmor %vm800, %vm872
      %vm909 = vmor %vm801, %vm873
      %vm910 = vmor %vm802, %vm874
      %vm911 = vmor %vm803, %vm875
      %v912 = vsel %vm876, 1, 0
      %v913 = vsel %vm877, 1, 0
      %v914 = vsel %vm878, 1, 0
      %v915 = vsel %vm879, 1, 0
      %v916 = vsel %vm880, 1, 0
      %v917 = vsel %vm881, 1, 0
      %v918 = vsel %vm882, 1, 0
      %v919 = vsel %vm883, 1, 0
      %v920 = vsel %vm884, 1, 0
      %v921 = vsel %vm885, 1, 0
      %v922 = vsel %vm886, 1, 0
      %v923 = vsel %vm887, 1, 0
      %v924 = vsel %vm888, 1, 0
      %v925 = vsel %vm889, 1, 0
      %v926 = vsel %vm890, 1, 0
      %v927 = vsel %vm891, 1, 0
      %v928 = vsel %vm892, 1, 0
      %v929 = vsel %vm893, 1, 0
      %v930 = vsel %vm894, 1, 0
      %v931 = vsel %vm895, 1, 0
      %v932 = vsel %vm896, 1, 0
      %v933 = vsel %vm897, 1, 0
      %v934 = vsel %vm898, 1, 0
      %v935 = vsel %vm899, 1, 0
      %v936 = vsel %vm900, 1, 0
      %v937 = vsel %vm901, 1, 0
      %v938 = vsel %vm902, 1, 0
      %v939 = vsel %vm903, 1, 0
      %v940 = vsel %vm904, 1, 0
      %v941 = vsel %vm905, 1, 0
      %v942 = vsel %vm906, 1, 0
      %v943 = vsel %vm907, 1, 0
      %v944 = vsel %vm908, 1, 0
      %v945 = vsel %vm909, 1, 0
      %v946 = vsel %vm910, 1, 0
      %v947 = vsel %vm911, 1, 0
      %vm948 = vcmp.eq.s32.totalorder %v912, 1
      %vm949 = vcmp.eq.s32.totalorder %v913, 1
      %vm950 = vcmp.eq.s32.totalorder %v914, 1
      %vm951 = vcmp.eq.s32.totalorder %v915, 1
      %vm952 = vcmp.eq.s32.totalorder %v916, 1
      %vm953 = vcmp.eq.s32.totalorder %v917, 1
      %vm954 = vcmp.eq.s32.totalorder %v918, 1
      %vm955 = vcmp.eq.s32.totalorder %v919, 1
      %vm956 = vcmp.eq.s32.totalorder %v920, 1
      %vm957 = vcmp.eq.s32.totalorder %v921, 1
      %vm958 = vcmp.eq.s32.totalorder %v922, 1
      %vm959 = vcmp.eq.s32.totalorder %v923, 1
      %vm960 = vcmp.eq.s32.totalorder %v924, 1
      %vm961 = vcmp.eq.s32.totalorder %v925, 1
      %vm962 = vcmp.eq.s32.totalorder %v926, 1
      %vm963 = vcmp.eq.s32.totalorder %v927, 1
      %vm964 = vcmp.eq.s32.totalorder %v928, 1
      %vm965 = vcmp.eq.s32.totalorder %v929, 1
      %vm966 = vcmp.eq.s32.totalorder %v930, 1
      %vm967 = vcmp.eq.s32.totalorder %v931, 1
      %vm968 = vcmp.eq.s32.totalorder %v932, 1
      %vm969 = vcmp.eq.s32.totalorder %v933, 1
      %vm970 = vcmp.eq.s32.totalorder %v934, 1
      %vm971 = vcmp.eq.s32.totalorder %v935, 1
      %vm972 = vcmp.eq.s32.totalorder %v936, 1
      %vm973 = vcmp.eq.s32.totalorder %v937, 1
      %vm974 = vcmp.eq.s32.totalorder %v938, 1
      %vm975 = vcmp.eq.s32.totalorder %v939, 1
      %vm976 = vcmp.eq.s32.totalorder %v940, 1
      %vm977 = vcmp.eq.s32.totalorder %v941, 1
      %vm978 = vcmp.eq.s32.totalorder %v942, 1
      %vm979 = vcmp.eq.s32.totalorder %v943, 1
      %vm980 = vcmp.eq.s32.totalorder %v944, 1
      %vm981 = vcmp.eq.s32.totalorder %v945, 1
      %vm982 = vcmp.eq.s32.totalorder %v946, 1
      %vm983 = vcmp.eq.s32.totalorder %v947, 1
      %v984 = vsel %vm948, 0.0, %v655
      %v985 = vsel %vm949, 0.0, %v656
      %v986 = vsel %vm950, 0.0, %v657
      %v987 = vsel %vm951, 0.0, %v658
      %v988 = vsel %vm952, 0.0, %v659
      %v989 = vsel %vm953, 0.0, %v660
      %v990 = vsel %vm954, 0.0, %v661
      %v991 = vsel %vm955, 0.0, %v662
      %v992 = vsel %vm956, 0.0, %v663
      %v993 = vsel %vm957, 0.0, %v664
      %v994 = vsel %vm958, 0.0, %v665
      %v995 = vsel %vm959, 0.0, %v666
      %v996 = vsel %vm960, 0.0, %v667
      %v997 = vsel %vm961, 0.0, %v668
      %v998 = vsel %vm962, 0.0, %v669
      %v999 = vsel %vm963, 0.0, %v670
      %v1000 = vsel %vm964, 0.0, %v671
      %v1001 = vsel %vm965, 0.0, %v672
      %v1002 = vsel %vm966, 0.0, %v673
      %v1003 = vsel %vm967, 0.0, %v674
      %v1004 = vsel %vm968, 0.0, %v675
      %v1005 = vsel %vm969, 0.0, %v676
      %v1006 = vsel %vm970, 0.0, %v677
      %v1007 = vsel %vm971, 0.0, %v678
      %v1008 = vsel %vm972, 0.0, %v679
      %v1009 = vsel %vm973, 0.0, %v680
      %v1010 = vsel %vm974, 0.0, %v681
      %v1011 = vsel %vm975, 0.0, %v682
      %v1012 = vsel %vm976, 0.0, %v683
      %v1013 = vsel %vm977, 0.0, %v684
      %v1014 = vsel %vm978, 0.0, %v685
      %v1015 = vsel %vm979, 0.0, %v686
      %v1016 = vsel %vm980, 0.0, %v687
      %v1017 = vsel %vm981, 0.0, %v688
      %v1018 = vsel %vm982, 0.0, %v689
      %v1019 = vsel %vm983, 0.0, %v690
      %vm1020 = vcmp.lt.s32.totalorder %v692, 0
      %v1021 = vsub.s32 0, %v692
      %v1022 = vsel %vm1020, %v1021, %v692
      %v1023 = vshrl.u32 %v1022, 4
      %v1024 = vand.u32 %v1022, 15
      %v1025 = vsub.s32 0, %v1024
      %v1026 = vsel %vm1020, %v1025, %v1024
      %vm1027 = vcmp.lt.s32.totalorder %v693, 0
      %v1028 = vsub.s32 0, %v693
      %v1029 = vsel %vm1027, %v1028, %v693
      %v1030 = vshrl.u32 %v1029, 4
      %v1031 = vand.u32 %v1029, 15
      %v1032 = vsub.s32 0, %v1031
      %v1033 = vsel %vm1027, %v1032, %v1031
      %vm1034 = vcmp.lt.s32.totalorder %v694, 0
      %v1035 = vsub.s32 0, %v694
      %v1036 = vsel %vm1034, %v1035, %v694
      %v1037 = vshrl.u32 %v1036, 4
      %v1038 = vand.u32 %v1036, 15
      %v1039 = vsub.s32 0, %v1038
      %v1040 = vsel %vm1034, %v1039, %v1038
      %vm1041 = vcmp.lt.s32.totalorder %v695, 0
      %v1042 = vsub.s32 0, %v695
      %v1043 = vsel %vm1041, %v1042, %v695
      %v1044 = vshrl.u32 %v1043, 4
      %v1045 = vand.u32 %v1043, 15
      %v1046 = vsub.s32 0, %v1045
      %v1047 = vsel %vm1041, %v1046, %v1045
      %vm1048 = vcmp.lt.s32.totalorder %v696, 0
      %v1049 = vsub.s32 0, %v696
      %v1050 = vsel %vm1048, %v1049, %v696
      %v1051 = vshrl.u32 %v1050, 4
      %v1052 = vand.u32 %v1050, 15
      %v1053 = vsub.s32 0, %v1052
      %v1054 = vsel %vm1048, %v1053, %v1052
      %vm1055 = vcmp.lt.s32.totalorder %v697, 0
      %v1056 = vsub.s32 0, %v697
      %v1057 = vsel %vm1055, %v1056, %v697
      %v1058 = vshrl.u32 %v1057, 4
      %v1059 = vand.u32 %v1057, 15
      %v1060 = vsub.s32 0, %v1059
      %v1061 = vsel %vm1055, %v1060, %v1059
      %vm1062 = vcmp.lt.s32.totalorder %v698, 0
      %v1063 = vsub.s32 0, %v698
      %v1064 = vsel %vm1062, %v1063, %v698
      %v1065 = vshrl.u32 %v1064, 4
      %v1066 = vand.u32 %v1064, 15
      %v1067 = vsub.s32 0, %v1066
      %v1068 = vsel %vm1062, %v1067, %v1066
      %vm1069 = vcmp.lt.s32.totalorder %v699, 0
      %v1070 = vsub.s32 0, %v699
      %v1071 = vsel %vm1069, %v1070, %v699
      %v1072 = vshrl.u32 %v1071, 4
      %v1073 = vand.u32 %v1071, 15
      %v1074 = vsub.s32 0, %v1073
      %v1075 = vsel %vm1069, %v1074, %v1073
      %vm1076 = vcmp.lt.s32.totalorder %v700, 0
      %v1077 = vsub.s32 0, %v700
      %v1078 = vsel %vm1076, %v1077, %v700
      %v1079 = vshrl.u32 %v1078, 4
      %v1080 = vand.u32 %v1078, 15
      %v1081 = vsub.s32 0, %v1080
      %v1082 = vsel %vm1076, %v1081, %v1080
      %vm1083 = vcmp.lt.s32.totalorder %v701, 0
      %v1084 = vsub.s32 0, %v701
      %v1085 = vsel %vm1083, %v1084, %v701
      %v1086 = vshrl.u32 %v1085, 4
      %v1087 = vand.u32 %v1085, 15
      %v1088 = vsub.s32 0, %v1087
      %v1089 = vsel %vm1083, %v1088, %v1087
      %vm1090 = vcmp.lt.s32.totalorder %v702, 0
      %v1091 = vsub.s32 0, %v702
      %v1092 = vsel %vm1090, %v1091, %v702
      %v1093 = vshrl.u32 %v1092, 4
      %v1094 = vand.u32 %v1092, 15
      %v1095 = vsub.s32 0, %v1094
      %v1096 = vsel %vm1090, %v1095, %v1094
      %vm1097 = vcmp.lt.s32.totalorder %v703, 0
      %v1098 = vsub.s32 0, %v703
      %v1099 = vsel %vm1097, %v1098, %v703
      %v1100 = vshrl.u32 %v1099, 4
      %v1101 = vand.u32 %v1099, 15
      %v1102 = vsub.s32 0, %v1101
      %v1103 = vsel %vm1097, %v1102, %v1101
      %vm1104 = vcmp.lt.s32.totalorder %v704, 0
      %v1105 = vsub.s32 0, %v704
      %v1106 = vsel %vm1104, %v1105, %v704
      %v1107 = vshrl.u32 %v1106, 4
      %v1108 = vand.u32 %v1106, 15
      %v1109 = vsub.s32 0, %v1108
      %v1110 = vsel %vm1104, %v1109, %v1108
      %vm1111 = vcmp.lt.s32.totalorder %v705, 0
      %v1112 = vsub.s32 0, %v705
      %v1113 = vsel %vm1111, %v1112, %v705
      %v1114 = vshrl.u32 %v1113, 4
      %v1115 = vand.u32 %v1113, 15
      %v1116 = vsub.s32 0, %v1115
      %v1117 = vsel %vm1111, %v1116, %v1115
      %vm1118 = vcmp.lt.s32.totalorder %v706, 0
      %v1119 = vsub.s32 0, %v706
      %v1120 = vsel %vm1118, %v1119, %v706
      %v1121 = vshrl.u32 %v1120, 4
      %v1122 = vand.u32 %v1120, 15
      %v1123 = vsub.s32 0, %v1122
      %v1124 = vsel %vm1118, %v1123, %v1122
      %vm1125 = vcmp.lt.s32.totalorder %v707, 0
      %v1126 = vsub.s32 0, %v707
      %v1127 = vsel %vm1125, %v1126, %v707
      %v1128 = vshrl.u32 %v1127, 4
      %v1129 = vand.u32 %v1127, 15
      %v1130 = vsub.s32 0, %v1129
      %v1131 = vsel %vm1125, %v1130, %v1129
      %vm1132 = vcmp.lt.s32.totalorder %v708, 0
      %v1133 = vsub.s32 0, %v708
      %v1134 = vsel %vm1132, %v1133, %v708
      %v1135 = vshrl.u32 %v1134, 4
      %v1136 = vand.u32 %v1134, 15
      %v1137 = vsub.s32 0, %v1136
      %v1138 = vsel %vm1132, %v1137, %v1136
      %vm1139 = vcmp.lt.s32.totalorder %v709, 0
      %v1140 = vsub.s32 0, %v709
      %v1141 = vsel %vm1139, %v1140, %v709
      %v1142 = vshrl.u32 %v1141, 4
      %v1143 = vand.u32 %v1141, 15
      %v1144 = vsub.s32 0, %v1143
      %v1145 = vsel %vm1139, %v1144, %v1143
      %vm1146 = vcmp.lt.s32.totalorder %v710, 0
      %v1147 = vsub.s32 0, %v710
      %v1148 = vsel %vm1146, %v1147, %v710
      %v1149 = vshrl.u32 %v1148, 4
      %v1150 = vand.u32 %v1148, 15
      %v1151 = vsub.s32 0, %v1150
      %v1152 = vsel %vm1146, %v1151, %v1150
      %vm1153 = vcmp.lt.s32.totalorder %v711, 0
      %v1154 = vsub.s32 0, %v711
      %v1155 = vsel %vm1153, %v1154, %v711
      %v1156 = vshrl.u32 %v1155, 4
      %v1157 = vand.u32 %v1155, 15
      %v1158 = vsub.s32 0, %v1157
      %v1159 = vsel %vm1153, %v1158, %v1157
      %vm1160 = vcmp.lt.s32.totalorder %v712, 0
      %v1161 = vsub.s32 0, %v712
      %v1162 = vsel %vm1160, %v1161, %v712
      %v1163 = vshrl.u32 %v1162, 4
      %v1164 = vand.u32 %v1162, 15
      %v1165 = vsub.s32 0, %v1164
      %v1166 = vsel %vm1160, %v1165, %v1164
      %vm1167 = vcmp.lt.s32.totalorder %v713, 0
      %v1168 = vsub.s32 0, %v713
      %v1169 = vsel %vm1167, %v1168, %v713
      %v1170 = vshrl.u32 %v1169, 4
      %v1171 = vand.u32 %v1169, 15
      %v1172 = vsub.s32 0, %v1171
      %v1173 = vsel %vm1167, %v1172, %v1171
      %vm1174 = vcmp.lt.s32.totalorder %v714, 0
      %v1175 = vsub.s32 0, %v714
      %v1176 = vsel %vm1174, %v1175, %v714
      %v1177 = vshrl.u32 %v1176, 4
      %v1178 = vand.u32 %v1176, 15
      %v1179 = vsub.s32 0, %v1178
      %v1180 = vsel %vm1174, %v1179, %v1178
      %vm1181 = vcmp.lt.s32.totalorder %v715, 0
      %v1182 = vsub.s32 0, %v715
      %v1183 = vsel %vm1181, %v1182, %v715
      %v1184 = vshrl.u32 %v1183, 4
      %v1185 = vand.u32 %v1183, 15
      %v1186 = vsub.s32 0, %v1185
      %v1187 = vsel %vm1181, %v1186, %v1185
      %vm1188 = vcmp.lt.s32.totalorder %v716, 0
      %v1189 = vsub.s32 0, %v716
      %v1190 = vsel %vm1188, %v1189, %v716
      %v1191 = vshrl.u32 %v1190, 4
      %v1192 = vand.u32 %v1190, 15
      %v1193 = vsub.s32 0, %v1192
      %v1194 = vsel %vm1188, %v1193, %v1192
      %vm1195 = vcmp.lt.s32.totalorder %v717, 0
      %v1196 = vsub.s32 0, %v717
      %v1197 = vsel %vm1195, %v1196, %v717
      %v1198 = vshrl.u32 %v1197, 4
      %v1199 = vand.u32 %v1197, 15
      %v1200 = vsub.s32 0, %v1199
      %v1201 = vsel %vm1195, %v1200, %v1199
      %vm1202 = vcmp.lt.s32.totalorder %v718, 0
      %v1203 = vsub.s32 0, %v718
      %v1204 = vsel %vm1202, %v1203, %v718
      %v1205 = vshrl.u32 %v1204, 4
      %v1206 = vand.u32 %v1204, 15
      %v1207 = vsub.s32 0, %v1206
      %v1208 = vsel %vm1202, %v1207, %v1206
      %vm1209 = vcmp.lt.s32.totalorder %v719, 0
      %v1210 = vsub.s32 0, %v719
      %v1211 = vsel %vm1209, %v1210, %v719
      %v1212 = vshrl.u32 %v1211, 4
      %v1213 = vand.u32 %v1211, 15
      %v1214 = vsub.s32 0, %v1213
      %v1215 = vsel %vm1209, %v1214, %v1213
      %vm1216 = vcmp.lt.s32.totalorder %v720, 0
      %v1217 = vsub.s32 0, %v720
      %v1218 = vsel %vm1216, %v1217, %v720
      %v1219 = vshrl.u32 %v1218, 4
      %v1220 = vand.u32 %v1218, 15
      %v1221 = vsub.s32 0, %v1220
      %v1222 = vsel %vm1216, %v1221, %v1220
      %vm1223 = vcmp.lt.s32.totalorder %v721, 0
      %v1224 = vsub.s32 0, %v721
      %v1225 = vsel %vm1223, %v1224, %v721
      %v1226 = vshrl.u32 %v1225, 4
      %v1227 = vand.u32 %v1225, 15
      %v1228 = vsub.s32 0, %v1227
      %v1229 = vsel %vm1223, %v1228, %v1227
      %vm1230 = vcmp.lt.s32.totalorder %v722, 0
      %v1231 = vsub.s32 0, %v722
      %v1232 = vsel %vm1230, %v1231, %v722
      %v1233 = vshrl.u32 %v1232, 4
      %v1234 = vand.u32 %v1232, 15
      %v1235 = vsub.s32 0, %v1234
      %v1236 = vsel %vm1230, %v1235, %v1234
      %vm1237 = vcmp.lt.s32.totalorder %v723, 0
      %v1238 = vsub.s32 0, %v723
      %v1239 = vsel %vm1237, %v1238, %v723
      %v1240 = vshrl.u32 %v1239, 4
      %v1241 = vand.u32 %v1239, 15
      %v1242 = vsub.s32 0, %v1241
      %v1243 = vsel %vm1237, %v1242, %v1241
      %vm1244 = vcmp.lt.s32.totalorder %v724, 0
      %v1245 = vsub.s32 0, %v724
      %v1246 = vsel %vm1244, %v1245, %v724
      %v1247 = vshrl.u32 %v1246, 4
      %v1248 = vand.u32 %v1246, 15
      %v1249 = vsub.s32 0, %v1248
      %v1250 = vsel %vm1244, %v1249, %v1248
      %vm1251 = vcmp.lt.s32.totalorder %v725, 0
      %v1252 = vsub.s32 0, %v725
      %v1253 = vsel %vm1251, %v1252, %v725
      %v1254 = vshrl.u32 %v1253, 4
      %v1255 = vand.u32 %v1253, 15
      %v1256 = vsub.s32 0, %v1255
      %v1257 = vsel %vm1251, %v1256, %v1255
      %vm1258 = vcmp.lt.s32.totalorder %v726, 0
      %v1259 = vsub.s32 0, %v726
      %v1260 = vsel %vm1258, %v1259, %v726
      %v1261 = vshrl.u32 %v1260, 4
      %v1262 = vand.u32 %v1260, 15
      %v1263 = vsub.s32 0, %v1262
      %v1264 = vsel %vm1258, %v1263, %v1262
      %vm1265 = vcmp.lt.s32.totalorder %v727, 0
      %v1266 = vsub.s32 0, %v727
      %v1267 = vsel %vm1265, %v1266, %v727
      %v1268 = vshrl.u32 %v1267, 4
      %v1269 = vand.u32 %v1267, 15
      %v1270 = vsub.s32 0, %v1269
      %v1271 = vsel %vm1265, %v1270, %v1269
      %vm1272 = vcmp.ne.s32.totalorder %v1026, 0
      %vm1273 = vcmp.ne.s32.totalorder %v1033, 0
      %vm1274 = vcmp.ne.s32.totalorder %v1040, 0
      %vm1275 = vcmp.ne.s32.totalorder %v1047, 0
      %vm1276 = vcmp.ne.s32.totalorder %v1054, 0
      %vm1277 = vcmp.ne.s32.totalorder %v1061, 0
      %vm1278 = vcmp.ne.s32.totalorder %v1068, 0
      %vm1279 = vcmp.ne.s32.totalorder %v1075, 0
      %vm1280 = vcmp.ne.s32.totalorder %v1082, 0
      %vm1281 = vcmp.ne.s32.totalorder %v1089, 0
      %vm1282 = vcmp.ne.s32.totalorder %v1096, 0
      %vm1283 = vcmp.ne.s32.totalorder %v1103, 0
      %vm1284 = vcmp.ne.s32.totalorder %v1110, 0
      %vm1285 = vcmp.ne.s32.totalorder %v1117, 0
      %vm1286 = vcmp.ne.s32.totalorder %v1124, 0
      %vm1287 = vcmp.ne.s32.totalorder %v1131, 0
      %vm1288 = vcmp.ne.s32.totalorder %v1138, 0
      %vm1289 = vcmp.ne.s32.totalorder %v1145, 0
      %vm1290 = vcmp.ne.s32.totalorder %v1152, 0
      %vm1291 = vcmp.ne.s32.totalorder %v1159, 0
      %vm1292 = vcmp.ne.s32.totalorder %v1166, 0
      %vm1293 = vcmp.ne.s32.totalorder %v1173, 0
      %vm1294 = vcmp.ne.s32.totalorder %v1180, 0
      %vm1295 = vcmp.ne.s32.totalorder %v1187, 0
      %vm1296 = vcmp.ne.s32.totalorder %v1194, 0
      %vm1297 = vcmp.ne.s32.totalorder %v1201, 0
      %vm1298 = vcmp.ne.s32.totalorder %v1208, 0
      %vm1299 = vcmp.ne.s32.totalorder %v1215, 0
      %vm1300 = vcmp.ne.s32.totalorder %v1222, 0
      %vm1301 = vcmp.ne.s32.totalorder %v1229, 0
      %vm1302 = vcmp.ne.s32.totalorder %v1236, 0
      %vm1303 = vcmp.ne.s32.totalorder %v1243, 0
      %vm1304 = vcmp.ne.s32.totalorder %v1250, 0
      %vm1305 = vcmp.ne.s32.totalorder %v1257, 0
      %vm1306 = vcmp.ne.s32.totalorder %v1264, 0
      %vm1307 = vcmp.ne.s32.totalorder %v1271, 0
      %vm1308 = vcmp.lt.s32.totalorder %v1026, 0
      %vm1309 = vcmp.lt.s32.totalorder %v1033, 0
      %vm1310 = vcmp.lt.s32.totalorder %v1040, 0
      %vm1311 = vcmp.lt.s32.totalorder %v1047, 0
      %vm1312 = vcmp.lt.s32.totalorder %v1054, 0
      %vm1313 = vcmp.lt.s32.totalorder %v1061, 0
      %vm1314 = vcmp.lt.s32.totalorder %v1068, 0
      %vm1315 = vcmp.lt.s32.totalorder %v1075, 0
      %vm1316 = vcmp.lt.s32.totalorder %v1082, 0
      %vm1317 = vcmp.lt.s32.totalorder %v1089, 0
      %vm1318 = vcmp.lt.s32.totalorder %v1096, 0
      %vm1319 = vcmp.lt.s32.totalorder %v1103, 0
      %vm1320 = vcmp.lt.s32.totalorder %v1110, 0
      %vm1321 = vcmp.lt.s32.totalorder %v1117, 0
      %vm1322 = vcmp.lt.s32.totalorder %v1124, 0
      %vm1323 = vcmp.lt.s32.totalorder %v1131, 0
      %vm1324 = vcmp.lt.s32.totalorder %v1138, 0
      %vm1325 = vcmp.lt.s32.totalorder %v1145, 0
      %vm1326 = vcmp.lt.s32.totalorder %v1152, 0
      %vm1327 = vcmp.lt.s32.totalorder %v1159, 0
      %vm1328 = vcmp.lt.s32.totalorder %v1166, 0
      %vm1329 = vcmp.lt.s32.totalorder %v1173, 0
      %vm1330 = vcmp.lt.s32.totalorder %v1180, 0
      %vm1331 = vcmp.lt.s32.totalorder %v1187, 0
      %vm1332 = vcmp.lt.s32.totalorder %v1194, 0
      %vm1333 = vcmp.lt.s32.totalorder %v1201, 0
      %vm1334 = vcmp.lt.s32.totalorder %v1208, 0
      %vm1335 = vcmp.lt.s32.totalorder %v1215, 0
      %vm1336 = vcmp.lt.s32.totalorder %v1222, 0
      %vm1337 = vcmp.lt.s32.totalorder %v1229, 0
      %vm1338 = vcmp.lt.s32.totalorder %v1236, 0
      %vm1339 = vcmp.lt.s32.totalorder %v1243, 0
      %vm1340 = vcmp.lt.s32.totalorder %v1250, 0
      %vm1341 = vcmp.lt.s32.totalorder %v1257, 0
      %vm1342 = vcmp.lt.s32.totalorder %v1264, 0
      %vm1343 = vcmp.lt.s32.totalorder %v1271, 0
      %vm1344 = vmand %vm1308, %vm1272
      %vm1345 = vmand %vm1309, %vm1273
      %vm1346 = vmand %vm1310, %vm1274
      %vm1347 = vmand %vm1311, %vm1275
      %vm1348 = vmand %vm1312, %vm1276
      %vm1349 = vmand %vm1313, %vm1277
      %vm1350 = vmand %vm1314, %vm1278
      %vm1351 = vmand %vm1315, %vm1279
      %vm1352 = vmand %vm1316, %vm1280
      %vm1353 = vmand %vm1317, %vm1281
      %vm1354 = vmand %vm1318, %vm1282
      %vm1355 = vmand %vm1319, %vm1283
      %vm1356 = vmand %vm1320, %vm1284
      %vm1357 = vmand %vm1321, %vm1285
      %vm1358 = vmand %vm1322, %vm1286
      %vm1359 = vmand %vm1323, %vm1287
      %vm1360 = vmand %vm1324, %vm1288
      %vm1361 = vmand %vm1325, %vm1289
      %vm1362 = vmand %vm1326, %vm1290
      %vm1363 = vmand %vm1327, %vm1291
      %vm1364 = vmand %vm1328, %vm1292
      %vm1365 = vmand %vm1329, %vm1293
      %vm1366 = vmand %vm1330, %vm1294
      %vm1367 = vmand %vm1331, %vm1295
      %vm1368 = vmand %vm1332, %vm1296
      %vm1369 = vmand %vm1333, %vm1297
      %vm1370 = vmand %vm1334, %vm1298
      %vm1371 = vmand %vm1335, %vm1299
      %vm1372 = vmand %vm1336, %vm1300
      %vm1373 = vmand %vm1337, %vm1301
      %vm1374 = vmand %vm1338, %vm1302
      %vm1375 = vmand %vm1339, %vm1303
      %vm1376 = vmand %vm1340, %vm1304
      %vm1377 = vmand %vm1341, %vm1305
      %vm1378 = vmand %vm1342, %vm1306
      %vm1379 = vmand %vm1343, %vm1307
      %v1380 = vadd.s32 %v1026, 16
      %v1381 = vadd.s32 %v1033, 16
      %v1382 = vadd.s32 %v1040, 16
      %v1383 = vadd.s32 %v1047, 16
      %v1384 = vadd.s32 %v1054, 16
      %v1385 = vadd.s32 %v1061, 16
      %v1386 = vadd.s32 %v1068, 16
      %v1387 = vadd.s32 %v1075, 16
      %v1388 = vadd.s32 %v1082, 16
      %v1389 = vadd.s32 %v1089, 16
      %v1390 = vadd.s32 %v1096, 16
      %v1391 = vadd.s32 %v1103, 16
      %v1392 = vadd.s32 %v1110, 16
      %v1393 = vadd.s32 %v1117, 16
      %v1394 = vadd.s32 %v1124, 16
      %v1395 = vadd.s32 %v1131, 16
      %v1396 = vadd.s32 %v1138, 16
      %v1397 = vadd.s32 %v1145, 16
      %v1398 = vadd.s32 %v1152, 16
      %v1399 = vadd.s32 %v1159, 16
      %v1400 = vadd.s32 %v1166, 16
      %v1401 = vadd.s32 %v1173, 16
      %v1402 = vadd.s32 %v1180, 16
      %v1403 = vadd.s32 %v1187, 16
      %v1404 = vadd.s32 %v1194, 16
      %v1405 = vadd.s32 %v1201, 16
      %v1406 = vadd.s32 %v1208, 16
      %v1407 = vadd.s32 %v1215, 16
      %v1408 = vadd.s32 %v1222, 16
      %v1409 = vadd.s32 %v1229, 16
      %v1410 = vadd.s32 %v1236, 16
      %v1411 = vadd.s32 %v1243, 16
      %v1412 = vadd.s32 %v1250, 16
      %v1413 = vadd.s32 %v1257, 16
      %v1414 = vadd.s32 %v1264, 16
      %v1415 = vadd.s32 %v1271, 16
      %v1416 = vsel %vm1344, %v1380, %v1026
      %v1417 = vsel %vm1345, %v1381, %v1033
      %v1418 = vsel %vm1346, %v1382, %v1040
      %v1419 = vsel %vm1347, %v1383, %v1047
      %v1420 = vsel %vm1348, %v1384, %v1054
      %v1421 = vsel %vm1349, %v1385, %v1061
      %v1422 = vsel %vm1350, %v1386, %v1068
      %v1423 = vsel %vm1351, %v1387, %v1075
      %v1424 = vsel %vm1352, %v1388, %v1082
      %v1425 = vsel %vm1353, %v1389, %v1089
      %v1426 = vsel %vm1354, %v1390, %v1096
      %v1427 = vsel %vm1355, %v1391, %v1103
      %v1428 = vsel %vm1356, %v1392, %v1110
      %v1429 = vsel %vm1357, %v1393, %v1117
      %v1430 = vsel %vm1358, %v1394, %v1124
      %v1431 = vsel %vm1359, %v1395, %v1131
      %v1432 = vsel %vm1360, %v1396, %v1138
      %v1433 = vsel %vm1361, %v1397, %v1145
      %v1434 = vsel %vm1362, %v1398, %v1152
      %v1435 = vsel %vm1363, %v1399, %v1159
      %v1436 = vsel %vm1364, %v1400, %v1166
      %v1437 = vsel %vm1365, %v1401, %v1173
      %v1438 = vsel %vm1366, %v1402, %v1180
      %v1439 = vsel %vm1367, %v1403, %v1187
      %v1440 = vsel %vm1368, %v1404, %v1194
      %v1441 = vsel %vm1369, %v1405, %v1201
      %v1442 = vsel %vm1370, %v1406, %v1208
      %v1443 = vsel %vm1371, %v1407, %v1215
      %v1444 = vsel %vm1372, %v1408, %v1222
      %v1445 = vsel %vm1373, %v1409, %v1229
      %v1446 = vsel %vm1374, %v1410, %v1236
      %v1447 = vsel %vm1375, %v1411, %v1243
      %v1448 = vsel %vm1376, %v1412, %v1250
      %v1449 = vsel %vm1377, %v1413, %v1257
      %v1450 = vsel %vm1378, %v1414, %v1264
      %v1451 = vsel %vm1379, %v1415, %v1271
      %vm1452 = vcmp.eq.s32.totalorder %v1416, 0
      %vm1453 = vcmp.eq.s32.totalorder %v1417, 0
      %vm1454 = vcmp.eq.s32.totalorder %v1418, 0
      %vm1455 = vcmp.eq.s32.totalorder %v1419, 0
      %vm1456 = vcmp.eq.s32.totalorder %v1420, 0
      %vm1457 = vcmp.eq.s32.totalorder %v1421, 0
      %vm1458 = vcmp.eq.s32.totalorder %v1422, 0
      %vm1459 = vcmp.eq.s32.totalorder %v1423, 0
      %vm1460 = vcmp.eq.s32.totalorder %v1424, 0
      %vm1461 = vcmp.eq.s32.totalorder %v1425, 0
      %vm1462 = vcmp.eq.s32.totalorder %v1426, 0
      %vm1463 = vcmp.eq.s32.totalorder %v1427, 0
      %vm1464 = vcmp.eq.s32.totalorder %v1428, 0
      %vm1465 = vcmp.eq.s32.totalorder %v1429, 0
      %vm1466 = vcmp.eq.s32.totalorder %v1430, 0
      %vm1467 = vcmp.eq.s32.totalorder %v1431, 0
      %vm1468 = vcmp.eq.s32.totalorder %v1432, 0
      %vm1469 = vcmp.eq.s32.totalorder %v1433, 0
      %vm1470 = vcmp.eq.s32.totalorder %v1434, 0
      %vm1471 = vcmp.eq.s32.totalorder %v1435, 0
      %vm1472 = vcmp.eq.s32.totalorder %v1436, 0
      %vm1473 = vcmp.eq.s32.totalorder %v1437, 0
      %vm1474 = vcmp.eq.s32.totalorder %v1438, 0
      %vm1475 = vcmp.eq.s32.totalorder %v1439, 0
      %vm1476 = vcmp.eq.s32.totalorder %v1440, 0
      %vm1477 = vcmp.eq.s32.totalorder %v1441, 0
      %vm1478 = vcmp.eq.s32.totalorder %v1442, 0
      %vm1479 = vcmp.eq.s32.totalorder %v1443, 0
      %vm1480 = vcmp.eq.s32.totalorder %v1444, 0
      %vm1481 = vcmp.eq.s32.totalorder %v1445, 0
      %vm1482 = vcmp.eq.s32.totalorder %v1446, 0
      %vm1483 = vcmp.eq.s32.totalorder %v1447, 0
      %vm1484 = vcmp.eq.s32.totalorder %v1448, 0
      %vm1485 = vcmp.eq.s32.totalorder %v1449, 0
      %vm1486 = vcmp.eq.s32.totalorder %v1450, 0
      %vm1487 = vcmp.eq.s32.totalorder %v1451, 0
      %v1488 = vrot.slane %v984, 7
      %v1489 = vrot.slane %v985, 7
      %v1490 = vrot.slane %v986, 7
      %v1491 = vrot.slane %v987, 7
      %v1492 = vrot.slane %v988, 7
      %v1493 = vrot.slane %v989, 7
      %v1494 = vrot.slane %v990, 7
      %v1495 = vrot.slane %v991, 7
      %v1496 = vrot.slane %v992, 7
      %v1497 = vrot.slane %v993, 7
      %v1498 = vrot.slane %v994, 7
      %v1499 = vrot.slane %v995, 7
      %v1500 = vrot.slane %v996, 7
      %v1501 = vrot.slane %v997, 7
      %v1502 = vrot.slane %v998, 7
      %v1503 = vrot.slane %v999, 7
      %v1504 = vrot.slane %v1000, 7
      %v1505 = vrot.slane %v1001, 7
      %v1506 = vrot.slane %v1002, 7
      %v1507 = vrot.slane %v1003, 7
      %v1508 = vrot.slane %v1004, 7
      %v1509 = vrot.slane %v1005, 7
      %v1510 = vrot.slane %v1006, 7
      %v1511 = vrot.slane %v1007, 7
      %v1512 = vrot.slane %v1008, 7
      %v1513 = vrot.slane %v1009, 7
      %v1514 = vrot.slane %v1010, 7
      %v1515 = vrot.slane %v1011, 7
      %v1516 = vrot.slane %v1012, 7
      %v1517 = vrot.slane %v1013, 7
      %v1518 = vrot.slane %v1014, 7
      %v1519 = vrot.slane %v1015, 7
      %v1520 = vrot.slane %v1016, 7
      %v1521 = vrot.slane %v1017, 7
      %v1522 = vrot.slane %v1018, 7
      %v1523 = vrot.slane %v1019, 7
      %vm1524 = vcmp.lt.s32.totalorder %v692, 1
      %v1525 = vsel %vm1524, %v1522, %v1523
      %v1526 = vsel %vm1524, %v1521, %v1522
      %v1527 = vsel %vm1524, %v1520, %v1521
      %v1528 = vsel %vm1524, %v1519, %v1520
      %v1529 = vsel %vm1524, %v1518, %v1519
      %v1530 = vsel %vm1524, %v1517, %v1518
      %v1531 = vsel %vm1524, %v1516, %v1517
      %v1532 = vsel %vm1524, %v1515, %v1516
      %v1533 = vsel %vm1524, %v1514, %v1515
      %v1534 = vsel %vm1524, %v1513, %v1514
      %v1535 = vsel %vm1524, %v1512, %v1513
      %v1536 = vsel %vm1524, %v1511, %v1512
      %v1537 = vsel %vm1524, %v1510, %v1511
      %v1538 = vsel %vm1524, %v1509, %v1510
      %v1539 = vsel %vm1524, %v1508, %v1509
      %v1540 = vsel %vm1524, %v1507, %v1508
      %v1541 = vsel %vm1524, %v1506, %v1507
      %v1542 = vsel %vm1524, %v1505, %v1506
      %v1543 = vsel %vm1524, %v1504, %v1505
      %v1544 = vsel %vm1524, %v1503, %v1504
      %v1545 = vsel %vm1524, %v1502, %v1503
      %v1546 = vsel %vm1524, %v1501, %v1502
      %v1547 = vsel %vm1524, %v1500, %v1501
      %v1548 = vsel %vm1524, %v1499, %v1500
      %v1549 = vsel %vm1524, %v1498, %v1499
      %v1550 = vsel %vm1524, %v1497, %v1498
      %v1551 = vsel %vm1524, %v1496, %v1497
      %v1552 = vsel %vm1524, %v1495, %v1496
      %v1553 = vsel %vm1524, %v1494, %v1495
      %v1554 = vsel %vm1524, %v1493, %v1494
      %v1555 = vsel %vm1524, %v1492, %v1493
      %v1556 = vsel %vm1524, %v1491, %v1492
      %v1557 = vsel %vm1524, %v1490, %v1491
      %v1558 = vsel %vm1524, %v1489, %v1490
      %v1559 = vsel %vm1524, %v1488, %v1489
      %v1560 = vsel %vm1524, %v1523, %v1488
      %v1561 = vsel %vm1452, 1, 0
      %v1562 = vsel %vm1453, 1, 0
      %v1563 = vsel %vm1454, 1, 0
      %v1564 = vsel %vm1455, 1, 0
      %v1565 = vsel %vm1456, 1, 0
      %v1566 = vsel %vm1457, 1, 0
      %v1567 = vsel %vm1458, 1, 0
      %v1568 = vsel %vm1459, 1, 0
      %v1569 = vsel %vm1460, 1, 0
      %v1570 = vsel %vm1461, 1, 0
      %v1571 = vsel %vm1462, 1, 0
      %v1572 = vsel %vm1463, 1, 0
      %v1573 = vsel %vm1464, 1, 0
      %v1574 = vsel %vm1465, 1, 0
      %v1575 = vsel %vm1466, 1, 0
      %v1576 = vsel %vm1467, 1, 0
      %v1577 = vsel %vm1468, 1, 0
      %v1578 = vsel %vm1469, 1, 0
      %v1579 = vsel %vm1470, 1, 0
      %v1580 = vsel %vm1471, 1, 0
      %v1581 = vsel %vm1472, 1, 0
      %v1582 = vsel %vm1473, 1, 0
      %v1583 = vsel %vm1474, 1, 0
      %v1584 = vsel %vm1475, 1, 0
      %v1585 = vsel %vm1476, 1, 0
      %v1586 = vsel %vm1477, 1, 0
      %v1587 = vsel %vm1478, 1, 0
      %v1588 = vsel %vm1479, 1, 0
      %v1589 = vsel %vm1480, 1, 0
      %v1590 = vsel %vm1481, 1, 0
      %v1591 = vsel %vm1482, 1, 0
      %v1592 = vsel %vm1483, 1, 0
      %v1593 = vsel %vm1484, 1, 0
      %v1594 = vsel %vm1485, 1, 0
      %v1595 = vsel %vm1486, 1, 0
      %v1596 = vsel %vm1487, 1, 0
      %vm1597 = vcmp.eq.s32.totalorder %v1561, 1
      %vm1598 = vcmp.eq.s32.totalorder %v1562, 1
      %vm1599 = vcmp.eq.s32.totalorder %v1563, 1
      %vm1600 = vcmp.eq.s32.totalorder %v1564, 1
      %vm1601 = vcmp.eq.s32.totalorder %v1565, 1
      %vm1602 = vcmp.eq.s32.totalorder %v1566, 1
      %vm1603 = vcmp.eq.s32.totalorder %v1567, 1
      %vm1604 = vcmp.eq.s32.totalorder %v1568, 1
      %vm1605 = vcmp.eq.s32.totalorder %v1569, 1
      %vm1606 = vcmp.eq.s32.totalorder %v1570, 1
      %vm1607 = vcmp.eq.s32.totalorder %v1571, 1
      %vm1608 = vcmp.eq.s32.totalorder %v1572, 1
      %vm1609 = vcmp.eq.s32.totalorder %v1573, 1
      %vm1610 = vcmp.eq.s32.totalorder %v1574, 1
      %vm1611 = vcmp.eq.s32.totalorder %v1575, 1
      %vm1612 = vcmp.eq.s32.totalorder %v1576, 1
      %vm1613 = vcmp.eq.s32.totalorder %v1577, 1
      %vm1614 = vcmp.eq.s32.totalorder %v1578, 1
      %vm1615 = vcmp.eq.s32.totalorder %v1579, 1
      %vm1616 = vcmp.eq.s32.totalorder %v1580, 1
      %vm1617 = vcmp.eq.s32.totalorder %v1581, 1
      %vm1618 = vcmp.eq.s32.totalorder %v1582, 1
      %vm1619 = vcmp.eq.s32.totalorder %v1583, 1
      %vm1620 = vcmp.eq.s32.totalorder %v1584, 1
      %vm1621 = vcmp.eq.s32.totalorder %v1585, 1
      %vm1622 = vcmp.eq.s32.totalorder %v1586, 1
      %vm1623 = vcmp.eq.s32.totalorder %v1587, 1
      %vm1624 = vcmp.eq.s32.totalorder %v1588, 1
      %vm1625 = vcmp.eq.s32.totalorder %v1589, 1
      %vm1626 = vcmp.eq.s32.totalorder %v1590, 1
      %vm1627 = vcmp.eq.s32.totalorder %v1591, 1
      %vm1628 = vcmp.eq.s32.totalorder %v1592, 1
      %vm1629 = vcmp.eq.s32.totalorder %v1593, 1
      %vm1630 = vcmp.eq.s32.totalorder %v1594, 1
      %vm1631 = vcmp.eq.s32.totalorder %v1595, 1
      %vm1632 = vcmp.eq.s32.totalorder %v1596, 1
      %v1633 = vsel %vm1597, 0.0, %v1560
      %v1634 = vsel %vm1598, 0.0, %v1559
      %v1635 = vsel %vm1599, 0.0, %v1558
      %v1636 = vsel %vm1600, 0.0, %v1557
      %v1637 = vsel %vm1601, 0.0, %v1556
      %v1638 = vsel %vm1602, 0.0, %v1555
      %v1639 = vsel %vm1603, 0.0, %v1554
      %v1640 = vsel %vm1604, 0.0, %v1553
      %v1641 = vsel %vm1605, 0.0, %v1552
      %v1642 = vsel %vm1606, 0.0, %v1551
      %v1643 = vsel %vm1607, 0.0, %v1550
      %v1644 = vsel %vm1608, 0.0, %v1549
      %v1645 = vsel %vm1609, 0.0, %v1548
      %v1646 = vsel %vm1610, 0.0, %v1547
      %v1647 = vsel %vm1611, 0.0, %v1546
      %v1648 = vsel %vm1612, 0.0, %v1545
      %v1649 = vsel %vm1613, 0.0, %v1544
      %v1650 = vsel %vm1614, 0.0, %v1543
      %v1651 = vsel %vm1615, 0.0, %v1542
      %v1652 = vsel %vm1616, 0.0, %v1541
      %v1653 = vsel %vm1617, 0.0, %v1540
      %v1654 = vsel %vm1618, 0.0, %v1539
      %v1655 = vsel %vm1619, 0.0, %v1538
      %v1656 = vsel %vm1620, 0.0, %v1537
      %v1657 = vsel %vm1621, 0.0, %v1536
      %v1658 = vsel %vm1622, 0.0, %v1535
      %v1659 = vsel %vm1623, 0.0, %v1534
      %v1660 = vsel %vm1624, 0.0, %v1533
      %v1661 = vsel %vm1625, 0.0, %v1532
      %v1662 = vsel %vm1626, 0.0, %v1531
      %v1663 = vsel %vm1627, 0.0, %v1530
      %v1664 = vsel %vm1628, 0.0, %v1529
      %v1665 = vsel %vm1629, 0.0, %v1528
      %v1666 = vsel %vm1630, 0.0, %v1527
      %v1667 = vsel %vm1631, 0.0, %v1526
      %v1668 = vsel %vm1632, 0.0, %v1525
      %vm1669 = vcmp.eq.s32.totalorder %v1416, 15
      %vm1670 = vcmp.eq.s32.totalorder %v1417, 15
      %vm1671 = vcmp.eq.s32.totalorder %v1418, 15
      %vm1672 = vcmp.eq.s32.totalorder %v1419, 15
      %vm1673 = vcmp.eq.s32.totalorder %v1420, 15
      %vm1674 = vcmp.eq.s32.totalorder %v1421, 15
      %vm1675 = vcmp.eq.s32.totalorder %v1422, 15
      %vm1676 = vcmp.eq.s32.totalorder %v1423, 15
      %vm1677 = vcmp.eq.s32.totalorder %v1424, 15
      %vm1678 = vcmp.eq.s32.totalorder %v1425, 15
      %vm1679 = vcmp.eq.s32.totalorder %v1426, 15
      %vm1680 = vcmp.eq.s32.totalorder %v1427, 15
      %vm1681 = vcmp.eq.s32.totalorder %v1428, 15
      %vm1682 = vcmp.eq.s32.totalorder %v1429, 15
      %vm1683 = vcmp.eq.s32.totalorder %v1430, 15
      %vm1684 = vcmp.eq.s32.totalorder %v1431, 15
      %vm1685 = vcmp.eq.s32.totalorder %v1432, 15
      %vm1686 = vcmp.eq.s32.totalorder %v1433, 15
      %vm1687 = vcmp.eq.s32.totalorder %v1434, 15
      %vm1688 = vcmp.eq.s32.totalorder %v1435, 15
      %vm1689 = vcmp.eq.s32.totalorder %v1436, 15
      %vm1690 = vcmp.eq.s32.totalorder %v1437, 15
      %vm1691 = vcmp.eq.s32.totalorder %v1438, 15
      %vm1692 = vcmp.eq.s32.totalorder %v1439, 15
      %vm1693 = vcmp.eq.s32.totalorder %v1440, 15
      %vm1694 = vcmp.eq.s32.totalorder %v1441, 15
      %vm1695 = vcmp.eq.s32.totalorder %v1442, 15
      %vm1696 = vcmp.eq.s32.totalorder %v1443, 15
      %vm1697 = vcmp.eq.s32.totalorder %v1444, 15
      %vm1698 = vcmp.eq.s32.totalorder %v1445, 15
      %vm1699 = vcmp.eq.s32.totalorder %v1446, 15
      %vm1700 = vcmp.eq.s32.totalorder %v1447, 15
      %vm1701 = vcmp.eq.s32.totalorder %v1448, 15
      %vm1702 = vcmp.eq.s32.totalorder %v1449, 15
      %vm1703 = vcmp.eq.s32.totalorder %v1450, 15
      %vm1704 = vcmp.eq.s32.totalorder %v1451, 15
      %v1705 = vrot.slane %v984, 1
      %v1706 = vrot.slane %v985, 1
      %v1707 = vrot.slane %v986, 1
      %v1708 = vrot.slane %v987, 1
      %v1709 = vrot.slane %v988, 1
      %v1710 = vrot.slane %v989, 1
      %v1711 = vrot.slane %v990, 1
      %v1712 = vrot.slane %v991, 1
      %v1713 = vrot.slane %v992, 1
      %v1714 = vrot.slane %v993, 1
      %v1715 = vrot.slane %v994, 1
      %v1716 = vrot.slane %v995, 1
      %v1717 = vrot.slane %v996, 1
      %v1718 = vrot.slane %v997, 1
      %v1719 = vrot.slane %v998, 1
      %v1720 = vrot.slane %v999, 1
      %v1721 = vrot.slane %v1000, 1
      %v1722 = vrot.slane %v1001, 1
      %v1723 = vrot.slane %v1002, 1
      %v1724 = vrot.slane %v1003, 1
      %v1725 = vrot.slane %v1004, 1
      %v1726 = vrot.slane %v1005, 1
      %v1727 = vrot.slane %v1006, 1
      %v1728 = vrot.slane %v1007, 1
      %v1729 = vrot.slane %v1008, 1
      %v1730 = vrot.slane %v1009, 1
      %v1731 = vrot.slane %v1010, 1
      %v1732 = vrot.slane %v1011, 1
      %v1733 = vrot.slane %v1012, 1
      %v1734 = vrot.slane %v1013, 1
      %v1735 = vrot.slane %v1014, 1
      %v1736 = vrot.slane %v1015, 1
      %v1737 = vrot.slane %v1016, 1
      %v1738 = vrot.slane %v1017, 1
      %v1739 = vrot.slane %v1018, 1
      %v1740 = vrot.slane %v1019, 1
      %vm1741 = vcmp.lt.s32.totalorder %v692, 7
      %v1742 = vsel %vm1741, %v1739, %v1740
      %v1743 = vsel %vm1741, %v1738, %v1739
      %v1744 = vsel %vm1741, %v1737, %v1738
      %v1745 = vsel %vm1741, %v1736, %v1737
      %v1746 = vsel %vm1741, %v1735, %v1736
      %v1747 = vsel %vm1741, %v1734, %v1735
      %v1748 = vsel %vm1741, %v1733, %v1734
      %v1749 = vsel %vm1741, %v1732, %v1733
      %v1750 = vsel %vm1741, %v1731, %v1732
      %v1751 = vsel %vm1741, %v1730, %v1731
      %v1752 = vsel %vm1741, %v1729, %v1730
      %v1753 = vsel %vm1741, %v1728, %v1729
      %v1754 = vsel %vm1741, %v1727, %v1728
      %v1755 = vsel %vm1741, %v1726, %v1727
      %v1756 = vsel %vm1741, %v1725, %v1726
      %v1757 = vsel %vm1741, %v1724, %v1725
      %v1758 = vsel %vm1741, %v1723, %v1724
      %v1759 = vsel %vm1741, %v1722, %v1723
      %v1760 = vsel %vm1741, %v1721, %v1722
      %v1761 = vsel %vm1741, %v1720, %v1721
      %v1762 = vsel %vm1741, %v1719, %v1720
      %v1763 = vsel %vm1741, %v1718, %v1719
      %v1764 = vsel %vm1741, %v1717, %v1718
      %v1765 = vsel %vm1741, %v1716, %v1717
      %v1766 = vsel %vm1741, %v1715, %v1716
      %v1767 = vsel %vm1741, %v1714, %v1715
      %v1768 = vsel %vm1741, %v1713, %v1714
      %v1769 = vsel %vm1741, %v1712, %v1713
      %v1770 = vsel %vm1741, %v1711, %v1712
      %v1771 = vsel %vm1741, %v1710, %v1711
      %v1772 = vsel %vm1741, %v1709, %v1710
      %v1773 = vsel %vm1741, %v1708, %v1709
      %v1774 = vsel %vm1741, %v1707, %v1708
      %v1775 = vsel %vm1741, %v1706, %v1707
      %v1776 = vsel %vm1741, %v1705, %v1706
      %v1777 = vsel %vm1741, %v1740, %v1705
      %v1778 = vsel %vm1669, 1, 0
      %v1779 = vsel %vm1670, 1, 0
      %v1780 = vsel %vm1671, 1, 0
      %v1781 = vsel %vm1672, 1, 0
      %v1782 = vsel %vm1673, 1, 0
      %v1783 = vsel %vm1674, 1, 0
      %v1784 = vsel %vm1675, 1, 0
      %v1785 = vsel %vm1676, 1, 0
      %v1786 = vsel %vm1677, 1, 0
      %v1787 = vsel %vm1678, 1, 0
      %v1788 = vsel %vm1679, 1, 0
      %v1789 = vsel %vm1680, 1, 0
      %v1790 = vsel %vm1681, 1, 0
      %v1791 = vsel %vm1682, 1, 0
      %v1792 = vsel %vm1683, 1, 0
      %v1793 = vsel %vm1684, 1, 0
      %v1794 = vsel %vm1685, 1, 0
      %v1795 = vsel %vm1686, 1, 0
      %v1796 = vsel %vm1687, 1, 0
      %v1797 = vsel %vm1688, 1, 0
      %v1798 = vsel %vm1689, 1, 0
      %v1799 = vsel %vm1690, 1, 0
      %v1800 = vsel %vm1691, 1, 0
      %v1801 = vsel %vm1692, 1, 0
      %v1802 = vsel %vm1693, 1, 0
      %v1803 = vsel %vm1694, 1, 0
      %v1804 = vsel %vm1695, 1, 0
      %v1805 = vsel %vm1696, 1, 0
      %v1806 = vsel %vm1697, 1, 0
      %v1807 = vsel %vm1698, 1, 0
      %v1808 = vsel %vm1699, 1, 0
      %v1809 = vsel %vm1700, 1, 0
      %v1810 = vsel %vm1701, 1, 0
      %v1811 = vsel %vm1702, 1, 0
      %v1812 = vsel %vm1703, 1, 0
      %v1813 = vsel %vm1704, 1, 0
      %vm1814 = vcmp.eq.s32.totalorder %v1778, 1
      %vm1815 = vcmp.eq.s32.totalorder %v1779, 1
      %vm1816 = vcmp.eq.s32.totalorder %v1780, 1
      %vm1817 = vcmp.eq.s32.totalorder %v1781, 1
      %vm1818 = vcmp.eq.s32.totalorder %v1782, 1
      %vm1819 = vcmp.eq.s32.totalorder %v1783, 1
      %vm1820 = vcmp.eq.s32.totalorder %v1784, 1
      %vm1821 = vcmp.eq.s32.totalorder %v1785, 1
      %vm1822 = vcmp.eq.s32.totalorder %v1786, 1
      %vm1823 = vcmp.eq.s32.totalorder %v1787, 1
      %vm1824 = vcmp.eq.s32.totalorder %v1788, 1
      %vm1825 = vcmp.eq.s32.totalorder %v1789, 1
      %vm1826 = vcmp.eq.s32.totalorder %v1790, 1
      %vm1827 = vcmp.eq.s32.totalorder %v1791, 1
      %vm1828 = vcmp.eq.s32.totalorder %v1792, 1
      %vm1829 = vcmp.eq.s32.totalorder %v1793, 1
      %vm1830 = vcmp.eq.s32.totalorder %v1794, 1
      %vm1831 = vcmp.eq.s32.totalorder %v1795, 1
      %vm1832 = vcmp.eq.s32.totalorder %v1796, 1
      %vm1833 = vcmp.eq.s32.totalorder %v1797, 1
      %vm1834 = vcmp.eq.s32.totalorder %v1798, 1
      %vm1835 = vcmp.eq.s32.totalorder %v1799, 1
      %vm1836 = vcmp.eq.s32.totalorder %v1800, 1
      %vm1837 = vcmp.eq.s32.totalorder %v1801, 1
      %vm1838 = vcmp.eq.s32.totalorder %v1802, 1
      %vm1839 = vcmp.eq.s32.totalorder %v1803, 1
      %vm1840 = vcmp.eq.s32.totalorder %v1804, 1
      %vm1841 = vcmp.eq.s32.totalorder %v1805, 1
      %vm1842 = vcmp.eq.s32.totalorder %v1806, 1
      %vm1843 = vcmp.eq.s32.totalorder %v1807, 1
      %vm1844 = vcmp.eq.s32.totalorder %v1808, 1
      %vm1845 = vcmp.eq.s32.totalorder %v1809, 1
      %vm1846 = vcmp.eq.s32.totalorder %v1810, 1
      %vm1847 = vcmp.eq.s32.totalorder %v1811, 1
      %vm1848 = vcmp.eq.s32.totalorder %v1812, 1
      %vm1849 = vcmp.eq.s32.totalorder %v1813, 1
      %v1850 = vsel %vm1814, 0.0, %v1776
      %v1851 = vsel %vm1815, 0.0, %v1775
      %v1852 = vsel %vm1816, 0.0, %v1774
      %v1853 = vsel %vm1817, 0.0, %v1773
      %v1854 = vsel %vm1818, 0.0, %v1772
      %v1855 = vsel %vm1819, 0.0, %v1771
      %v1856 = vsel %vm1820, 0.0, %v1770
      %v1857 = vsel %vm1821, 0.0, %v1769
      %v1858 = vsel %vm1822, 0.0, %v1768
      %v1859 = vsel %vm1823, 0.0, %v1767
      %v1860 = vsel %vm1824, 0.0, %v1766
      %v1861 = vsel %vm1825, 0.0, %v1765
      %v1862 = vsel %vm1826, 0.0, %v1764
      %v1863 = vsel %vm1827, 0.0, %v1763
      %v1864 = vsel %vm1828, 0.0, %v1762
      %v1865 = vsel %vm1829, 0.0, %v1761
      %v1866 = vsel %vm1830, 0.0, %v1760
      %v1867 = vsel %vm1831, 0.0, %v1759
      %v1868 = vsel %vm1832, 0.0, %v1758
      %v1869 = vsel %vm1833, 0.0, %v1757
      %v1870 = vsel %vm1834, 0.0, %v1756
      %v1871 = vsel %vm1835, 0.0, %v1755
      %v1872 = vsel %vm1836, 0.0, %v1754
      %v1873 = vsel %vm1837, 0.0, %v1753
      %v1874 = vsel %vm1838, 0.0, %v1752
      %v1875 = vsel %vm1839, 0.0, %v1751
      %v1876 = vsel %vm1840, 0.0, %v1750
      %v1877 = vsel %vm1841, 0.0, %v1749
      %v1878 = vsel %vm1842, 0.0, %v1748
      %v1879 = vsel %vm1843, 0.0, %v1747
      %v1880 = vsel %vm1844, 0.0, %v1746
      %v1881 = vsel %vm1845, 0.0, %v1745
      %v1882 = vsel %vm1846, 0.0, %v1744
      %v1883 = vsel %vm1847, 0.0, %v1743
      %v1884 = vsel %vm1848, 0.0, %v1742
      %v1885 = vsel %vm1849, 0.0, %v1777
      %v1886 = vpack.c.bf16 %v1634, %v1633
      %v1887 = vpack.c.bf16 %v1636, %v1635
      %v1888 = vpack.c.bf16 %v1638, %v1637
      %v1889 = vpack.c.bf16 %v1640, %v1639
      %v1890 = vpack.c.bf16 %v1642, %v1641
      %v1891 = vpack.c.bf16 %v1644, %v1643
      %v1892 = vpack.c.bf16 %v1646, %v1645
      %v1893 = vpack.c.bf16 %v1648, %v1647
      %v1894 = vpack.c.bf16 %v1650, %v1649
      %v1895 = vpack.c.bf16 %v1652, %v1651
      %v1896 = vpack.c.bf16 %v1654, %v1653
      %v1897 = vpack.c.bf16 %v1656, %v1655
      %v1898 = vpack.c.bf16 %v1658, %v1657
      %v1899 = vpack.c.bf16 %v1660, %v1659
      %v1900 = vpack.c.bf16 %v1662, %v1661
      %v1901 = vpack.c.bf16 %v1664, %v1663
      %v1902 = vpack.c.bf16 %v1666, %v1665
      %v1903 = vpack.c.bf16 %v1668, %v1667
      %v1904 = vpack.c.bf16 %v985, %v984
      %v1905 = vpack.c.bf16 %v987, %v986
      %v1906 = vpack.c.bf16 %v989, %v988
      %v1907 = vpack.c.bf16 %v991, %v990
      %v1908 = vpack.c.bf16 %v993, %v992
      %v1909 = vpack.c.bf16 %v995, %v994
      %v1910 = vpack.c.bf16 %v997, %v996
      %v1911 = vpack.c.bf16 %v999, %v998
      %v1912 = vpack.c.bf16 %v1001, %v1000
      %v1913 = vpack.c.bf16 %v1003, %v1002
      %v1914 = vpack.c.bf16 %v1005, %v1004
      %v1915 = vpack.c.bf16 %v1007, %v1006
      %v1916 = vpack.c.bf16 %v1009, %v1008
      %v1917 = vpack.c.bf16 %v1011, %v1010
      %v1918 = vpack.c.bf16 %v1013, %v1012
      %v1919 = vpack.c.bf16 %v1015, %v1014
      %v1920 = vpack.c.bf16 %v1017, %v1016
      %v1921 = vpack.c.bf16 %v1019, %v1018
      %v1922 = vpack.c.bf16 %v1851, %v1850
      %v1923 = vpack.c.bf16 %v1853, %v1852
      %v1924 = vpack.c.bf16 %v1855, %v1854
      %v1925 = vpack.c.bf16 %v1857, %v1856
      %v1926 = vpack.c.bf16 %v1859, %v1858
      %v1927 = vpack.c.bf16 %v1861, %v1860
      %v1928 = vpack.c.bf16 %v1863, %v1862
      %v1929 = vpack.c.bf16 %v1865, %v1864
      %v1930 = vpack.c.bf16 %v1867, %v1866
      %v1931 = vpack.c.bf16 %v1869, %v1868
      %v1932 = vpack.c.bf16 %v1871, %v1870
      %v1933 = vpack.c.bf16 %v1873, %v1872
      %v1934 = vpack.c.bf16 %v1875, %v1874
      %v1935 = vpack.c.bf16 %v1877, %v1876
      %v1936 = vpack.c.bf16 %v1879, %v1878
      %v1937 = vpack.c.bf16 %v1881, %v1880
      %v1938 = vpack.c.bf16 %v1883, %v1882
      %v1939 = vpack.c.bf16 %v1885, %v1884
      %v1940 = vld [vmem:[%s3] sm:$0xf]
      %v1941 = vld [vmem:[%s3 + $0x4] sm:$0xf]
      %v1942 = vld [vmem:[%s3 + $0x8] sm:$0xf]
      %v1943 = vld [vmem:[%s3 + $0xc] sm:$0xf]
      %v1944 = vld [vmem:[%s3 + $0x10] sm:$0xf]
      %v1945 = vld [vmem:[%s3 + $0x14] sm:$0xf]
      %v1946 = vld [vmem:[%s3 + $0x18] sm:$0xf]
      %v1947 = vld [vmem:[%s3 + $0x1c] sm:$0xf]
      %v1948 = vld [vmem:[%s3 + $0x20] sm:$0xf]
      %v1949 = vld [vmem:[%s3 + $0x24] sm:$0xf]
      %v1950 = vld [vmem:[%s3 + $0x28] sm:$0xf]
      %v1951 = vld [vmem:[%s3 + $0x2c] sm:$0xf]
      %v1952 = vld [vmem:[%s3 + $0x30] sm:$0xf]
      %v1953 = vld [vmem:[%s3 + $0x34] sm:$0xf]
      %v1954 = vld [vmem:[%s3 + $0x38] sm:$0xf]
      %v1955 = vld [vmem:[%s3 + $0x3c] sm:$0xf]
      %s1956 = scalar_lea.vmem %s3, 64
      %v1957 = vld [vmem:[%s1956] sm:$0xf]
      %v1958 = vld [vmem:[%s1956 + $0x4] sm:$0xf]
      %v1959 = vld [vmem:[%s1956 + $0x8] sm:$0xf]
      %v1960 = vld [vmem:[%s1956 + $0xc] sm:$0xf]
      %v1961 = vld [vmem:[%s1956 + $0x10] sm:$0xf]
      %v1962 = vld [vmem:[%s1956 + $0x14] sm:$0xf]
      %v1963 = vld [vmem:[%s1956 + $0x18] sm:$0xf]
      %v1964 = vld [vmem:[%s1956 + $0x1c] sm:$0xf]
      %v1965 = vld [vmem:[%s1956 + $0x20] sm:$0xf]
      %v1966 = vld [vmem:[%s1956 + $0x24] sm:$0xf]
      %v1967 = vld [vmem:[%s1956 + $0x28] sm:$0xf]
      %v1968 = vld [vmem:[%s1956 + $0x2c] sm:$0xf]
      %v1969 = vld [vmem:[%s1956 + $0x30] sm:$0xf]
      %v1970 = vld [vmem:[%s1956 + $0x34] sm:$0xf]
      %v1971 = vld [vmem:[%s1956 + $0x38] sm:$0xf]
      %v1972 = vld [vmem:[%s1956 + $0x3c] sm:$0xf]
      %v1989 = vunpack.c.l.b16 %v1957
      %v1990 = vunpack.c.l.b16 %v1958
      %v1991 = vunpack.c.l.b16 %v1959
      %v1992 = vunpack.c.l.b16 %v1960
      %v1993 = vunpack.c.l.b16 %v1961
      %v1994 = vunpack.c.l.b16 %v1962
      %v1995 = vunpack.c.l.b16 %v1963
      %v1996 = vunpack.c.l.b16 %v1964
      %v1997 = vunpack.c.l.b16 %v1965
      %v1998 = vunpack.c.l.b16 %v1966
      %v1999 = vunpack.c.l.b16 %v1967
      %v2000 = vunpack.c.l.b16 %v1968
      %v2001 = vunpack.c.l.b16 %v1969
      %v2002 = vunpack.c.l.b16 %v1970
      %v2003 = vunpack.c.l.b16 %v1971
      %v2004 = vunpack.c.l.b16 %v1972
      %v2005 = vpack.c.b16 %v1990, %v1989
      %v2006 = vpack.c.b16 %v1992, %v1991
      %v2007 = vpack.c.b16 %v1994, %v1993
      %v2008 = vpack.c.b16 %v1996, %v1995
      %v2009 = vpack.c.b16 %v1998, %v1997
      %v2010 = vpack.c.b16 %v2000, %v1999
      %v2011 = vpack.c.b16 %v2002, %v2001
      %v2012 = vpack.c.b16 %v2004, %v2003
      %2021 = vmatprep.subr.bf16.mxu0 0
      %2022 = vmatpush1.bf16.msra.mxu0 %v2012
      %2023 = vmatprep.subr.bf16.mxu0 0
      %2024 = vmatpush1.bf16.msra.mxu0 %v2011
      %2025 = vmatprep.subr.bf16.mxu0 0
      %2026 = vmatpush1.bf16.msra.mxu0 %v2010
      %2027 = vmatprep.subr.bf16.mxu0 0
      %2028 = vmatpush1.bf16.msra.mxu0 %v2009
      %2029 = vmatprep.subr.bf16.mxu0 0
      %2030 = vmatpush1.bf16.msra.mxu0 %v2008
      %2031 = vmatprep.subr.bf16.mxu0 0
      %2032 = vmatpush1.bf16.msra.mxu0 %v2007
      %2033 = vmatprep.subr.bf16.mxu0 0
      %2034 = vmatpush1.bf16.msra.mxu0 %v2006
      %2035 = vmatprep.subr.bf16.mxu0 0
      %2036 = vmatpush1.bf16.msra.mxu0 %v2005
      %2037 = vmatprep.subr.bf16.mxu0 0
      %2038 = vmatpush2.bf16.msra.mxu0 0
      %2039 = vmatprep.subr.bf16.mxu0 0
      %2040 = vmatpush2.bf16.msra.mxu0 0
      %2041 = vmatprep.subr.bf16.mxu0 0
      %2042 = vmatpush2.bf16.msra.mxu0 0
      %2043 = vmatprep.subr.bf16.mxu0 0
      %2044 = vmatpush2.bf16.msra.mxu0 0
      %2045 = vmatprep.subr.bf16.mxu0 0
      %2046 = vmatpush2.bf16.msra.mxu0 0
      %2047 = vmatprep.subr.bf16.mxu0 0
      %2048 = vmatpush2.bf16.msra.mxu0 0
      %2049 = vmatprep.subr.bf16.mxu0 0
      %2050 = vmatpush2.bf16.msra.mxu0 0
      %2051 = vmatprep.subr.bf16.mxu0 0
      %2052 = vmatpush2.bf16.msra.mxu0 0
      %2053 = vmatprep.mubr.bf16.mxu0 0
      %2054 = vmatmul.mubr.bf16.gmra.mxu0 %v1904
      %v2055 = vpop.f32.mrf.mxu0
      %v2056 = vadd.f32 0.0, %v2055
      %v2057 = vpop.f32.mrf.mxu0
      %v2058 = vpop.f32.mrf.mxu0
      %v2059 = vadd.f32 0.0, %v2058
      %v2060 = vpop.f32.mrf.mxu0
      %2061 = vmatprep.mubr.bf16.mxu0 0
      %2062 = vmatmul.mubr.bf16.gmra.mxu0 %v1905
      %v2063 = vpop.f32.mrf.mxu0
      %v2064 = vadd.f32 0.0, %v2063
      %v2065 = vpop.f32.mrf.mxu0
      %v2066 = vpop.f32.mrf.mxu0
      %v2067 = vadd.f32 0.0, %v2066
      %v2068 = vpop.f32.mrf.mxu0
      %2069 = vmatprep.mubr.bf16.mxu0 0
      %2070 = vmatmul.mubr.bf16.gmra.mxu0 %v1906
      %v2071 = vpop.f32.mrf.mxu0
      %v2072 = vadd.f32 0.0, %v2071
      %v2073 = vpop.f32.mrf.mxu0
      %v2074 = vpop.f32.mrf.mxu0
      %v2075 = vadd.f32 0.0, %v2074
      %v2076 = vpop.f32.mrf.mxu0
      %2077 = vmatprep.mubr.bf16.mxu0 0
      %2078 = vmatmul.mubr.bf16.gmra.mxu0 %v1907
      %v2079 = vpop.f32.mrf.mxu0
      %v2080 = vadd.f32 0.0, %v2079
      %v2081 = vpop.f32.mrf.mxu0
      %v2082 = vpop.f32.mrf.mxu0
      %v2083 = vadd.f32 0.0, %v2082
      %v2084 = vpop.f32.mrf.mxu0
      %2085 = vmatprep.mubr.bf16.mxu0 0
      %2086 = vmatmul.mubr.bf16.gmra.mxu0 %v1908
      %v2087 = vpop.f32.mrf.mxu0
      %v2088 = vadd.f32 0.0, %v2087
      %v2089 = vpop.f32.mrf.mxu0
      %v2090 = vpop.f32.mrf.mxu0
      %v2091 = vadd.f32 0.0, %v2090
      %v2092 = vpop.f32.mrf.mxu0
      %2093 = vmatprep.mubr.bf16.mxu0 0
      %2094 = vmatmul.mubr.bf16.gmra.mxu0 %v1909
      %v2095 = vpop.f32.mrf.mxu0
      %v2096 = vadd.f32 0.0, %v2095
      %v2097 = vpop.f32.mrf.mxu0
      %v2098 = vpop.f32.mrf.mxu0
      %v2099 = vadd.f32 0.0, %v2098
      %v2100 = vpop.f32.mrf.mxu0
      %2101 = vmatprep.mubr.bf16.mxu0 0
      %2102 = vmatmul.mubr.bf16.gmra.mxu0 %v1910
      %v2103 = vpop.f32.mrf.mxu0
      %v2104 = vadd.f32 0.0, %v2103
      %v2105 = vpop.f32.mrf.mxu0
      %v2106 = vpop.f32.mrf.mxu0
      %v2107 = vadd.f32 0.0, %v2106
      %v2108 = vpop.f32.mrf.mxu0
      %2109 = vmatprep.mubr.bf16.mxu0 0
      %2110 = vmatmul.mubr.bf16.gmra.mxu0 %v1911
      %v2111 = vpop.f32.mrf.mxu0
      %v2112 = vadd.f32 0.0, %v2111
      %v2113 = vpop.f32.mrf.mxu0
      %v2114 = vpop.f32.mrf.mxu0
      %v2115 = vadd.f32 0.0, %v2114
      %v2116 = vpop.f32.mrf.mxu0
      %2117 = vmatprep.mubr.bf16.mxu0 0
      %2118 = vmatmul.mubr.bf16.gmra.mxu0 %v1912
      %v2119 = vpop.f32.mrf.mxu0
      %v2120 = vadd.f32 0.0, %v2119
      %v2121 = vpop.f32.mrf.mxu0
      %v2122 = vpop.f32.mrf.mxu0
      %v2123 = vadd.f32 0.0, %v2122
      %v2124 = vpop.f32.mrf.mxu0
      %2125 = vmatprep.mubr.bf16.mxu0 0
      %2126 = vmatmul.mubr.bf16.gmra.mxu0 %v1913
      %v2127 = vpop.f32.mrf.mxu0
      %v2128 = vadd.f32 0.0, %v2127
      %v2129 = vpop.f32.mrf.mxu0
      %v2130 = vpop.f32.mrf.mxu0
      %v2131 = vadd.f32 0.0, %v2130
      %v2132 = vpop.f32.mrf.mxu0
      %2133 = vmatprep.mubr.bf16.mxu0 0
      %2134 = vmatmul.mubr.bf16.gmra.mxu0 %v1914
      %v2135 = vpop.f32.mrf.mxu0
      %v2136 = vadd.f32 0.0, %v2135
      %v2137 = vpop.f32.mrf.mxu0
      %v2138 = vpop.f32.mrf.mxu0
      %v2139 = vadd.f32 0.0, %v2138
      %v2140 = vpop.f32.mrf.mxu0
      %2141 = vmatprep.mubr.bf16.mxu0 0
      %2142 = vmatmul.mubr.bf16.gmra.mxu0 %v1915
      %v2143 = vpop.f32.mrf.mxu0
      %v2144 = vadd.f32 0.0, %v2143
      %v2145 = vpop.f32.mrf.mxu0
      %v2146 = vpop.f32.mrf.mxu0
      %v2147 = vadd.f32 0.0, %v2146
      %v2148 = vpop.f32.mrf.mxu0
      %2149 = vmatprep.mubr.bf16.mxu0 0
      %2150 = vmatmul.mubr.bf16.gmra.mxu0 %v1916
      %v2151 = vpop.f32.mrf.mxu0
      %v2152 = vadd.f32 0.0, %v2151
      %v2153 = vpop.f32.mrf.mxu0
      %v2154 = vpop.f32.mrf.mxu0
      %v2155 = vadd.f32 0.0, %v2154
      %v2156 = vpop.f32.mrf.mxu0
      %2157 = vmatprep.mubr.bf16.mxu0 0
      %2158 = vmatmul.mubr.bf16.gmra.mxu0 %v1917
      %v2159 = vpop.f32.mrf.mxu0
      %v2160 = vadd.f32 0.0, %v2159
      %v2161 = vpop.f32.mrf.mxu0
      %v2162 = vpop.f32.mrf.mxu0
      %v2163 = vadd.f32 0.0, %v2162
      %v2164 = vpop.f32.mrf.mxu0
      %2165 = vmatprep.mubr.bf16.mxu0 0
      %2166 = vmatmul.mubr.bf16.gmra.mxu0 %v1918
      %v2167 = vpop.f32.mrf.mxu0
      %v2168 = vadd.f32 0.0, %v2167
      %v2169 = vpop.f32.mrf.mxu0
      %v2170 = vpop.f32.mrf.mxu0
      %v2171 = vadd.f32 0.0, %v2170
      %v2172 = vpop.f32.mrf.mxu0
      %2173 = vmatprep.mubr.bf16.mxu0 0
      %2174 = vmatmul.mubr.bf16.gmra.mxu0 %v1919
      %v2175 = vpop.f32.mrf.mxu0
      %v2176 = vadd.f32 0.0, %v2175
      %v2177 = vpop.f32.mrf.mxu0
      %v2178 = vpop.f32.mrf.mxu0
      %v2179 = vadd.f32 0.0, %v2178
      %v2180 = vpop.f32.mrf.mxu0
      %2181 = vdwg.mxu0
      %v2198 = vunpack.c.l.b16 %v1940
      %v2199 = vunpack.c.l.b16 %v1941
      %v2200 = vunpack.c.l.b16 %v1942
      %v2201 = vunpack.c.l.b16 %v1943
      %v2202 = vunpack.c.l.b16 %v1944
      %v2203 = vunpack.c.l.b16 %v1945
      %v2204 = vunpack.c.l.b16 %v1946
      %v2205 = vunpack.c.l.b16 %v1947
      %v2206 = vunpack.c.l.b16 %v1948
      %v2207 = vunpack.c.l.b16 %v1949
      %v2208 = vunpack.c.l.b16 %v1950
      %v2209 = vunpack.c.l.b16 %v1951
      %v2210 = vunpack.c.l.b16 %v1952
      %v2211 = vunpack.c.l.b16 %v1953
      %v2212 = vunpack.c.l.b16 %v1954
      %v2213 = vunpack.c.l.b16 %v1955
      %v2214 = vpack.c.b16 %v2199, %v2198
      %v2215 = vpack.c.b16 %v2201, %v2200
      %v2216 = vpack.c.b16 %v2203, %v2202
      %v2217 = vpack.c.b16 %v2205, %v2204
      %v2218 = vpack.c.b16 %v2207, %v2206
      %v2219 = vpack.c.b16 %v2209, %v2208
      %v2220 = vpack.c.b16 %v2211, %v2210
      %v2221 = vpack.c.b16 %v2213, %v2212
      %2230 = vmatprep.subr.bf16.mxu0 0
      %2231 = vmatpush1.bf16.msra.mxu0 %v2221
      %2232 = vmatprep.subr.bf16.mxu0 0
      %2233 = vmatpush1.bf16.msra.mxu0 %v2220
      %2234 = vmatprep.subr.bf16.mxu0 0
      %2235 = vmatpush1.bf16.msra.mxu0 %v2219
      %2236 = vmatprep.subr.bf16.mxu0 0
      %2237 = vmatpush1.bf16.msra.mxu0 %v2218
      %2238 = vmatprep.subr.bf16.mxu0 0
      %2239 = vmatpush1.bf16.msra.mxu0 %v2217
      %2240 = vmatprep.subr.bf16.mxu0 0
      %2241 = vmatpush1.bf16.msra.mxu0 %v2216
      %2242 = vmatprep.subr.bf16.mxu0 0
      %2243 = vmatpush1.bf16.msra.mxu0 %v2215
      %2244 = vmatprep.subr.bf16.mxu0 0
      %2245 = vmatpush1.bf16.msra.mxu0 %v2214
      %2246 = vmatprep.subr.bf16.mxu0 0
      %2247 = vmatpush2.bf16.msra.mxu0 0
      %2248 = vmatprep.subr.bf16.mxu0 0
      %2249 = vmatpush2.bf16.msra.mxu0 0
      %2250 = vmatprep.subr.bf16.mxu0 0
      %2251 = vmatpush2.bf16.msra.mxu0 0
      %2252 = vmatprep.subr.bf16.mxu0 0
      %2253 = vmatpush2.bf16.msra.mxu0 0
      %2254 = vmatprep.subr.bf16.mxu0 0
      %2255 = vmatpush2.bf16.msra.mxu0 0
      %2256 = vmatprep.subr.bf16.mxu0 0
      %2257 = vmatpush2.bf16.msra.mxu0 0
      %2258 = vmatprep.subr.bf16.mxu0 0
      %2259 = vmatpush2.bf16.msra.mxu0 0
      %2260 = vmatprep.subr.bf16.mxu0 0
      %2261 = vmatpush2.bf16.msra.mxu0 0
      %2262 = vmatprep.mubr.bf16.mxu0 0
      %2263 = vmatmul.mubr.bf16.gmra.mxu0 %v1886
      %v2264 = vpop.f32.mrf.mxu0
      %v2265 = vadd.f32 %v2056, %v2264
      %v2266 = vpop.f32.mrf.mxu0
      %v2267 = vpop.f32.mrf.mxu0
      %v2268 = vadd.f32 %v2059, %v2267
      %v2269 = vpop.f32.mrf.mxu0
      %2270 = vmatprep.mubr.bf16.mxu0 0
      %2271 = vmatmul.mubr.bf16.gmra.mxu0 %v1887
      %v2272 = vpop.f32.mrf.mxu0
      %v2273 = vadd.f32 %v2064, %v2272
      %v2274 = vpop.f32.mrf.mxu0
      %v2275 = vpop.f32.mrf.mxu0
      %v2276 = vadd.f32 %v2067, %v2275
      %v2277 = vpop.f32.mrf.mxu0
      %2278 = vmatprep.mubr.bf16.mxu0 0
      %2279 = vmatmul.mubr.bf16.gmra.mxu0 %v1888
      %v2280 = vpop.f32.mrf.mxu0
      %v2281 = vadd.f32 %v2072, %v2280
      %v2282 = vpop.f32.mrf.mxu0
      %v2283 = vpop.f32.mrf.mxu0
      %v2284 = vadd.f32 %v2075, %v2283
      %v2285 = vpop.f32.mrf.mxu0
      %2286 = vmatprep.mubr.bf16.mxu0 0
      %2287 = vmatmul.mubr.bf16.gmra.mxu0 %v1889
      %v2288 = vpop.f32.mrf.mxu0
      %v2289 = vadd.f32 %v2080, %v2288
      %v2290 = vpop.f32.mrf.mxu0
      %v2291 = vpop.f32.mrf.mxu0
      %v2292 = vadd.f32 %v2083, %v2291
      %v2293 = vpop.f32.mrf.mxu0
      %2294 = vmatprep.mubr.bf16.mxu0 0
      %2295 = vmatmul.mubr.bf16.gmra.mxu0 %v1890
      %v2296 = vpop.f32.mrf.mxu0
      %v2297 = vadd.f32 %v2088, %v2296
      %v2298 = vpop.f32.mrf.mxu0
      %v2299 = vpop.f32.mrf.mxu0
      %v2300 = vadd.f32 %v2091, %v2299
      %v2301 = vpop.f32.mrf.mxu0
      %2302 = vmatprep.mubr.bf16.mxu0 0
      %2303 = vmatmul.mubr.bf16.gmra.mxu0 %v1891
      %v2304 = vpop.f32.mrf.mxu0
      %v2305 = vadd.f32 %v2096, %v2304
      %v2306 = vpop.f32.mrf.mxu0
      %v2307 = vpop.f32.mrf.mxu0
      %v2308 = vadd.f32 %v2099, %v2307
      %v2309 = vpop.f32.mrf.mxu0
      %2310 = vmatprep.mubr.bf16.mxu0 0
      %2311 = vmatmul.mubr.bf16.gmra.mxu0 %v1892
      %v2312 = vpop.f32.mrf.mxu0
      %v2313 = vadd.f32 %v2104, %v2312
      %v2314 = vpop.f32.mrf.mxu0
      %v2315 = vpop.f32.mrf.mxu0
      %v2316 = vadd.f32 %v2107, %v2315
      %v2317 = vpop.f32.mrf.mxu0
      %2318 = vmatprep.mubr.bf16.mxu0 0
      %2319 = vmatmul.mubr.bf16.gmra.mxu0 %v1893
      %v2320 = vpop.f32.mrf.mxu0
      %v2321 = vadd.f32 %v2112, %v2320
      %v2322 = vpop.f32.mrf.mxu0
      %v2323 = vpop.f32.mrf.mxu0
      %v2324 = vadd.f32 %v2115, %v2323
      %v2325 = vpop.f32.mrf.mxu0
      %2326 = vmatprep.mubr.bf16.mxu0 0
      %2327 = vmatmul.mubr.bf16.gmra.mxu0 %v1894
      %v2328 = vpop.f32.mrf.mxu0
      %v2329 = vadd.f32 %v2120, %v2328
      %v2330 = vpop.f32.mrf.mxu0
      %v2331 = vpop.f32.mrf.mxu0
      %v2332 = vadd.f32 %v2123, %v2331
      %v2333 = vpop.f32.mrf.mxu0
      %2334 = vmatprep.mubr.bf16.mxu0 0
      %2335 = vmatmul.mubr.bf16.gmra.mxu0 %v1895
      %v2336 = vpop.f32.mrf.mxu0
      %v2337 = vadd.f32 %v2128, %v2336
      %v2338 = vpop.f32.mrf.mxu0
      %v2339 = vpop.f32.mrf.mxu0
      %v2340 = vadd.f32 %v2131, %v2339
      %v2341 = vpop.f32.mrf.mxu0
      %2342 = vmatprep.mubr.bf16.mxu0 0
      %2343 = vmatmul.mubr.bf16.gmra.mxu0 %v1896
      %v2344 = vpop.f32.mrf.mxu0
      %v2345 = vadd.f32 %v2136, %v2344
      %v2346 = vpop.f32.mrf.mxu0
      %v2347 = vpop.f32.mrf.mxu0
      %v2348 = vadd.f32 %v2139, %v2347
      %v2349 = vpop.f32.mrf.mxu0
      %2350 = vmatprep.mubr.bf16.mxu0 0
      %2351 = vmatmul.mubr.bf16.gmra.mxu0 %v1897
      %v2352 = vpop.f32.mrf.mxu0
      %v2353 = vadd.f32 %v2144, %v2352
      %v2354 = vpop.f32.mrf.mxu0
      %v2355 = vpop.f32.mrf.mxu0
      %v2356 = vadd.f32 %v2147, %v2355
      %v2357 = vpop.f32.mrf.mxu0
      %2358 = vmatprep.mubr.bf16.mxu0 0
      %2359 = vmatmul.mubr.bf16.gmra.mxu0 %v1898
      %v2360 = vpop.f32.mrf.mxu0
      %v2361 = vadd.f32 %v2152, %v2360
      %v2362 = vpop.f32.mrf.mxu0
      %v2363 = vpop.f32.mrf.mxu0
      %v2364 = vadd.f32 %v2155, %v2363
      %v2365 = vpop.f32.mrf.mxu0
      %2366 = vmatprep.mubr.bf16.mxu0 0
      %2367 = vmatmul.mubr.bf16.gmra.mxu0 %v1899
      %v2368 = vpop.f32.mrf.mxu0
      %v2369 = vadd.f32 %v2160, %v2368
      %v2370 = vpop.f32.mrf.mxu0
      %v2371 = vpop.f32.mrf.mxu0
      %v2372 = vadd.f32 %v2163, %v2371
      %v2373 = vpop.f32.mrf.mxu0
      %2374 = vmatprep.mubr.bf16.mxu0 0
      %2375 = vmatmul.mubr.bf16.gmra.mxu0 %v1900
      %v2376 = vpop.f32.mrf.mxu0
      %v2377 = vadd.f32 %v2168, %v2376
      %v2378 = vpop.f32.mrf.mxu0
      %v2379 = vpop.f32.mrf.mxu0
      %v2380 = vadd.f32 %v2171, %v2379
      %v2381 = vpop.f32.mrf.mxu0
      %2382 = vmatprep.mubr.bf16.mxu0 0
      %2383 = vmatmul.mubr.bf16.gmra.mxu0 %v1901
      %v2384 = vpop.f32.mrf.mxu0
      %v2385 = vadd.f32 %v2176, %v2384
      %v2386 = vpop.f32.mrf.mxu0
      %v2387 = vpop.f32.mrf.mxu0
      %v2388 = vadd.f32 %v2179, %v2387
      %v2389 = vpop.f32.mrf.mxu0
      %2390 = vdwg.mxu0
      %s2391 = scalar_lea.vmem %s3, 128
      %v2392 = vld [vmem:[%s2391] sm:$0xf]
      %v2393 = vld [vmem:[%s2391 + $0x4] sm:$0xf]
      %v2394 = vld [vmem:[%s2391 + $0x8] sm:$0xf]
      %v2395 = vld [vmem:[%s2391 + $0xc] sm:$0xf]
      %v2396 = vld [vmem:[%s2391 + $0x10] sm:$0xf]
      %v2397 = vld [vmem:[%s2391 + $0x14] sm:$0xf]
      %v2398 = vld [vmem:[%s2391 + $0x18] sm:$0xf]
      %v2399 = vld [vmem:[%s2391 + $0x1c] sm:$0xf]
      %v2400 = vld [vmem:[%s2391 + $0x20] sm:$0xf]
      %v2401 = vld [vmem:[%s2391 + $0x24] sm:$0xf]
      %v2402 = vld [vmem:[%s2391 + $0x28] sm:$0xf]
      %v2403 = vld [vmem:[%s2391 + $0x2c] sm:$0xf]
      %v2404 = vld [vmem:[%s2391 + $0x30] sm:$0xf]
      %v2405 = vld [vmem:[%s2391 + $0x34] sm:$0xf]
      %v2406 = vld [vmem:[%s2391 + $0x38] sm:$0xf]
      %v2407 = vld [vmem:[%s2391 + $0x3c] sm:$0xf]
      %v2424 = vunpack.c.l.b16 %v2392
      %v2425 = vunpack.c.l.b16 %v2393
      %v2426 = vunpack.c.l.b16 %v2394
      %v2427 = vunpack.c.l.b16 %v2395
      %v2428 = vunpack.c.l.b16 %v2396
      %v2429 = vunpack.c.l.b16 %v2397
      %v2430 = vunpack.c.l.b16 %v2398
      %v2431 = vunpack.c.l.b16 %v2399
      %v2432 = vunpack.c.l.b16 %v2400
      %v2433 = vunpack.c.l.b16 %v2401
      %v2434 = vunpack.c.l.b16 %v2402
      %v2435 = vunpack.c.l.b16 %v2403
      %v2436 = vunpack.c.l.b16 %v2404
      %v2437 = vunpack.c.l.b16 %v2405
      %v2438 = vunpack.c.l.b16 %v2406
      %v2439 = vunpack.c.l.b16 %v2407
      %v2440 = vpack.c.b16 %v2425, %v2424
      %v2441 = vpack.c.b16 %v2427, %v2426
      %v2442 = vpack.c.b16 %v2429, %v2428
      %v2443 = vpack.c.b16 %v2431, %v2430
      %v2444 = vpack.c.b16 %v2433, %v2432
      %v2445 = vpack.c.b16 %v2435, %v2434
      %v2446 = vpack.c.b16 %v2437, %v2436
      %v2447 = vpack.c.b16 %v2439, %v2438
      %2456 = vmatprep.subr.bf16.mxu0 0
      %2457 = vmatpush1.bf16.msra.mxu0 %v2447
      %2458 = vmatprep.subr.bf16.mxu0 0
      %2459 = vmatpush1.bf16.msra.mxu0 %v2446
      %2460 = vmatprep.subr.bf16.mxu0 0
      %2461 = vmatpush1.bf16.msra.mxu0 %v2445
      %2462 = vmatprep.subr.bf16.mxu0 0
      %2463 = vmatpush1.bf16.msra.mxu0 %v2444
      %2464 = vmatprep.subr.bf16.mxu0 0
      %2465 = vmatpush1.bf16.msra.mxu0 %v2443
      %2466 = vmatprep.subr.bf16.mxu0 0
      %2467 = vmatpush1.bf16.msra.mxu0 %v2442
      %2468 = vmatprep.subr.bf16.mxu0 0
      %2469 = vmatpush1.bf16.msra.mxu0 %v2441
      %2470 = vmatprep.subr.bf16.mxu0 0
      %2471 = vmatpush1.bf16.msra.mxu0 %v2440
      %2472 = vmatprep.subr.bf16.mxu0 0
      %2473 = vmatpush2.bf16.msra.mxu0 0
      %2474 = vmatprep.subr.bf16.mxu0 0
      %2475 = vmatpush2.bf16.msra.mxu0 0
      %2476 = vmatprep.subr.bf16.mxu0 0
      %2477 = vmatpush2.bf16.msra.mxu0 0
      %2478 = vmatprep.subr.bf16.mxu0 0
      %2479 = vmatpush2.bf16.msra.mxu0 0
      %2480 = vmatprep.subr.bf16.mxu0 0
      %2481 = vmatpush2.bf16.msra.mxu0 0
      %2482 = vmatprep.subr.bf16.mxu0 0
      %2483 = vmatpush2.bf16.msra.mxu0 0
      %2484 = vmatprep.subr.bf16.mxu0 0
      %2485 = vmatpush2.bf16.msra.mxu0 0
      %2486 = vmatprep.subr.bf16.mxu0 0
      %2487 = vmatpush2.bf16.msra.mxu0 0
      %2488 = vmatprep.mubr.bf16.mxu0 0
      %2489 = vmatmul.mubr.bf16.gmra.mxu0 %v1922
      %v2490 = vpop.f32.mrf.mxu0
      %v2491 = vadd.f32 0.0, %v2490
      %v2492 = vpop.f32.mrf.mxu0
      %v2493 = vpop.f32.mrf.mxu0
      %v2494 = vadd.f32 0.0, %v2493
      %v2495 = vpop.f32.mrf.mxu0
      %2496 = vmatprep.mubr.bf16.mxu0 0
      %2497 = vmatmul.mubr.bf16.gmra.mxu0 %v1923
      %v2498 = vpop.f32.mrf.mxu0
      %v2499 = vadd.f32 0.0, %v2498
      %v2500 = vpop.f32.mrf.mxu0
      %v2501 = vpop.f32.mrf.mxu0
      %v2502 = vadd.f32 0.0, %v2501
      %v2503 = vpop.f32.mrf.mxu0
      %2504 = vmatprep.mubr.bf16.mxu0 0
      %2505 = vmatmul.mubr.bf16.gmra.mxu0 %v1924
      %v2506 = vpop.f32.mrf.mxu0
      %v2507 = vadd.f32 0.0, %v2506
      %v2508 = vpop.f32.mrf.mxu0
      %v2509 = vpop.f32.mrf.mxu0
      %v2510 = vadd.f32 0.0, %v2509
      %v2511 = vpop.f32.mrf.mxu0
      %2512 = vmatprep.mubr.bf16.mxu0 0
      %2513 = vmatmul.mubr.bf16.gmra.mxu0 %v1925
      %v2514 = vpop.f32.mrf.mxu0
      %v2515 = vadd.f32 0.0, %v2514
      %v2516 = vpop.f32.mrf.mxu0
      %v2517 = vpop.f32.mrf.mxu0
      %v2518 = vadd.f32 0.0, %v2517
      %v2519 = vpop.f32.mrf.mxu0
      %2520 = vmatprep.mubr.bf16.mxu0 0
      %2521 = vmatmul.mubr.bf16.gmra.mxu0 %v1926
      %v2522 = vpop.f32.mrf.mxu0
      %v2523 = vadd.f32 0.0, %v2522
      %v2524 = vpop.f32.mrf.mxu0
      %v2525 = vpop.f32.mrf.mxu0
      %v2526 = vadd.f32 0.0, %v2525
      %v2527 = vpop.f32.mrf.mxu0
      %2528 = vmatprep.mubr.bf16.mxu0 0
      %2529 = vmatmul.mubr.bf16.gmra.mxu0 %v1927
      %v2530 = vpop.f32.mrf.mxu0
      %v2531 = vadd.f32 0.0, %v2530
      %v2532 = vpop.f32.mrf.mxu0
      %v2533 = vpop.f32.mrf.mxu0
      %v2534 = vadd.f32 0.0, %v2533
      %v2535 = vpop.f32.mrf.mxu0
      %2536 = vmatprep.mubr.bf16.mxu0 0
      %2537 = vmatmul.mubr.bf16.gmra.mxu0 %v1928
      %v2538 = vpop.f32.mrf.mxu0
      %v2539 = vadd.f32 0.0, %v2538
      %v2540 = vpop.f32.mrf.mxu0
      %v2541 = vpop.f32.mrf.mxu0
      %v2542 = vadd.f32 0.0, %v2541
      %v2543 = vpop.f32.mrf.mxu0
      %2544 = vmatprep.mubr.bf16.mxu0 0
      %2545 = vmatmul.mubr.bf16.gmra.mxu0 %v1929
      %v2546 = vpop.f32.mrf.mxu0
      %v2547 = vadd.f32 0.0, %v2546
      %v2548 = vpop.f32.mrf.mxu0
      %v2549 = vpop.f32.mrf.mxu0
      %v2550 = vadd.f32 0.0, %v2549
      %v2551 = vpop.f32.mrf.mxu0
      %2552 = vmatprep.mubr.bf16.mxu0 0
      %2553 = vmatmul.mubr.bf16.gmra.mxu0 %v1930
      %v2554 = vpop.f32.mrf.mxu0
      %v2555 = vadd.f32 0.0, %v2554
      %v2556 = vpop.f32.mrf.mxu0
      %v2557 = vpop.f32.mrf.mxu0
      %v2558 = vadd.f32 0.0, %v2557
      %v2559 = vpop.f32.mrf.mxu0
      %2560 = vmatprep.mubr.bf16.mxu0 0
      %2561 = vmatmul.mubr.bf16.gmra.mxu0 %v1931
      %v2562 = vpop.f32.mrf.mxu0
      %v2563 = vadd.f32 0.0, %v2562
      %v2564 = vpop.f32.mrf.mxu0
      %v2565 = vpop.f32.mrf.mxu0
      %v2566 = vadd.f32 0.0, %v2565
      %v2567 = vpop.f32.mrf.mxu0
      %2568 = vmatprep.mubr.bf16.mxu0 0
      %2569 = vmatmul.mubr.bf16.gmra.mxu0 %v1932
      %v2570 = vpop.f32.mrf.mxu0
      %v2571 = vadd.f32 0.0, %v2570
      %v2572 = vpop.f32.mrf.mxu0
      %v2573 = vpop.f32.mrf.mxu0
      %v2574 = vadd.f32 0.0, %v2573
      %v2575 = vpop.f32.mrf.mxu0
      %2576 = vmatprep.mubr.bf16.mxu0 0
      %2577 = vmatmul.mubr.bf16.gmra.mxu0 %v1933
      %v2578 = vpop.f32.mrf.mxu0
      %v2579 = vadd.f32 0.0, %v2578
      %v2580 = vpop.f32.mrf.mxu0
      %v2581 = vpop.f32.mrf.mxu0
      %v2582 = vadd.f32 0.0, %v2581
      %v2583 = vpop.f32.mrf.mxu0
      %2584 = vmatprep.mubr.bf16.mxu0 0
      %2585 = vmatmul.mubr.bf16.gmra.mxu0 %v1934
      %v2586 = vpop.f32.mrf.mxu0
      %v2587 = vadd.f32 0.0, %v2586
      %v2588 = vpop.f32.mrf.mxu0
      %v2589 = vpop.f32.mrf.mxu0
      %v2590 = vadd.f32 0.0, %v2589
      %v2591 = vpop.f32.mrf.mxu0
      %2592 = vmatprep.mubr.bf16.mxu0 0
      %2593 = vmatmul.mubr.bf16.gmra.mxu0 %v1935
      %v2594 = vpop.f32.mrf.mxu0
      %v2595 = vadd.f32 0.0, %v2594
      %v2596 = vpop.f32.mrf.mxu0
      %v2597 = vpop.f32.mrf.mxu0
      %v2598 = vadd.f32 0.0, %v2597
      %v2599 = vpop.f32.mrf.mxu0
      %2600 = vmatprep.mubr.bf16.mxu0 0
      %2601 = vmatmul.mubr.bf16.gmra.mxu0 %v1936
      %v2602 = vpop.f32.mrf.mxu0
      %v2603 = vadd.f32 0.0, %v2602
      %v2604 = vpop.f32.mrf.mxu0
      %v2605 = vpop.f32.mrf.mxu0
      %v2606 = vadd.f32 0.0, %v2605
      %v2607 = vpop.f32.mrf.mxu0
      %2608 = vmatprep.mubr.bf16.mxu0 0
      %2609 = vmatmul.mubr.bf16.gmra.mxu0 %v1937
      %v2610 = vpop.f32.mrf.mxu0
      %v2611 = vadd.f32 0.0, %v2610
      %v2612 = vpop.f32.mrf.mxu0
      %v2613 = vpop.f32.mrf.mxu0
      %v2614 = vadd.f32 0.0, %v2613
      %v2615 = vpop.f32.mrf.mxu0
      %2616 = vdwg.mxu0
      %v2617 = vadd.f32 %v2265, %v2491
      %v2618 = vadd.f32 %v2268, %v2494
      %v2619 = vadd.f32 %v2273, %v2499
      %v2620 = vadd.f32 %v2276, %v2502
      %v2621 = vadd.f32 %v2281, %v2507
      %v2622 = vadd.f32 %v2284, %v2510
      %v2623 = vadd.f32 %v2289, %v2515
      %v2624 = vadd.f32 %v2292, %v2518
      %v2625 = vadd.f32 %v2297, %v2523
      %v2626 = vadd.f32 %v2300, %v2526
      %v2627 = vadd.f32 %v2305, %v2531
      %v2628 = vadd.f32 %v2308, %v2534
      %v2629 = vadd.f32 %v2313, %v2539
      %v2630 = vadd.f32 %v2316, %v2542
      %v2631 = vadd.f32 %v2321, %v2547
      %v2632 = vadd.f32 %v2324, %v2550
      %v2633 = vadd.f32 %v2329, %v2555
      %v2634 = vadd.f32 %v2332, %v2558
      %v2635 = vadd.f32 %v2337, %v2563
      %v2636 = vadd.f32 %v2340, %v2566
      %v2637 = vadd.f32 %v2345, %v2571
      %v2638 = vadd.f32 %v2348, %v2574
      %v2639 = vadd.f32 %v2353, %v2579
      %v2640 = vadd.f32 %v2356, %v2582
      %v2641 = vadd.f32 %v2361, %v2587
      %v2642 = vadd.f32 %v2364, %v2590
      %v2643 = vadd.f32 %v2369, %v2595
      %v2644 = vadd.f32 %v2372, %v2598
      %v2645 = vadd.f32 %v2377, %v2603
      %v2646 = vadd.f32 %v2380, %v2606
      %v2647 = vadd.f32 %v2385, %v2611
      %v2648 = vadd.f32 %v2388, %v2614
      %s2649 = scalar_lea.vmem %s3, 192
      %v2650 = vld [vmem:[%s2649] sm:$0xf]
      %v2651 = vld [vmem:[%s2649 + $0x4] sm:$0xf]
      %v2652 = vld [vmem:[%s2649 + $0x8] sm:$0xf]
      %v2653 = vld [vmem:[%s2649 + $0xc] sm:$0xf]
      %v2654 = vld [vmem:[%s2649 + $0x10] sm:$0xf]
      %v2655 = vld [vmem:[%s2649 + $0x14] sm:$0xf]
      %v2656 = vld [vmem:[%s2649 + $0x18] sm:$0xf]
      %v2657 = vld [vmem:[%s2649 + $0x1c] sm:$0xf]
      %v2658 = vld [vmem:[%s2649 + $0x20] sm:$0xf]
      %v2659 = vld [vmem:[%s2649 + $0x24] sm:$0xf]
      %v2660 = vld [vmem:[%s2649 + $0x28] sm:$0xf]
      %v2661 = vld [vmem:[%s2649 + $0x2c] sm:$0xf]
      %v2662 = vld [vmem:[%s2649 + $0x30] sm:$0xf]
      %v2663 = vld [vmem:[%s2649 + $0x34] sm:$0xf]
      %v2664 = vld [vmem:[%s2649 + $0x38] sm:$0xf]
      %v2665 = vld [vmem:[%s2649 + $0x3c] sm:$0xf]
      %v2682 = vunpack.c.l.b16 %v2650
      %v2683 = vunpack.c.l.b16 %v2651
      %v2684 = vunpack.c.l.b16 %v2652
      %v2685 = vunpack.c.l.b16 %v2653
      %v2686 = vunpack.c.l.b16 %v2654
      %v2687 = vunpack.c.l.b16 %v2655
      %v2688 = vunpack.c.l.b16 %v2656
      %v2689 = vunpack.c.l.b16 %v2657
      %v2690 = vunpack.c.l.b16 %v2658
      %v2691 = vunpack.c.l.b16 %v2659
      %v2692 = vunpack.c.l.b16 %v2660
      %v2693 = vunpack.c.l.b16 %v2661
      %v2694 = vunpack.c.l.b16 %v2662
      %v2695 = vunpack.c.l.b16 %v2663
      %v2696 = vunpack.c.l.b16 %v2664
      %v2697 = vunpack.c.l.b16 %v2665
      %v2698 = vpack.c.b16 %v2683, %v2682
      %v2699 = vpack.c.b16 %v2685, %v2684
      %v2700 = vpack.c.b16 %v2687, %v2686
      %v2701 = vpack.c.b16 %v2689, %v2688
      %v2702 = vpack.c.b16 %v2691, %v2690
      %v2703 = vpack.c.b16 %v2693, %v2692
      %v2704 = vpack.c.b16 %v2695, %v2694
      %v2705 = vpack.c.b16 %v2697, %v2696
      %2714 = vmatprep.subr.bf16.mxu0 0
      %2715 = vmatpush1.bf16.msra.mxu0 %v2705
      %2716 = vmatprep.subr.bf16.mxu0 0
      %2717 = vmatpush1.bf16.msra.mxu0 %v2704
      %2718 = vmatprep.subr.bf16.mxu0 0
      %2719 = vmatpush1.bf16.msra.mxu0 %v2703
      %2720 = vmatprep.subr.bf16.mxu0 0
      %2721 = vmatpush1.bf16.msra.mxu0 %v2702
      %2722 = vmatprep.subr.bf16.mxu0 0
      %2723 = vmatpush1.bf16.msra.mxu0 %v2701
      %2724 = vmatprep.subr.bf16.mxu0 0
      %2725 = vmatpush1.bf16.msra.mxu0 %v2700
      %2726 = vmatprep.subr.bf16.mxu0 0
      %2727 = vmatpush1.bf16.msra.mxu0 %v2699
      %2728 = vmatprep.subr.bf16.mxu0 0
      %2729 = vmatpush1.bf16.msra.mxu0 %v2698
      %2730 = vmatprep.subr.bf16.mxu0 0
      %2731 = vmatpush2.bf16.msra.mxu0 0
      %2732 = vmatprep.subr.bf16.mxu0 0
      %2733 = vmatpush2.bf16.msra.mxu0 0
      %2734 = vmatprep.subr.bf16.mxu0 0
      %2735 = vmatpush2.bf16.msra.mxu0 0
      %2736 = vmatprep.subr.bf16.mxu0 0
      %2737 = vmatpush2.bf16.msra.mxu0 0
      %2738 = vmatprep.subr.bf16.mxu0 0
      %2739 = vmatpush2.bf16.msra.mxu0 0
      %2740 = vmatprep.subr.bf16.mxu0 0
      %2741 = vmatpush2.bf16.msra.mxu0 0
      %2742 = vmatprep.subr.bf16.mxu0 0
      %2743 = vmatpush2.bf16.msra.mxu0 0
      %2744 = vmatprep.subr.bf16.mxu0 0
      %2745 = vmatpush2.bf16.msra.mxu0 0
      %2746 = vmatprep.mubr.bf16.mxu0 0
      %2747 = vmatmul.mubr.bf16.gmra.mxu0 %v1887
      %v2748 = vpop.f32.mrf.mxu0
      %v2749 = vadd.f32 0.0, %v2748
      %v2750 = vpop.f32.mrf.mxu0
      %v2751 = vpop.f32.mrf.mxu0
      %v2752 = vadd.f32 0.0, %v2751
      %v2753 = vpop.f32.mrf.mxu0
      %2754 = vmatprep.mubr.bf16.mxu0 0
      %2755 = vmatmul.mubr.bf16.gmra.mxu0 %v1888
      %v2756 = vpop.f32.mrf.mxu0
      %v2757 = vadd.f32 0.0, %v2756
      %v2758 = vpop.f32.mrf.mxu0
      %v2759 = vpop.f32.mrf.mxu0
      %v2760 = vadd.f32 0.0, %v2759
      %v2761 = vpop.f32.mrf.mxu0
      %2762 = vmatprep.mubr.bf16.mxu0 0
      %2763 = vmatmul.mubr.bf16.gmra.mxu0 %v1889
      %v2764 = vpop.f32.mrf.mxu0
      %v2765 = vadd.f32 0.0, %v2764
      %v2766 = vpop.f32.mrf.mxu0
      %v2767 = vpop.f32.mrf.mxu0
      %v2768 = vadd.f32 0.0, %v2767
      %v2769 = vpop.f32.mrf.mxu0
      %2770 = vmatprep.mubr.bf16.mxu0 0
      %2771 = vmatmul.mubr.bf16.gmra.mxu0 %v1890
      %v2772 = vpop.f32.mrf.mxu0
      %v2773 = vadd.f32 0.0, %v2772
      %v2774 = vpop.f32.mrf.mxu0
      %v2775 = vpop.f32.mrf.mxu0
      %v2776 = vadd.f32 0.0, %v2775
      %v2777 = vpop.f32.mrf.mxu0
      %2778 = vmatprep.mubr.bf16.mxu0 0
      %2779 = vmatmul.mubr.bf16.gmra.mxu0 %v1891
      %v2780 = vpop.f32.mrf.mxu0
      %v2781 = vadd.f32 0.0, %v2780
      %v2782 = vpop.f32.mrf.mxu0
      %v2783 = vpop.f32.mrf.mxu0
      %v2784 = vadd.f32 0.0, %v2783
      %v2785 = vpop.f32.mrf.mxu0
      %2786 = vmatprep.mubr.bf16.mxu0 0
      %2787 = vmatmul.mubr.bf16.gmra.mxu0 %v1892
      %v2788 = vpop.f32.mrf.mxu0
      %v2789 = vadd.f32 0.0, %v2788
      %v2790 = vpop.f32.mrf.mxu0
      %v2791 = vpop.f32.mrf.mxu0
      %v2792 = vadd.f32 0.0, %v2791
      %v2793 = vpop.f32.mrf.mxu0
      %2794 = vmatprep.mubr.bf16.mxu0 0
      %2795 = vmatmul.mubr.bf16.gmra.mxu0 %v1893
      %v2796 = vpop.f32.mrf.mxu0
      %v2797 = vadd.f32 0.0, %v2796
      %v2798 = vpop.f32.mrf.mxu0
      %v2799 = vpop.f32.mrf.mxu0
      %v2800 = vadd.f32 0.0, %v2799
      %v2801 = vpop.f32.mrf.mxu0
      %2802 = vmatprep.mubr.bf16.mxu0 0
      %2803 = vmatmul.mubr.bf16.gmra.mxu0 %v1894
      %v2804 = vpop.f32.mrf.mxu0
      %v2805 = vadd.f32 0.0, %v2804
      %v2806 = vpop.f32.mrf.mxu0
      %v2807 = vpop.f32.mrf.mxu0
      %v2808 = vadd.f32 0.0, %v2807
      %v2809 = vpop.f32.mrf.mxu0
      %2810 = vmatprep.mubr.bf16.mxu0 0
      %2811 = vmatmul.mubr.bf16.gmra.mxu0 %v1895
      %v2812 = vpop.f32.mrf.mxu0
      %v2813 = vadd.f32 0.0, %v2812
      %v2814 = vpop.f32.mrf.mxu0
      %v2815 = vpop.f32.mrf.mxu0
      %v2816 = vadd.f32 0.0, %v2815
      %v2817 = vpop.f32.mrf.mxu0
      %2818 = vmatprep.mubr.bf16.mxu0 0
      %2819 = vmatmul.mubr.bf16.gmra.mxu0 %v1896
      %v2820 = vpop.f32.mrf.mxu0
      %v2821 = vadd.f32 0.0, %v2820
      %v2822 = vpop.f32.mrf.mxu0
      %v2823 = vpop.f32.mrf.mxu0
      %v2824 = vadd.f32 0.0, %v2823
      %v2825 = vpop.f32.mrf.mxu0
      %2826 = vmatprep.mubr.bf16.mxu0 0
      %2827 = vmatmul.mubr.bf16.gmra.mxu0 %v1897
      %v2828 = vpop.f32.mrf.mxu0
      %v2829 = vadd.f32 0.0, %v2828
      %v2830 = vpop.f32.mrf.mxu0
      %v2831 = vpop.f32.mrf.mxu0
      %v2832 = vadd.f32 0.0, %v2831
      %v2833 = vpop.f32.mrf.mxu0
      %2834 = vmatprep.mubr.bf16.mxu0 0
      %2835 = vmatmul.mubr.bf16.gmra.mxu0 %v1898
      %v2836 = vpop.f32.mrf.mxu0
      %v2837 = vadd.f32 0.0, %v2836
      %v2838 = vpop.f32.mrf.mxu0
      %v2839 = vpop.f32.mrf.mxu0
      %v2840 = vadd.f32 0.0, %v2839
      %v2841 = vpop.f32.mrf.mxu0
      %2842 = vmatprep.mubr.bf16.mxu0 0
      %2843 = vmatmul.mubr.bf16.gmra.mxu0 %v1899
      %v2844 = vpop.f32.mrf.mxu0
      %v2845 = vadd.f32 0.0, %v2844
      %v2846 = vpop.f32.mrf.mxu0
      %v2847 = vpop.f32.mrf.mxu0
      %v2848 = vadd.f32 0.0, %v2847
      %v2849 = vpop.f32.mrf.mxu0
      %2850 = vmatprep.mubr.bf16.mxu0 0
      %2851 = vmatmul.mubr.bf16.gmra.mxu0 %v1900
      %v2852 = vpop.f32.mrf.mxu0
      %v2853 = vadd.f32 0.0, %v2852
      %v2854 = vpop.f32.mrf.mxu0
      %v2855 = vpop.f32.mrf.mxu0
      %v2856 = vadd.f32 0.0, %v2855
      %v2857 = vpop.f32.mrf.mxu0
      %2858 = vmatprep.mubr.bf16.mxu0 0
      %2859 = vmatmul.mubr.bf16.gmra.mxu0 %v1901
      %v2860 = vpop.f32.mrf.mxu0
      %v2861 = vadd.f32 0.0, %v2860
      %v2862 = vpop.f32.mrf.mxu0
      %v2863 = vpop.f32.mrf.mxu0
      %v2864 = vadd.f32 0.0, %v2863
      %v2865 = vpop.f32.mrf.mxu0
      %2866 = vmatprep.mubr.bf16.mxu0 0
      %2867 = vmatmul.mubr.bf16.gmra.mxu0 %v1902
      %v2868 = vpop.f32.mrf.mxu0
      %v2869 = vadd.f32 0.0, %v2868
      %v2870 = vpop.f32.mrf.mxu0
      %v2871 = vpop.f32.mrf.mxu0
      %v2872 = vadd.f32 0.0, %v2871
      %v2873 = vpop.f32.mrf.mxu0
      %2874 = vdwg.mxu0
      %v2875 = vadd.f32 %v2617, %v2749
      %v2876 = vadd.f32 %v2618, %v2752
      %v2877 = vadd.f32 %v2619, %v2757
      %v2878 = vadd.f32 %v2620, %v2760
      %v2879 = vadd.f32 %v2621, %v2765
      %v2880 = vadd.f32 %v2622, %v2768
      %v2881 = vadd.f32 %v2623, %v2773
      %v2882 = vadd.f32 %v2624, %v2776
      %v2883 = vadd.f32 %v2625, %v2781
      %v2884 = vadd.f32 %v2626, %v2784
      %v2885 = vadd.f32 %v2627, %v2789
      %v2886 = vadd.f32 %v2628, %v2792
      %v2887 = vadd.f32 %v2629, %v2797
      %v2888 = vadd.f32 %v2630, %v2800
      %v2889 = vadd.f32 %v2631, %v2805
      %v2890 = vadd.f32 %v2632, %v2808
      %v2891 = vadd.f32 %v2633, %v2813
      %v2892 = vadd.f32 %v2634, %v2816
      %v2893 = vadd.f32 %v2635, %v2821
      %v2894 = vadd.f32 %v2636, %v2824
      %v2895 = vadd.f32 %v2637, %v2829
      %v2896 = vadd.f32 %v2638, %v2832
      %v2897 = vadd.f32 %v2639, %v2837
      %v2898 = vadd.f32 %v2640, %v2840
      %v2899 = vadd.f32 %v2641, %v2845
      %v2900 = vadd.f32 %v2642, %v2848
      %v2901 = vadd.f32 %v2643, %v2853
      %v2902 = vadd.f32 %v2644, %v2856
      %v2903 = vadd.f32 %v2645, %v2861
      %v2904 = vadd.f32 %v2646, %v2864
      %v2905 = vadd.f32 %v2647, %v2869
      %v2906 = vadd.f32 %v2648, %v2872
      %s2907 = scalar_lea.vmem %s3, 256
      %v2908 = vld [vmem:[%s2907] sm:$0xf]
      %v2909 = vld [vmem:[%s2907 + $0x4] sm:$0xf]
      %v2910 = vld [vmem:[%s2907 + $0x8] sm:$0xf]
      %v2911 = vld [vmem:[%s2907 + $0xc] sm:$0xf]
      %v2912 = vld [vmem:[%s2907 + $0x10] sm:$0xf]
      %v2913 = vld [vmem:[%s2907 + $0x14] sm:$0xf]
      %v2914 = vld [vmem:[%s2907 + $0x18] sm:$0xf]
      %v2915 = vld [vmem:[%s2907 + $0x1c] sm:$0xf]
      %v2916 = vld [vmem:[%s2907 + $0x20] sm:$0xf]
      %v2917 = vld [vmem:[%s2907 + $0x24] sm:$0xf]
      %v2918 = vld [vmem:[%s2907 + $0x28] sm:$0xf]
      %v2919 = vld [vmem:[%s2907 + $0x2c] sm:$0xf]
      %v2920 = vld [vmem:[%s2907 + $0x30] sm:$0xf]
      %v2921 = vld [vmem:[%s2907 + $0x34] sm:$0xf]
      %v2922 = vld [vmem:[%s2907 + $0x38] sm:$0xf]
      %v2923 = vld [vmem:[%s2907 + $0x3c] sm:$0xf]
      %v2940 = vunpack.c.l.b16 %v2908
      %v2941 = vunpack.c.l.b16 %v2909
      %v2942 = vunpack.c.l.b16 %v2910
      %v2943 = vunpack.c.l.b16 %v2911
      %v2944 = vunpack.c.l.b16 %v2912
      %v2945 = vunpack.c.l.b16 %v2913
      %v2946 = vunpack.c.l.b16 %v2914
      %v2947 = vunpack.c.l.b16 %v2915
      %v2948 = vunpack.c.l.b16 %v2916
      %v2949 = vunpack.c.l.b16 %v2917
      %v2950 = vunpack.c.l.b16 %v2918
      %v2951 = vunpack.c.l.b16 %v2919
      %v2952 = vunpack.c.l.b16 %v2920
      %v2953 = vunpack.c.l.b16 %v2921
      %v2954 = vunpack.c.l.b16 %v2922
      %v2955 = vunpack.c.l.b16 %v2923
      %v2956 = vpack.c.b16 %v2941, %v2940
      %v2957 = vpack.c.b16 %v2943, %v2942
      %v2958 = vpack.c.b16 %v2945, %v2944
      %v2959 = vpack.c.b16 %v2947, %v2946
      %v2960 = vpack.c.b16 %v2949, %v2948
      %v2961 = vpack.c.b16 %v2951, %v2950
      %v2962 = vpack.c.b16 %v2953, %v2952
      %v2963 = vpack.c.b16 %v2955, %v2954
      %2972 = vmatprep.subr.bf16.mxu0 0
      %2973 = vmatpush1.bf16.msra.mxu0 %v2963
      %2974 = vmatprep.subr.bf16.mxu0 0
      %2975 = vmatpush1.bf16.msra.mxu0 %v2962
      %2976 = vmatprep.subr.bf16.mxu0 0
      %2977 = vmatpush1.bf16.msra.mxu0 %v2961
      %2978 = vmatprep.subr.bf16.mxu0 0
      %2979 = vmatpush1.bf16.msra.mxu0 %v2960
      %2980 = vmatprep.subr.bf16.mxu0 0
      %2981 = vmatpush1.bf16.msra.mxu0 %v2959
      %2982 = vmatprep.subr.bf16.mxu0 0
      %2983 = vmatpush1.bf16.msra.mxu0 %v2958
      %2984 = vmatprep.subr.bf16.mxu0 0
      %2985 = vmatpush1.bf16.msra.mxu0 %v2957
      %2986 = vmatprep.subr.bf16.mxu0 0
      %2987 = vmatpush1.bf16.msra.mxu0 %v2956
      %2988 = vmatprep.subr.bf16.mxu0 0
      %2989 = vmatpush2.bf16.msra.mxu0 0
      %2990 = vmatprep.subr.bf16.mxu0 0
      %2991 = vmatpush2.bf16.msra.mxu0 0
      %2992 = vmatprep.subr.bf16.mxu0 0
      %2993 = vmatpush2.bf16.msra.mxu0 0
      %2994 = vmatprep.subr.bf16.mxu0 0
      %2995 = vmatpush2.bf16.msra.mxu0 0
      %2996 = vmatprep.subr.bf16.mxu0 0
      %2997 = vmatpush2.bf16.msra.mxu0 0
      %2998 = vmatprep.subr.bf16.mxu0 0
      %2999 = vmatpush2.bf16.msra.mxu0 0
      %3000 = vmatprep.subr.bf16.mxu0 0
      %3001 = vmatpush2.bf16.msra.mxu0 0
      %3002 = vmatprep.subr.bf16.mxu0 0
      %3003 = vmatpush2.bf16.msra.mxu0 0
      %3004 = vmatprep.mubr.bf16.mxu0 0
      %3005 = vmatmul.mubr.bf16.gmra.mxu0 %v1905
      %v3006 = vpop.f32.mrf.mxu0
      %v3007 = vadd.f32 0.0, %v3006
      %v3008 = vpop.f32.mrf.mxu0
      %v3009 = vpop.f32.mrf.mxu0
      %v3010 = vadd.f32 0.0, %v3009
      %v3011 = vpop.f32.mrf.mxu0
      %3012 = vmatprep.mubr.bf16.mxu0 0
      %3013 = vmatmul.mubr.bf16.gmra.mxu0 %v1906
      %v3014 = vpop.f32.mrf.mxu0
      %v3015 = vadd.f32 0.0, %v3014
      %v3016 = vpop.f32.mrf.mxu0
      %v3017 = vpop.f32.mrf.mxu0
      %v3018 = vadd.f32 0.0, %v3017
      %v3019 = vpop.f32.mrf.mxu0
      %3020 = vmatprep.mubr.bf16.mxu0 0
      %3021 = vmatmul.mubr.bf16.gmra.mxu0 %v1907
      %v3022 = vpop.f32.mrf.mxu0
      %v3023 = vadd.f32 0.0, %v3022
      %v3024 = vpop.f32.mrf.mxu0
      %v3025 = vpop.f32.mrf.mxu0
      %v3026 = vadd.f32 0.0, %v3025
      %v3027 = vpop.f32.mrf.mxu0
      %3028 = vmatprep.mubr.bf16.mxu0 0
      %3029 = vmatmul.mubr.bf16.gmra.mxu0 %v1908
      %v3030 = vpop.f32.mrf.mxu0
      %v3031 = vadd.f32 0.0, %v3030
      %v3032 = vpop.f32.mrf.mxu0
      %v3033 = vpop.f32.mrf.mxu0
      %v3034 = vadd.f32 0.0, %v3033
      %v3035 = vpop.f32.mrf.mxu0
      %3036 = vmatprep.mubr.bf16.mxu0 0
      %3037 = vmatmul.mubr.bf16.gmra.mxu0 %v1909
      %v3038 = vpop.f32.mrf.mxu0
      %v3039 = vadd.f32 0.0, %v3038
      %v3040 = vpop.f32.mrf.mxu0
      %v3041 = vpop.f32.mrf.mxu0
      %v3042 = vadd.f32 0.0, %v3041
      %v3043 = vpop.f32.mrf.mxu0
      %3044 = vmatprep.mubr.bf16.mxu0 0
      %3045 = vmatmul.mubr.bf16.gmra.mxu0 %v1910
      %v3046 = vpop.f32.mrf.mxu0
      %v3047 = vadd.f32 0.0, %v3046
      %v3048 = vpop.f32.mrf.mxu0
      %v3049 = vpop.f32.mrf.mxu0
      %v3050 = vadd.f32 0.0, %v3049
      %v3051 = vpop.f32.mrf.mxu0
      %3052 = vmatprep.mubr.bf16.mxu0 0
      %3053 = vmatmul.mubr.bf16.gmra.mxu0 %v1911
      %v3054 = vpop.f32.mrf.mxu0
      %v3055 = vadd.f32 0.0, %v3054
      %v3056 = vpop.f32.mrf.mxu0
      %v3057 = vpop.f32.mrf.mxu0
      %v3058 = vadd.f32 0.0, %v3057
      %v3059 = vpop.f32.mrf.mxu0
      %3060 = vmatprep.mubr.bf16.mxu0 0
      %3061 = vmatmul.mubr.bf16.gmra.mxu0 %v1912
      %v3062 = vpop.f32.mrf.mxu0
      %v3063 = vadd.f32 0.0, %v3062
      %v3064 = vpop.f32.mrf.mxu0
      %v3065 = vpop.f32.mrf.mxu0
      %v3066 = vadd.f32 0.0, %v3065
      %v3067 = vpop.f32.mrf.mxu0
      %3068 = vmatprep.mubr.bf16.mxu0 0
      %3069 = vmatmul.mubr.bf16.gmra.mxu0 %v1913
      %v3070 = vpop.f32.mrf.mxu0
      %v3071 = vadd.f32 0.0, %v3070
      %v3072 = vpop.f32.mrf.mxu0
      %v3073 = vpop.f32.mrf.mxu0
      %v3074 = vadd.f32 0.0, %v3073
      %v3075 = vpop.f32.mrf.mxu0
      %3076 = vmatprep.mubr.bf16.mxu0 0
      %3077 = vmatmul.mubr.bf16.gmra.mxu0 %v1914
      %v3078 = vpop.f32.mrf.mxu0
      %v3079 = vadd.f32 0.0, %v3078
      %v3080 = vpop.f32.mrf.mxu0
      %v3081 = vpop.f32.mrf.mxu0
      %v3082 = vadd.f32 0.0, %v3081
      %v3083 = vpop.f32.mrf.mxu0
      %3084 = vmatprep.mubr.bf16.mxu0 0
      %3085 = vmatmul.mubr.bf16.gmra.mxu0 %v1915
      %v3086 = vpop.f32.mrf.mxu0
      %v3087 = vadd.f32 0.0, %v3086
      %v3088 = vpop.f32.mrf.mxu0
      %v3089 = vpop.f32.mrf.mxu0
      %v3090 = vadd.f32 0.0, %v3089
      %v3091 = vpop.f32.mrf.mxu0
      %3092 = vmatprep.mubr.bf16.mxu0 0
      %3093 = vmatmul.mubr.bf16.gmra.mxu0 %v1916
      %v3094 = vpop.f32.mrf.mxu0
      %v3095 = vadd.f32 0.0, %v3094
      %v3096 = vpop.f32.mrf.mxu0
      %v3097 = vpop.f32.mrf.mxu0
      %v3098 = vadd.f32 0.0, %v3097
      %v3099 = vpop.f32.mrf.mxu0
      %3100 = vmatprep.mubr.bf16.mxu0 0
      %3101 = vmatmul.mubr.bf16.gmra.mxu0 %v1917
      %v3102 = vpop.f32.mrf.mxu0
      %v3103 = vadd.f32 0.0, %v3102
      %v3104 = vpop.f32.mrf.mxu0
      %v3105 = vpop.f32.mrf.mxu0
      %v3106 = vadd.f32 0.0, %v3105
      %v3107 = vpop.f32.mrf.mxu0
      %3108 = vmatprep.mubr.bf16.mxu0 0
      %3109 = vmatmul.mubr.bf16.gmra.mxu0 %v1918
      %v3110 = vpop.f32.mrf.mxu0
      %v3111 = vadd.f32 0.0, %v3110
      %v3112 = vpop.f32.mrf.mxu0
      %v3113 = vpop.f32.mrf.mxu0
      %v3114 = vadd.f32 0.0, %v3113
      %v3115 = vpop.f32.mrf.mxu0
      %3116 = vmatprep.mubr.bf16.mxu0 0
      %3117 = vmatmul.mubr.bf16.gmra.mxu0 %v1919
      %v3118 = vpop.f32.mrf.mxu0
      %v3119 = vadd.f32 0.0, %v3118
      %v3120 = vpop.f32.mrf.mxu0
      %v3121 = vpop.f32.mrf.mxu0
      %v3122 = vadd.f32 0.0, %v3121
      %v3123 = vpop.f32.mrf.mxu0
      %3124 = vmatprep.mubr.bf16.mxu0 0
      %3125 = vmatmul.mubr.bf16.gmra.mxu0 %v1920
      %v3126 = vpop.f32.mrf.mxu0
      %v3127 = vadd.f32 0.0, %v3126
      %v3128 = vpop.f32.mrf.mxu0
      %v3129 = vpop.f32.mrf.mxu0
      %v3130 = vadd.f32 0.0, %v3129
      %v3131 = vpop.f32.mrf.mxu0
      %3132 = vdwg.mxu0
      %v3133 = vadd.f32 %v2875, %v3007
      %v3134 = vadd.f32 %v2876, %v3010
      %v3135 = vadd.f32 %v2877, %v3015
      %v3136 = vadd.f32 %v2878, %v3018
      %v3137 = vadd.f32 %v2879, %v3023
      %v3138 = vadd.f32 %v2880, %v3026
      %v3139 = vadd.f32 %v2881, %v3031
      %v3140 = vadd.f32 %v2882, %v3034
      %v3141 = vadd.f32 %v2883, %v3039
      %v3142 = vadd.f32 %v2884, %v3042
      %v3143 = vadd.f32 %v2885, %v3047
      %v3144 = vadd.f32 %v2886, %v3050
      %v3145 = vadd.f32 %v2887, %v3055
      %v3146 = vadd.f32 %v2888, %v3058
      %v3147 = vadd.f32 %v2889, %v3063
      %v3148 = vadd.f32 %v2890, %v3066
      %v3149 = vadd.f32 %v2891, %v3071
      %v3150 = vadd.f32 %v2892, %v3074
      %v3151 = vadd.f32 %v2893, %v3079
      %v3152 = vadd.f32 %v2894, %v3082
      %v3153 = vadd.f32 %v2895, %v3087
      %v3154 = vadd.f32 %v2896, %v3090
      %v3155 = vadd.f32 %v2897, %v3095
      %v3156 = vadd.f32 %v2898, %v3098
      %v3157 = vadd.f32 %v2899, %v3103
      %v3158 = vadd.f32 %v2900, %v3106
      %v3159 = vadd.f32 %v2901, %v3111
      %v3160 = vadd.f32 %v2902, %v3114
      %v3161 = vadd.f32 %v2903, %v3119
      %v3162 = vadd.f32 %v2904, %v3122
      %v3163 = vadd.f32 %v2905, %v3127
      %v3164 = vadd.f32 %v2906, %v3130
      %s3165 = scalar_lea.vmem %s3, 320
      %v3166 = vld [vmem:[%s3165] sm:$0xf]
      %v3167 = vld [vmem:[%s3165 + $0x4] sm:$0xf]
      %v3168 = vld [vmem:[%s3165 + $0x8] sm:$0xf]
      %v3169 = vld [vmem:[%s3165 + $0xc] sm:$0xf]
      %v3170 = vld [vmem:[%s3165 + $0x10] sm:$0xf]
      %v3171 = vld [vmem:[%s3165 + $0x14] sm:$0xf]
      %v3172 = vld [vmem:[%s3165 + $0x18] sm:$0xf]
      %v3173 = vld [vmem:[%s3165 + $0x1c] sm:$0xf]
      %v3174 = vld [vmem:[%s3165 + $0x20] sm:$0xf]
      %v3175 = vld [vmem:[%s3165 + $0x24] sm:$0xf]
      %v3176 = vld [vmem:[%s3165 + $0x28] sm:$0xf]
      %v3177 = vld [vmem:[%s3165 + $0x2c] sm:$0xf]
      %v3178 = vld [vmem:[%s3165 + $0x30] sm:$0xf]
      %v3179 = vld [vmem:[%s3165 + $0x34] sm:$0xf]
      %v3180 = vld [vmem:[%s3165 + $0x38] sm:$0xf]
      %v3181 = vld [vmem:[%s3165 + $0x3c] sm:$0xf]
      %v3198 = vunpack.c.l.b16 %v3166
      %v3199 = vunpack.c.l.b16 %v3167
      %v3200 = vunpack.c.l.b16 %v3168
      %v3201 = vunpack.c.l.b16 %v3169
      %v3202 = vunpack.c.l.b16 %v3170
      %v3203 = vunpack.c.l.b16 %v3171
      %v3204 = vunpack.c.l.b16 %v3172
      %v3205 = vunpack.c.l.b16 %v3173
      %v3206 = vunpack.c.l.b16 %v3174
      %v3207 = vunpack.c.l.b16 %v3175
      %v3208 = vunpack.c.l.b16 %v3176
      %v3209 = vunpack.c.l.b16 %v3177
      %v3210 = vunpack.c.l.b16 %v3178
      %v3211 = vunpack.c.l.b16 %v3179
      %v3212 = vunpack.c.l.b16 %v3180
      %v3213 = vunpack.c.l.b16 %v3181
      %v3214 = vpack.c.b16 %v3199, %v3198
      %v3215 = vpack.c.b16 %v3201, %v3200
      %v3216 = vpack.c.b16 %v3203, %v3202
      %v3217 = vpack.c.b16 %v3205, %v3204
      %v3218 = vpack.c.b16 %v3207, %v3206
      %v3219 = vpack.c.b16 %v3209, %v3208
      %v3220 = vpack.c.b16 %v3211, %v3210
      %v3221 = vpack.c.b16 %v3213, %v3212
      %3230 = vmatprep.subr.bf16.mxu0 0
      %3231 = vmatpush1.bf16.msra.mxu0 %v3221
      %3232 = vmatprep.subr.bf16.mxu0 0
      %3233 = vmatpush1.bf16.msra.mxu0 %v3220
      %3234 = vmatprep.subr.bf16.mxu0 0
      %3235 = vmatpush1.bf16.msra.mxu0 %v3219
      %3236 = vmatprep.subr.bf16.mxu0 0
      %3237 = vmatpush1.bf16.msra.mxu0 %v3218
      %3238 = vmatprep.subr.bf16.mxu0 0
      %3239 = vmatpush1.bf16.msra.mxu0 %v3217
      %3240 = vmatprep.subr.bf16.mxu0 0
      %3241 = vmatpush1.bf16.msra.mxu0 %v3216
      %3242 = vmatprep.subr.bf16.mxu0 0
      %3243 = vmatpush1.bf16.msra.mxu0 %v3215
      %3244 = vmatprep.subr.bf16.mxu0 0
      %3245 = vmatpush1.bf16.msra.mxu0 %v3214
      %3246 = vmatprep.subr.bf16.mxu0 0
      %3247 = vmatpush2.bf16.msra.mxu0 0
      %3248 = vmatprep.subr.bf16.mxu0 0
      %3249 = vmatpush2.bf16.msra.mxu0 0
      %3250 = vmatprep.subr.bf16.mxu0 0
      %3251 = vmatpush2.bf16.msra.mxu0 0
      %3252 = vmatprep.subr.bf16.mxu0 0
      %3253 = vmatpush2.bf16.msra.mxu0 0
      %3254 = vmatprep.subr.bf16.mxu0 0
      %3255 = vmatpush2.bf16.msra.mxu0 0
      %3256 = vmatprep.subr.bf16.mxu0 0
      %3257 = vmatpush2.bf16.msra.mxu0 0
      %3258 = vmatprep.subr.bf16.mxu0 0
      %3259 = vmatpush2.bf16.msra.mxu0 0
      %3260 = vmatprep.subr.bf16.mxu0 0
      %3261 = vmatpush2.bf16.msra.mxu0 0
      %3262 = vmatprep.mubr.bf16.mxu0 0
      %3263 = vmatmul.mubr.bf16.gmra.mxu0 %v1923
      %v3264 = vpop.f32.mrf.mxu0
      %v3265 = vadd.f32 0.0, %v3264
      %v3266 = vpop.f32.mrf.mxu0
      %v3267 = vpop.f32.mrf.mxu0
      %v3268 = vadd.f32 0.0, %v3267
      %v3269 = vpop.f32.mrf.mxu0
      %3270 = vmatprep.mubr.bf16.mxu0 0
      %3271 = vmatmul.mubr.bf16.gmra.mxu0 %v1924
      %v3272 = vpop.f32.mrf.mxu0
      %v3273 = vadd.f32 0.0, %v3272
      %v3274 = vpop.f32.mrf.mxu0
      %v3275 = vpop.f32.mrf.mxu0
      %v3276 = vadd.f32 0.0, %v3275
      %v3277 = vpop.f32.mrf.mxu0
      %3278 = vmatprep.mubr.bf16.mxu0 0
      %3279 = vmatmul.mubr.bf16.gmra.mxu0 %v1925
      %v3280 = vpop.f32.mrf.mxu0
      %v3281 = vadd.f32 0.0, %v3280
      %v3282 = vpop.f32.mrf.mxu0
      %v3283 = vpop.f32.mrf.mxu0
      %v3284 = vadd.f32 0.0, %v3283
      %v3285 = vpop.f32.mrf.mxu0
      %3286 = vmatprep.mubr.bf16.mxu0 0
      %3287 = vmatmul.mubr.bf16.gmra.mxu0 %v1926
      %v3288 = vpop.f32.mrf.mxu0
      %v3289 = vadd.f32 0.0, %v3288
      %v3290 = vpop.f32.mrf.mxu0
      %v3291 = vpop.f32.mrf.mxu0
      %v3292 = vadd.f32 0.0, %v3291
      %v3293 = vpop.f32.mrf.mxu0
      %3294 = vmatprep.mubr.bf16.mxu0 0
      %3295 = vmatmul.mubr.bf16.gmra.mxu0 %v1927
      %v3296 = vpop.f32.mrf.mxu0
      %v3297 = vadd.f32 0.0, %v3296
      %v3298 = vpop.f32.mrf.mxu0
      %v3299 = vpop.f32.mrf.mxu0
      %v3300 = vadd.f32 0.0, %v3299
      %v3301 = vpop.f32.mrf.mxu0
      %3302 = vmatprep.mubr.bf16.mxu0 0
      %3303 = vmatmul.mubr.bf16.gmra.mxu0 %v1928
      %v3304 = vpop.f32.mrf.mxu0
      %v3305 = vadd.f32 0.0, %v3304
      %v3306 = vpop.f32.mrf.mxu0
      %v3307 = vpop.f32.mrf.mxu0
      %v3308 = vadd.f32 0.0, %v3307
      %v3309 = vpop.f32.mrf.mxu0
      %3310 = vmatprep.mubr.bf16.mxu0 0
      %3311 = vmatmul.mubr.bf16.gmra.mxu0 %v1929
      %v3312 = vpop.f32.mrf.mxu0
      %v3313 = vadd.f32 0.0, %v3312
      %v3314 = vpop.f32.mrf.mxu0
      %v3315 = vpop.f32.mrf.mxu0
      %v3316 = vadd.f32 0.0, %v3315
      %v3317 = vpop.f32.mrf.mxu0
      %3318 = vmatprep.mubr.bf16.mxu0 0
      %3319 = vmatmul.mubr.bf16.gmra.mxu0 %v1930
      %v3320 = vpop.f32.mrf.mxu0
      %v3321 = vadd.f32 0.0, %v3320
      %v3322 = vpop.f32.mrf.mxu0
      %v3323 = vpop.f32.mrf.mxu0
      %v3324 = vadd.f32 0.0, %v3323
      %v3325 = vpop.f32.mrf.mxu0
      %3326 = vmatprep.mubr.bf16.mxu0 0
      %3327 = vmatmul.mubr.bf16.gmra.mxu0 %v1931
      %v3328 = vpop.f32.mrf.mxu0
      %v3329 = vadd.f32 0.0, %v3328
      %v3330 = vpop.f32.mrf.mxu0
      %v3331 = vpop.f32.mrf.mxu0
      %v3332 = vadd.f32 0.0, %v3331
      %v3333 = vpop.f32.mrf.mxu0
      %3334 = vmatprep.mubr.bf16.mxu0 0
      %3335 = vmatmul.mubr.bf16.gmra.mxu0 %v1932
      %v3336 = vpop.f32.mrf.mxu0
      %v3337 = vadd.f32 0.0, %v3336
      %v3338 = vpop.f32.mrf.mxu0
      %v3339 = vpop.f32.mrf.mxu0
      %v3340 = vadd.f32 0.0, %v3339
      %v3341 = vpop.f32.mrf.mxu0
      %3342 = vmatprep.mubr.bf16.mxu0 0
      %3343 = vmatmul.mubr.bf16.gmra.mxu0 %v1933
      %v3344 = vpop.f32.mrf.mxu0
      %v3345 = vadd.f32 0.0, %v3344
      %v3346 = vpop.f32.mrf.mxu0
      %v3347 = vpop.f32.mrf.mxu0
      %v3348 = vadd.f32 0.0, %v3347
      %v3349 = vpop.f32.mrf.mxu0
      %3350 = vmatprep.mubr.bf16.mxu0 0
      %3351 = vmatmul.mubr.bf16.gmra.mxu0 %v1934
      %v3352 = vpop.f32.mrf.mxu0
      %v3353 = vadd.f32 0.0, %v3352
      %v3354 = vpop.f32.mrf.mxu0
      %v3355 = vpop.f32.mrf.mxu0
      %v3356 = vadd.f32 0.0, %v3355
      %v3357 = vpop.f32.mrf.mxu0
      %3358 = vmatprep.mubr.bf16.mxu0 0
      %3359 = vmatmul.mubr.bf16.gmra.mxu0 %v1935
      %v3360 = vpop.f32.mrf.mxu0
      %v3361 = vadd.f32 0.0, %v3360
      %v3362 = vpop.f32.mrf.mxu0
      %v3363 = vpop.f32.mrf.mxu0
      %v3364 = vadd.f32 0.0, %v3363
      %v3365 = vpop.f32.mrf.mxu0
      %3366 = vmatprep.mubr.bf16.mxu0 0
      %3367 = vmatmul.mubr.bf16.gmra.mxu0 %v1936
      %v3368 = vpop.f32.mrf.mxu0
      %v3369 = vadd.f32 0.0, %v3368
      %v3370 = vpop.f32.mrf.mxu0
      %v3371 = vpop.f32.mrf.mxu0
      %v3372 = vadd.f32 0.0, %v3371
      %v3373 = vpop.f32.mrf.mxu0
      %3374 = vmatprep.mubr.bf16.mxu0 0
      %3375 = vmatmul.mubr.bf16.gmra.mxu0 %v1937
      %v3376 = vpop.f32.mrf.mxu0
      %v3377 = vadd.f32 0.0, %v3376
      %v3378 = vpop.f32.mrf.mxu0
      %v3379 = vpop.f32.mrf.mxu0
      %v3380 = vadd.f32 0.0, %v3379
      %v3381 = vpop.f32.mrf.mxu0
      %3382 = vmatprep.mubr.bf16.mxu0 0
      %3383 = vmatmul.mubr.bf16.gmra.mxu0 %v1938
      %v3384 = vpop.f32.mrf.mxu0
      %v3385 = vadd.f32 0.0, %v3384
      %v3386 = vpop.f32.mrf.mxu0
      %v3387 = vpop.f32.mrf.mxu0
      %v3388 = vadd.f32 0.0, %v3387
      %v3389 = vpop.f32.mrf.mxu0
      %3390 = vdwg.mxu0
      %v3391 = vadd.f32 %v3133, %v3265
      %v3392 = vadd.f32 %v3134, %v3268
      %v3393 = vadd.f32 %v3135, %v3273
      %v3394 = vadd.f32 %v3136, %v3276
      %v3395 = vadd.f32 %v3137, %v3281
      %v3396 = vadd.f32 %v3138, %v3284
      %v3397 = vadd.f32 %v3139, %v3289
      %v3398 = vadd.f32 %v3140, %v3292
      %v3399 = vadd.f32 %v3141, %v3297
      %v3400 = vadd.f32 %v3142, %v3300
      %v3401 = vadd.f32 %v3143, %v3305
      %v3402 = vadd.f32 %v3144, %v3308
      %v3403 = vadd.f32 %v3145, %v3313
      %v3404 = vadd.f32 %v3146, %v3316
      %v3405 = vadd.f32 %v3147, %v3321
      %v3406 = vadd.f32 %v3148, %v3324
      %v3407 = vadd.f32 %v3149, %v3329
      %v3408 = vadd.f32 %v3150, %v3332
      %v3409 = vadd.f32 %v3151, %v3337
      %v3410 = vadd.f32 %v3152, %v3340
      %v3411 = vadd.f32 %v3153, %v3345
      %v3412 = vadd.f32 %v3154, %v3348
      %v3413 = vadd.f32 %v3155, %v3353
      %v3414 = vadd.f32 %v3156, %v3356
      %v3415 = vadd.f32 %v3157, %v3361
      %v3416 = vadd.f32 %v3158, %v3364
      %v3417 = vadd.f32 %v3159, %v3369
      %v3418 = vadd.f32 %v3160, %v3372
      %v3419 = vadd.f32 %v3161, %v3377
      %v3420 = vadd.f32 %v3162, %v3380
      %v3421 = vadd.f32 %v3163, %v3385
      %v3422 = vadd.f32 %v3164, %v3388
      %s3423 = scalar_lea.vmem %s3, 384
      %v3424 = vld [vmem:[%s3423] sm:$0xf]
      %v3425 = vld [vmem:[%s3423 + $0x4] sm:$0xf]
      %v3426 = vld [vmem:[%s3423 + $0x8] sm:$0xf]
      %v3427 = vld [vmem:[%s3423 + $0xc] sm:$0xf]
      %v3428 = vld [vmem:[%s3423 + $0x10] sm:$0xf]
      %v3429 = vld [vmem:[%s3423 + $0x14] sm:$0xf]
      %v3430 = vld [vmem:[%s3423 + $0x18] sm:$0xf]
      %v3431 = vld [vmem:[%s3423 + $0x1c] sm:$0xf]
      %v3432 = vld [vmem:[%s3423 + $0x20] sm:$0xf]
      %v3433 = vld [vmem:[%s3423 + $0x24] sm:$0xf]
      %v3434 = vld [vmem:[%s3423 + $0x28] sm:$0xf]
      %v3435 = vld [vmem:[%s3423 + $0x2c] sm:$0xf]
      %v3436 = vld [vmem:[%s3423 + $0x30] sm:$0xf]
      %v3437 = vld [vmem:[%s3423 + $0x34] sm:$0xf]
      %v3438 = vld [vmem:[%s3423 + $0x38] sm:$0xf]
      %v3439 = vld [vmem:[%s3423 + $0x3c] sm:$0xf]
      %v3456 = vunpack.c.l.b16 %v3424
      %v3457 = vunpack.c.l.b16 %v3425
      %v3458 = vunpack.c.l.b16 %v3426
      %v3459 = vunpack.c.l.b16 %v3427
      %v3460 = vunpack.c.l.b16 %v3428
      %v3461 = vunpack.c.l.b16 %v3429
      %v3462 = vunpack.c.l.b16 %v3430
      %v3463 = vunpack.c.l.b16 %v3431
      %v3464 = vunpack.c.l.b16 %v3432
      %v3465 = vunpack.c.l.b16 %v3433
      %v3466 = vunpack.c.l.b16 %v3434
      %v3467 = vunpack.c.l.b16 %v3435
      %v3468 = vunpack.c.l.b16 %v3436
      %v3469 = vunpack.c.l.b16 %v3437
      %v3470 = vunpack.c.l.b16 %v3438
      %v3471 = vunpack.c.l.b16 %v3439
      %v3472 = vpack.c.b16 %v3457, %v3456
      %v3473 = vpack.c.b16 %v3459, %v3458
      %v3474 = vpack.c.b16 %v3461, %v3460
      %v3475 = vpack.c.b16 %v3463, %v3462
      %v3476 = vpack.c.b16 %v3465, %v3464
      %v3477 = vpack.c.b16 %v3467, %v3466
      %v3478 = vpack.c.b16 %v3469, %v3468
      %v3479 = vpack.c.b16 %v3471, %v3470
      %3488 = vmatprep.subr.bf16.mxu0 0
      %3489 = vmatpush1.bf16.msra.mxu0 %v3479
      %3490 = vmatprep.subr.bf16.mxu0 0
      %3491 = vmatpush1.bf16.msra.mxu0 %v3478
      %3492 = vmatprep.subr.bf16.mxu0 0
      %3493 = vmatpush1.bf16.msra.mxu0 %v3477
      %3494 = vmatprep.subr.bf16.mxu0 0
      %3495 = vmatpush1.bf16.msra.mxu0 %v3476
      %3496 = vmatprep.subr.bf16.mxu0 0
      %3497 = vmatpush1.bf16.msra.mxu0 %v3475
      %3498 = vmatprep.subr.bf16.mxu0 0
      %3499 = vmatpush1.bf16.msra.mxu0 %v3474
      %3500 = vmatprep.subr.bf16.mxu0 0
      %3501 = vmatpush1.bf16.msra.mxu0 %v3473
      %3502 = vmatprep.subr.bf16.mxu0 0
      %3503 = vmatpush1.bf16.msra.mxu0 %v3472
      %3504 = vmatprep.subr.bf16.mxu0 0
      %3505 = vmatpush2.bf16.msra.mxu0 0
      %3506 = vmatprep.subr.bf16.mxu0 0
      %3507 = vmatpush2.bf16.msra.mxu0 0
      %3508 = vmatprep.subr.bf16.mxu0 0
      %3509 = vmatpush2.bf16.msra.mxu0 0
      %3510 = vmatprep.subr.bf16.mxu0 0
      %3511 = vmatpush2.bf16.msra.mxu0 0
      %3512 = vmatprep.subr.bf16.mxu0 0
      %3513 = vmatpush2.bf16.msra.mxu0 0
      %3514 = vmatprep.subr.bf16.mxu0 0
      %3515 = vmatpush2.bf16.msra.mxu0 0
      %3516 = vmatprep.subr.bf16.mxu0 0
      %3517 = vmatpush2.bf16.msra.mxu0 0
      %3518 = vmatprep.subr.bf16.mxu0 0
      %3519 = vmatpush2.bf16.msra.mxu0 0
      %3520 = vmatprep.mubr.bf16.mxu0 0
      %3521 = vmatmul.mubr.bf16.gmra.mxu0 %v1888
      %v3522 = vpop.f32.mrf.mxu0
      %v3523 = vadd.f32 0.0, %v3522
      %v3524 = vpop.f32.mrf.mxu0
      %v3525 = vpop.f32.mrf.mxu0
      %v3526 = vadd.f32 0.0, %v3525
      %v3527 = vpop.f32.mrf.mxu0
      %3528 = vmatprep.mubr.bf16.mxu0 0
      %3529 = vmatmul.mubr.bf16.gmra.mxu0 %v1889
      %v3530 = vpop.f32.mrf.mxu0
      %v3531 = vadd.f32 0.0, %v3530
      %v3532 = vpop.f32.mrf.mxu0
      %v3533 = vpop.f32.mrf.mxu0
      %v3534 = vadd.f32 0.0, %v3533
      %v3535 = vpop.f32.mrf.mxu0
      %3536 = vmatprep.mubr.bf16.mxu0 0
      %3537 = vmatmul.mubr.bf16.gmra.mxu0 %v1890
      %v3538 = vpop.f32.mrf.mxu0
      %v3539 = vadd.f32 0.0, %v3538
      %v3540 = vpop.f32.mrf.mxu0
      %v3541 = vpop.f32.mrf.mxu0
      %v3542 = vadd.f32 0.0, %v3541
      %v3543 = vpop.f32.mrf.mxu0
      %3544 = vmatprep.mubr.bf16.mxu0 0
      %3545 = vmatmul.mubr.bf16.gmra.mxu0 %v1891
      %v3546 = vpop.f32.mrf.mxu0
      %v3547 = vadd.f32 0.0, %v3546
      %v3548 = vpop.f32.mrf.mxu0
      %v3549 = vpop.f32.mrf.mxu0
      %v3550 = vadd.f32 0.0, %v3549
      %v3551 = vpop.f32.mrf.mxu0
      %3552 = vmatprep.mubr.bf16.mxu0 0
      %3553 = vmatmul.mubr.bf16.gmra.mxu0 %v1892
      %v3554 = vpop.f32.mrf.mxu0
      %v3555 = vadd.f32 0.0, %v3554
      %v3556 = vpop.f32.mrf.mxu0
      %v3557 = vpop.f32.mrf.mxu0
      %v3558 = vadd.f32 0.0, %v3557
      %v3559 = vpop.f32.mrf.mxu0
      %3560 = vmatprep.mubr.bf16.mxu0 0
      %3561 = vmatmul.mubr.bf16.gmra.mxu0 %v1893
      %v3562 = vpop.f32.mrf.mxu0
      %v3563 = vadd.f32 0.0, %v3562
      %v3564 = vpop.f32.mrf.mxu0
      %v3565 = vpop.f32.mrf.mxu0
      %v3566 = vadd.f32 0.0, %v3565
      %v3567 = vpop.f32.mrf.mxu0
      %3568 = vmatprep.mubr.bf16.mxu0 0
      %3569 = vmatmul.mubr.bf16.gmra.mxu0 %v1894
      %v3570 = vpop.f32.mrf.mxu0
      %v3571 = vadd.f32 0.0, %v3570
      %v3572 = vpop.f32.mrf.mxu0
      %v3573 = vpop.f32.mrf.mxu0
      %v3574 = vadd.f32 0.0, %v3573
      %v3575 = vpop.f32.mrf.mxu0
      %3576 = vmatprep.mubr.bf16.mxu0 0
      %3577 = vmatmul.mubr.bf16.gmra.mxu0 %v1895
      %v3578 = vpop.f32.mrf.mxu0
      %v3579 = vadd.f32 0.0, %v3578
      %v3580 = vpop.f32.mrf.mxu0
      %v3581 = vpop.f32.mrf.mxu0
      %v3582 = vadd.f32 0.0, %v3581
      %v3583 = vpop.f32.mrf.mxu0
      %3584 = vmatprep.mubr.bf16.mxu0 0
      %3585 = vmatmul.mubr.bf16.gmra.mxu0 %v1896
      %v3586 = vpop.f32.mrf.mxu0
      %v3587 = vadd.f32 0.0, %v3586
      %v3588 = vpop.f32.mrf.mxu0
      %v3589 = vpop.f32.mrf.mxu0
      %v3590 = vadd.f32 0.0, %v3589
      %v3591 = vpop.f32.mrf.mxu0
      %3592 = vmatprep.mubr.bf16.mxu0 0
      %3593 = vmatmul.mubr.bf16.gmra.mxu0 %v1897
      %v3594 = vpop.f32.mrf.mxu0
      %v3595 = vadd.f32 0.0, %v3594
      %v3596 = vpop.f32.mrf.mxu0
      %v3597 = vpop.f32.mrf.mxu0
      %v3598 = vadd.f32 0.0, %v3597
      %v3599 = vpop.f32.mrf.mxu0
      %3600 = vmatprep.mubr.bf16.mxu0 0
      %3601 = vmatmul.mubr.bf16.gmra.mxu0 %v1898
      %v3602 = vpop.f32.mrf.mxu0
      %v3603 = vadd.f32 0.0, %v3602
      %v3604 = vpop.f32.mrf.mxu0
      %v3605 = vpop.f32.mrf.mxu0
      %v3606 = vadd.f32 0.0, %v3605
      %v3607 = vpop.f32.mrf.mxu0
      %3608 = vmatprep.mubr.bf16.mxu0 0
      %3609 = vmatmul.mubr.bf16.gmra.mxu0 %v1899
      %v3610 = vpop.f32.mrf.mxu0
      %v3611 = vadd.f32 0.0, %v3610
      %v3612 = vpop.f32.mrf.mxu0
      %v3613 = vpop.f32.mrf.mxu0
      %v3614 = vadd.f32 0.0, %v3613
      %v3615 = vpop.f32.mrf.mxu0
      %3616 = vmatprep.mubr.bf16.mxu0 0
      %3617 = vmatmul.mubr.bf16.gmra.mxu0 %v1900
      %v3618 = vpop.f32.mrf.mxu0
      %v3619 = vadd.f32 0.0, %v3618
      %v3620 = vpop.f32.mrf.mxu0
      %v3621 = vpop.f32.mrf.mxu0
      %v3622 = vadd.f32 0.0, %v3621
      %v3623 = vpop.f32.mrf.mxu0
      %3624 = vmatprep.mubr.bf16.mxu0 0
      %3625 = vmatmul.mubr.bf16.gmra.mxu0 %v1901
      %v3626 = vpop.f32.mrf.mxu0
      %v3627 = vadd.f32 0.0, %v3626
      %v3628 = vpop.f32.mrf.mxu0
      %v3629 = vpop.f32.mrf.mxu0
      %v3630 = vadd.f32 0.0, %v3629
      %v3631 = vpop.f32.mrf.mxu0
      %3632 = vmatprep.mubr.bf16.mxu0 0
      %3633 = vmatmul.mubr.bf16.gmra.mxu0 %v1902
      %v3634 = vpop.f32.mrf.mxu0
      %v3635 = vadd.f32 0.0, %v3634
      %v3636 = vpop.f32.mrf.mxu0
      %v3637 = vpop.f32.mrf.mxu0
      %v3638 = vadd.f32 0.0, %v3637
      %v3639 = vpop.f32.mrf.mxu0
      %3640 = vmatprep.mubr.bf16.mxu0 0
      %3641 = vmatmul.mubr.bf16.gmra.mxu0 %v1903
      %v3642 = vpop.f32.mrf.mxu0
      %v3643 = vadd.f32 0.0, %v3642
      %v3644 = vpop.f32.mrf.mxu0
      %v3645 = vpop.f32.mrf.mxu0
      %v3646 = vadd.f32 0.0, %v3645
      %v3647 = vpop.f32.mrf.mxu0
      %3648 = vdwg.mxu0
      %v3649 = vadd.f32 %v3391, %v3523
      %v3650 = vadd.f32 %v3392, %v3526
      %v3651 = vadd.f32 %v3393, %v3531
      %v3652 = vadd.f32 %v3394, %v3534
      %v3653 = vadd.f32 %v3395, %v3539
      %v3654 = vadd.f32 %v3396, %v3542
      %v3655 = vadd.f32 %v3397, %v3547
      %v3656 = vadd.f32 %v3398, %v3550
      %v3657 = vadd.f32 %v3399, %v3555
      %v3658 = vadd.f32 %v3400, %v3558
      %v3659 = vadd.f32 %v3401, %v3563
      %v3660 = vadd.f32 %v3402, %v3566
      %v3661 = vadd.f32 %v3403, %v3571
      %v3662 = vadd.f32 %v3404, %v3574
      %v3663 = vadd.f32 %v3405, %v3579
      %v3664 = vadd.f32 %v3406, %v3582
      %v3665 = vadd.f32 %v3407, %v3587
      %v3666 = vadd.f32 %v3408, %v3590
      %v3667 = vadd.f32 %v3409, %v3595
      %v3668 = vadd.f32 %v3410, %v3598
      %v3669 = vadd.f32 %v3411, %v3603
      %v3670 = vadd.f32 %v3412, %v3606
      %v3671 = vadd.f32 %v3413, %v3611
      %v3672 = vadd.f32 %v3414, %v3614
      %v3673 = vadd.f32 %v3415, %v3619
      %v3674 = vadd.f32 %v3416, %v3622
      %v3675 = vadd.f32 %v3417, %v3627
      %v3676 = vadd.f32 %v3418, %v3630
      %v3677 = vadd.f32 %v3419, %v3635
      %v3678 = vadd.f32 %v3420, %v3638
      %v3679 = vadd.f32 %v3421, %v3643
      %v3680 = vadd.f32 %v3422, %v3646
      %s3681 = scalar_lea.vmem %s3, 448
      %v3682 = vld [vmem:[%s3681] sm:$0xf]
      %v3683 = vld [vmem:[%s3681 + $0x4] sm:$0xf]
      %v3684 = vld [vmem:[%s3681 + $0x8] sm:$0xf]
      %v3685 = vld [vmem:[%s3681 + $0xc] sm:$0xf]
      %v3686 = vld [vmem:[%s3681 + $0x10] sm:$0xf]
      %v3687 = vld [vmem:[%s3681 + $0x14] sm:$0xf]
      %v3688 = vld [vmem:[%s3681 + $0x18] sm:$0xf]
      %v3689 = vld [vmem:[%s3681 + $0x1c] sm:$0xf]
      %v3690 = vld [vmem:[%s3681 + $0x20] sm:$0xf]
      %v3691 = vld [vmem:[%s3681 + $0x24] sm:$0xf]
      %v3692 = vld [vmem:[%s3681 + $0x28] sm:$0xf]
      %v3693 = vld [vmem:[%s3681 + $0x2c] sm:$0xf]
      %v3694 = vld [vmem:[%s3681 + $0x30] sm:$0xf]
      %v3695 = vld [vmem:[%s3681 + $0x34] sm:$0xf]
      %v3696 = vld [vmem:[%s3681 + $0x38] sm:$0xf]
      %v3697 = vld [vmem:[%s3681 + $0x3c] sm:$0xf]
      %v3714 = vunpack.c.l.b16 %v3682
      %v3715 = vunpack.c.l.b16 %v3683
      %v3716 = vunpack.c.l.b16 %v3684
      %v3717 = vunpack.c.l.b16 %v3685
      %v3718 = vunpack.c.l.b16 %v3686
      %v3719 = vunpack.c.l.b16 %v3687
      %v3720 = vunpack.c.l.b16 %v3688
      %v3721 = vunpack.c.l.b16 %v3689
      %v3722 = vunpack.c.l.b16 %v3690
      %v3723 = vunpack.c.l.b16 %v3691
      %v3724 = vunpack.c.l.b16 %v3692
      %v3725 = vunpack.c.l.b16 %v3693
      %v3726 = vunpack.c.l.b16 %v3694
      %v3727 = vunpack.c.l.b16 %v3695
      %v3728 = vunpack.c.l.b16 %v3696
      %v3729 = vunpack.c.l.b16 %v3697
      %v3730 = vpack.c.b16 %v3715, %v3714
      %v3731 = vpack.c.b16 %v3717, %v3716
      %v3732 = vpack.c.b16 %v3719, %v3718
      %v3733 = vpack.c.b16 %v3721, %v3720
      %v3734 = vpack.c.b16 %v3723, %v3722
      %v3735 = vpack.c.b16 %v3725, %v3724
      %v3736 = vpack.c.b16 %v3727, %v3726
      %v3737 = vpack.c.b16 %v3729, %v3728
      %3746 = vmatprep.subr.bf16.mxu0 0
      %3747 = vmatpush1.bf16.msra.mxu0 %v3737
      %3748 = vmatprep.subr.bf16.mxu0 0
      %3749 = vmatpush1.bf16.msra.mxu0 %v3736
      %3750 = vmatprep.subr.bf16.mxu0 0
      %3751 = vmatpush1.bf16.msra.mxu0 %v3735
      %3752 = vmatprep.subr.bf16.mxu0 0
      %3753 = vmatpush1.bf16.msra.mxu0 %v3734
      %3754 = vmatprep.subr.bf16.mxu0 0
      %3755 = vmatpush1.bf16.msra.mxu0 %v3733
      %3756 = vmatprep.subr.bf16.mxu0 0
      %3757 = vmatpush1.bf16.msra.mxu0 %v3732
      %3758 = vmatprep.subr.bf16.mxu0 0
      %3759 = vmatpush1.bf16.msra.mxu0 %v3731
      %3760 = vmatprep.subr.bf16.mxu0 0
      %3761 = vmatpush1.bf16.msra.mxu0 %v3730
      %3762 = vmatprep.subr.bf16.mxu0 0
      %3763 = vmatpush2.bf16.msra.mxu0 0
      %3764 = vmatprep.subr.bf16.mxu0 0
      %3765 = vmatpush2.bf16.msra.mxu0 0
      %3766 = vmatprep.subr.bf16.mxu0 0
      %3767 = vmatpush2.bf16.msra.mxu0 0
      %3768 = vmatprep.subr.bf16.mxu0 0
      %3769 = vmatpush2.bf16.msra.mxu0 0
      %3770 = vmatprep.subr.bf16.mxu0 0
      %3771 = vmatpush2.bf16.msra.mxu0 0
      %3772 = vmatprep.subr.bf16.mxu0 0
      %3773 = vmatpush2.bf16.msra.mxu0 0
      %3774 = vmatprep.subr.bf16.mxu0 0
      %3775 = vmatpush2.bf16.msra.mxu0 0
      %3776 = vmatprep.subr.bf16.mxu0 0
      %3777 = vmatpush2.bf16.msra.mxu0 0
      %3778 = vmatprep.mubr.bf16.mxu0 0
      %3779 = vmatmul.mubr.bf16.gmra.mxu0 %v1906
      %v3780 = vpop.f32.mrf.mxu0
      %v3781 = vadd.f32 0.0, %v3780
      %v3782 = vpop.f32.mrf.mxu0
      %v3783 = vpop.f32.mrf.mxu0
      %v3784 = vadd.f32 0.0, %v3783
      %v3785 = vpop.f32.mrf.mxu0
      %3786 = vmatprep.mubr.bf16.mxu0 0
      %3787 = vmatmul.mubr.bf16.gmra.mxu0 %v1907
      %v3788 = vpop.f32.mrf.mxu0
      %v3789 = vadd.f32 0.0, %v3788
      %v3790 = vpop.f32.mrf.mxu0
      %v3791 = vpop.f32.mrf.mxu0
      %v3792 = vadd.f32 0.0, %v3791
      %v3793 = vpop.f32.mrf.mxu0
      %3794 = vmatprep.mubr.bf16.mxu0 0
      %3795 = vmatmul.mubr.bf16.gmra.mxu0 %v1908
      %v3796 = vpop.f32.mrf.mxu0
      %v3797 = vadd.f32 0.0, %v3796
      %v3798 = vpop.f32.mrf.mxu0
      %v3799 = vpop.f32.mrf.mxu0
      %v3800 = vadd.f32 0.0, %v3799
      %v3801 = vpop.f32.mrf.mxu0
      %3802 = vmatprep.mubr.bf16.mxu0 0
      %3803 = vmatmul.mubr.bf16.gmra.mxu0 %v1909
      %v3804 = vpop.f32.mrf.mxu0
      %v3805 = vadd.f32 0.0, %v3804
      %v3806 = vpop.f32.mrf.mxu0
      %v3807 = vpop.f32.mrf.mxu0
      %v3808 = vadd.f32 0.0, %v3807
      %v3809 = vpop.f32.mrf.mxu0
      %3810 = vmatprep.mubr.bf16.mxu0 0
      %3811 = vmatmul.mubr.bf16.gmra.mxu0 %v1910
      %v3812 = vpop.f32.mrf.mxu0
      %v3813 = vadd.f32 0.0, %v3812
      %v3814 = vpop.f32.mrf.mxu0
      %v3815 = vpop.f32.mrf.mxu0
      %v3816 = vadd.f32 0.0, %v3815
      %v3817 = vpop.f32.mrf.mxu0
      %3818 = vmatprep.mubr.bf16.mxu0 0
      %3819 = vmatmul.mubr.bf16.gmra.mxu0 %v1911
      %v3820 = vpop.f32.mrf.mxu0
      %v3821 = vadd.f32 0.0, %v3820
      %v3822 = vpop.f32.mrf.mxu0
      %v3823 = vpop.f32.mrf.mxu0
      %v3824 = vadd.f32 0.0, %v3823
      %v3825 = vpop.f32.mrf.mxu0
      %3826 = vmatprep.mubr.bf16.mxu0 0
      %3827 = vmatmul.mubr.bf16.gmra.mxu0 %v1912
      %v3828 = vpop.f32.mrf.mxu0
      %v3829 = vadd.f32 0.0, %v3828
      %v3830 = vpop.f32.mrf.mxu0
      %v3831 = vpop.f32.mrf.mxu0
      %v3832 = vadd.f32 0.0, %v3831
      %v3833 = vpop.f32.mrf.mxu0
      %3834 = vmatprep.mubr.bf16.mxu0 0
      %3835 = vmatmul.mubr.bf16.gmra.mxu0 %v1913
      %v3836 = vpop.f32.mrf.mxu0
      %v3837 = vadd.f32 0.0, %v3836
      %v3838 = vpop.f32.mrf.mxu0
      %v3839 = vpop.f32.mrf.mxu0
      %v3840 = vadd.f32 0.0, %v3839
      %v3841 = vpop.f32.mrf.mxu0
      %3842 = vmatprep.mubr.bf16.mxu0 0
      %3843 = vmatmul.mubr.bf16.gmra.mxu0 %v1914
      %v3844 = vpop.f32.mrf.mxu0
      %v3845 = vadd.f32 0.0, %v3844
      %v3846 = vpop.f32.mrf.mxu0
      %v3847 = vpop.f32.mrf.mxu0
      %v3848 = vadd.f32 0.0, %v3847
      %v3849 = vpop.f32.mrf.mxu0
      %3850 = vmatprep.mubr.bf16.mxu0 0
      %3851 = vmatmul.mubr.bf16.gmra.mxu0 %v1915
      %v3852 = vpop.f32.mrf.mxu0
      %v3853 = vadd.f32 0.0, %v3852
      %v3854 = vpop.f32.mrf.mxu0
      %v3855 = vpop.f32.mrf.mxu0
      %v3856 = vadd.f32 0.0, %v3855
      %v3857 = vpop.f32.mrf.mxu0
      %3858 = vmatprep.mubr.bf16.mxu0 0
      %3859 = vmatmul.mubr.bf16.gmra.mxu0 %v1916
      %v3860 = vpop.f32.mrf.mxu0
      %v3861 = vadd.f32 0.0, %v3860
      %v3862 = vpop.f32.mrf.mxu0
      %v3863 = vpop.f32.mrf.mxu0
      %v3864 = vadd.f32 0.0, %v3863
      %v3865 = vpop.f32.mrf.mxu0
      %3866 = vmatprep.mubr.bf16.mxu0 0
      %3867 = vmatmul.mubr.bf16.gmra.mxu0 %v1917
      %v3868 = vpop.f32.mrf.mxu0
      %v3869 = vadd.f32 0.0, %v3868
      %v3870 = vpop.f32.mrf.mxu0
      %v3871 = vpop.f32.mrf.mxu0
      %v3872 = vadd.f32 0.0, %v3871
      %v3873 = vpop.f32.mrf.mxu0
      %3874 = vmatprep.mubr.bf16.mxu0 0
      %3875 = vmatmul.mubr.bf16.gmra.mxu0 %v1918
      %v3876 = vpop.f32.mrf.mxu0
      %v3877 = vadd.f32 0.0, %v3876
      %v3878 = vpop.f32.mrf.mxu0
      %v3879 = vpop.f32.mrf.mxu0
      %v3880 = vadd.f32 0.0, %v3879
      %v3881 = vpop.f32.mrf.mxu0
      %3882 = vmatprep.mubr.bf16.mxu0 0
      %3883 = vmatmul.mubr.bf16.gmra.mxu0 %v1919
      %v3884 = vpop.f32.mrf.mxu0
      %v3885 = vadd.f32 0.0, %v3884
      %v3886 = vpop.f32.mrf.mxu0
      %v3887 = vpop.f32.mrf.mxu0
      %v3888 = vadd.f32 0.0, %v3887
      %v3889 = vpop.f32.mrf.mxu0
      %3890 = vmatprep.mubr.bf16.mxu0 0
      %3891 = vmatmul.mubr.bf16.gmra.mxu0 %v1920
      %v3892 = vpop.f32.mrf.mxu0
      %v3893 = vadd.f32 0.0, %v3892
      %v3894 = vpop.f32.mrf.mxu0
      %v3895 = vpop.f32.mrf.mxu0
      %v3896 = vadd.f32 0.0, %v3895
      %v3897 = vpop.f32.mrf.mxu0
      %3898 = vmatprep.mubr.bf16.mxu0 0
      %3899 = vmatmul.mubr.bf16.gmra.mxu0 %v1921
      %v3900 = vpop.f32.mrf.mxu0
      %v3901 = vadd.f32 0.0, %v3900
      %v3902 = vpop.f32.mrf.mxu0
      %v3903 = vpop.f32.mrf.mxu0
      %v3904 = vadd.f32 0.0, %v3903
      %v3905 = vpop.f32.mrf.mxu0
      %3906 = vdwg.mxu0
      %v3907 = vadd.f32 %v3649, %v3781
      %v3908 = vadd.f32 %v3650, %v3784
      %v3909 = vadd.f32 %v3651, %v3789
      %v3910 = vadd.f32 %v3652, %v3792
      %v3911 = vadd.f32 %v3653, %v3797
      %v3912 = vadd.f32 %v3654, %v3800
      %v3913 = vadd.f32 %v3655, %v3805
      %v3914 = vadd.f32 %v3656, %v3808
      %v3915 = vadd.f32 %v3657, %v3813
      %v3916 = vadd.f32 %v3658, %v3816
      %v3917 = vadd.f32 %v3659, %v3821
      %v3918 = vadd.f32 %v3660, %v3824
      %v3919 = vadd.f32 %v3661, %v3829
      %v3920 = vadd.f32 %v3662, %v3832
      %v3921 = vadd.f32 %v3663, %v3837
      %v3922 = vadd.f32 %v3664, %v3840
      %v3923 = vadd.f32 %v3665, %v3845
      %v3924 = vadd.f32 %v3666, %v3848
      %v3925 = vadd.f32 %v3667, %v3853
      %v3926 = vadd.f32 %v3668, %v3856
      %v3927 = vadd.f32 %v3669, %v3861
      %v3928 = vadd.f32 %v3670, %v3864
      %v3929 = vadd.f32 %v3671, %v3869
      %v3930 = vadd.f32 %v3672, %v3872
      %v3931 = vadd.f32 %v3673, %v3877
      %v3932 = vadd.f32 %v3674, %v3880
      %v3933 = vadd.f32 %v3675, %v3885
      %v3934 = vadd.f32 %v3676, %v3888
      %v3935 = vadd.f32 %v3677, %v3893
      %v3936 = vadd.f32 %v3678, %v3896
      %v3937 = vadd.f32 %v3679, %v3901
      %v3938 = vadd.f32 %v3680, %v3904
      %s3939 = scalar_lea.vmem %s3, 512
      %v3940 = vld [vmem:[%s3939] sm:$0xf]
      %v3941 = vld [vmem:[%s3939 + $0x4] sm:$0xf]
      %v3942 = vld [vmem:[%s3939 + $0x8] sm:$0xf]
      %v3943 = vld [vmem:[%s3939 + $0xc] sm:$0xf]
      %v3944 = vld [vmem:[%s3939 + $0x10] sm:$0xf]
      %v3945 = vld [vmem:[%s3939 + $0x14] sm:$0xf]
      %v3946 = vld [vmem:[%s3939 + $0x18] sm:$0xf]
      %v3947 = vld [vmem:[%s3939 + $0x1c] sm:$0xf]
      %v3948 = vld [vmem:[%s3939 + $0x20] sm:$0xf]
      %v3949 = vld [vmem:[%s3939 + $0x24] sm:$0xf]
      %v3950 = vld [vmem:[%s3939 + $0x28] sm:$0xf]
      %v3951 = vld [vmem:[%s3939 + $0x2c] sm:$0xf]
      %v3952 = vld [vmem:[%s3939 + $0x30] sm:$0xf]
      %v3953 = vld [vmem:[%s3939 + $0x34] sm:$0xf]
      %v3954 = vld [vmem:[%s3939 + $0x38] sm:$0xf]
      %v3955 = vld [vmem:[%s3939 + $0x3c] sm:$0xf]
      %v3972 = vunpack.c.l.b16 %v3940
      %v3973 = vunpack.c.l.b16 %v3941
      %v3974 = vunpack.c.l.b16 %v3942
      %v3975 = vunpack.c.l.b16 %v3943
      %v3976 = vunpack.c.l.b16 %v3944
      %v3977 = vunpack.c.l.b16 %v3945
      %v3978 = vunpack.c.l.b16 %v3946
      %v3979 = vunpack.c.l.b16 %v3947
      %v3980 = vunpack.c.l.b16 %v3948
      %v3981 = vunpack.c.l.b16 %v3949
      %v3982 = vunpack.c.l.b16 %v3950
      %v3983 = vunpack.c.l.b16 %v3951
      %v3984 = vunpack.c.l.b16 %v3952
      %v3985 = vunpack.c.l.b16 %v3953
      %v3986 = vunpack.c.l.b16 %v3954
      %v3987 = vunpack.c.l.b16 %v3955
      %v3988 = vpack.c.b16 %v3973, %v3972
      %v3989 = vpack.c.b16 %v3975, %v3974
      %v3990 = vpack.c.b16 %v3977, %v3976
      %v3991 = vpack.c.b16 %v3979, %v3978
      %v3992 = vpack.c.b16 %v3981, %v3980
      %v3993 = vpack.c.b16 %v3983, %v3982
      %v3994 = vpack.c.b16 %v3985, %v3984
      %v3995 = vpack.c.b16 %v3987, %v3986
      %4004 = vmatprep.subr.bf16.mxu0 0
      %4005 = vmatpush1.bf16.msra.mxu0 %v3995
      %4006 = vmatprep.subr.bf16.mxu0 0
      %4007 = vmatpush1.bf16.msra.mxu0 %v3994
      %4008 = vmatprep.subr.bf16.mxu0 0
      %4009 = vmatpush1.bf16.msra.mxu0 %v3993
      %4010 = vmatprep.subr.bf16.mxu0 0
      %4011 = vmatpush1.bf16.msra.mxu0 %v3992
      %4012 = vmatprep.subr.bf16.mxu0 0
      %4013 = vmatpush1.bf16.msra.mxu0 %v3991
      %4014 = vmatprep.subr.bf16.mxu0 0
      %4015 = vmatpush1.bf16.msra.mxu0 %v3990
      %4016 = vmatprep.subr.bf16.mxu0 0
      %4017 = vmatpush1.bf16.msra.mxu0 %v3989
      %4018 = vmatprep.subr.bf16.mxu0 0
      %4019 = vmatpush1.bf16.msra.mxu0 %v3988
      %4020 = vmatprep.subr.bf16.mxu0 0
      %4021 = vmatpush2.bf16.msra.mxu0 0
      %4022 = vmatprep.subr.bf16.mxu0 0
      %4023 = vmatpush2.bf16.msra.mxu0 0
      %4024 = vmatprep.subr.bf16.mxu0 0
      %4025 = vmatpush2.bf16.msra.mxu0 0
      %4026 = vmatprep.subr.bf16.mxu0 0
      %4027 = vmatpush2.bf16.msra.mxu0 0
      %4028 = vmatprep.subr.bf16.mxu0 0
      %4029 = vmatpush2.bf16.msra.mxu0 0
      %4030 = vmatprep.subr.bf16.mxu0 0
      %4031 = vmatpush2.bf16.msra.mxu0 0
      %4032 = vmatprep.subr.bf16.mxu0 0
      %4033 = vmatpush2.bf16.msra.mxu0 0
      %4034 = vmatprep.subr.bf16.mxu0 0
      %4035 = vmatpush2.bf16.msra.mxu0 0
      %4036 = vmatprep.mubr.bf16.mxu0 0
      %4037 = vmatmul.mubr.bf16.gmra.mxu0 %v1924
      %v4038 = vpop.f32.mrf.mxu0
      %v4039 = vadd.f32 0.0, %v4038
      %v4040 = vpop.f32.mrf.mxu0
      %v4041 = vpop.f32.mrf.mxu0
      %v4042 = vadd.f32 0.0, %v4041
      %v4043 = vpop.f32.mrf.mxu0
      %4044 = vmatprep.mubr.bf16.mxu0 0
      %4045 = vmatmul.mubr.bf16.gmra.mxu0 %v1925
      %v4046 = vpop.f32.mrf.mxu0
      %v4047 = vadd.f32 0.0, %v4046
      %v4048 = vpop.f32.mrf.mxu0
      %v4049 = vpop.f32.mrf.mxu0
      %v4050 = vadd.f32 0.0, %v4049
      %v4051 = vpop.f32.mrf.mxu0
      %4052 = vmatprep.mubr.bf16.mxu0 0
      %4053 = vmatmul.mubr.bf16.gmra.mxu0 %v1926
      %v4054 = vpop.f32.mrf.mxu0
      %v4055 = vadd.f32 0.0, %v4054
      %v4056 = vpop.f32.mrf.mxu0
      %v4057 = vpop.f32.mrf.mxu0
      %v4058 = vadd.f32 0.0, %v4057
      %v4059 = vpop.f32.mrf.mxu0
      %4060 = vmatprep.mubr.bf16.mxu0 0
      %4061 = vmatmul.mubr.bf16.gmra.mxu0 %v1927
      %v4062 = vpop.f32.mrf.mxu0
      %v4063 = vadd.f32 0.0, %v4062
      %v4064 = vpop.f32.mrf.mxu0
      %v4065 = vpop.f32.mrf.mxu0
      %v4066 = vadd.f32 0.0, %v4065
      %v4067 = vpop.f32.mrf.mxu0
      %4068 = vmatprep.mubr.bf16.mxu0 0
      %4069 = vmatmul.mubr.bf16.gmra.mxu0 %v1928
      %v4070 = vpop.f32.mrf.mxu0
      %v4071 = vadd.f32 0.0, %v4070
      %v4072 = vpop.f32.mrf.mxu0
      %v4073 = vpop.f32.mrf.mxu0
      %v4074 = vadd.f32 0.0, %v4073
      %v4075 = vpop.f32.mrf.mxu0
      %4076 = vmatprep.mubr.bf16.mxu0 0
      %4077 = vmatmul.mubr.bf16.gmra.mxu0 %v1929
      %v4078 = vpop.f32.mrf.mxu0
      %v4079 = vadd.f32 0.0, %v4078
      %v4080 = vpop.f32.mrf.mxu0
      %v4081 = vpop.f32.mrf.mxu0
      %v4082 = vadd.f32 0.0, %v4081
      %v4083 = vpop.f32.mrf.mxu0
      %4084 = vmatprep.mubr.bf16.mxu0 0
      %4085 = vmatmul.mubr.bf16.gmra.mxu0 %v1930
      %v4086 = vpop.f32.mrf.mxu0
      %v4087 = vadd.f32 0.0, %v4086
      %v4088 = vpop.f32.mrf.mxu0
      %v4089 = vpop.f32.mrf.mxu0
      %v4090 = vadd.f32 0.0, %v4089
      %v4091 = vpop.f32.mrf.mxu0
      %4092 = vmatprep.mubr.bf16.mxu0 0
      %4093 = vmatmul.mubr.bf16.gmra.mxu0 %v1931
      %v4094 = vpop.f32.mrf.mxu0
      %v4095 = vadd.f32 0.0, %v4094
      %v4096 = vpop.f32.mrf.mxu0
      %v4097 = vpop.f32.mrf.mxu0
      %v4098 = vadd.f32 0.0, %v4097
      %v4099 = vpop.f32.mrf.mxu0
      %4100 = vmatprep.mubr.bf16.mxu0 0
      %4101 = vmatmul.mubr.bf16.gmra.mxu0 %v1932
      %v4102 = vpop.f32.mrf.mxu0
      %v4103 = vadd.f32 0.0, %v4102
      %v4104 = vpop.f32.mrf.mxu0
      %v4105 = vpop.f32.mrf.mxu0
      %v4106 = vadd.f32 0.0, %v4105
      %v4107 = vpop.f32.mrf.mxu0
      %4108 = vmatprep.mubr.bf16.mxu0 0
      %4109 = vmatmul.mubr.bf16.gmra.mxu0 %v1933
      %v4110 = vpop.f32.mrf.mxu0
      %v4111 = vadd.f32 0.0, %v4110
      %v4112 = vpop.f32.mrf.mxu0
      %v4113 = vpop.f32.mrf.mxu0
      %v4114 = vadd.f32 0.0, %v4113
      %v4115 = vpop.f32.mrf.mxu0
      %4116 = vmatprep.mubr.bf16.mxu0 0
      %4117 = vmatmul.mubr.bf16.gmra.mxu0 %v1934
      %v4118 = vpop.f32.mrf.mxu0
      %v4119 = vadd.f32 0.0, %v4118
      %v4120 = vpop.f32.mrf.mxu0
      %v4121 = vpop.f32.mrf.mxu0
      %v4122 = vadd.f32 0.0, %v4121
      %v4123 = vpop.f32.mrf.mxu0
      %4124 = vmatprep.mubr.bf16.mxu0 0
      %4125 = vmatmul.mubr.bf16.gmra.mxu0 %v1935
      %v4126 = vpop.f32.mrf.mxu0
      %v4127 = vadd.f32 0.0, %v4126
      %v4128 = vpop.f32.mrf.mxu0
      %v4129 = vpop.f32.mrf.mxu0
      %v4130 = vadd.f32 0.0, %v4129
      %v4131 = vpop.f32.mrf.mxu0
      %4132 = vmatprep.mubr.bf16.mxu0 0
      %4133 = vmatmul.mubr.bf16.gmra.mxu0 %v1936
      %v4134 = vpop.f32.mrf.mxu0
      %v4135 = vadd.f32 0.0, %v4134
      %v4136 = vpop.f32.mrf.mxu0
      %v4137 = vpop.f32.mrf.mxu0
      %v4138 = vadd.f32 0.0, %v4137
      %v4139 = vpop.f32.mrf.mxu0
      %4140 = vmatprep.mubr.bf16.mxu0 0
      %4141 = vmatmul.mubr.bf16.gmra.mxu0 %v1937
      %v4142 = vpop.f32.mrf.mxu0
      %v4143 = vadd.f32 0.0, %v4142
      %v4144 = vpop.f32.mrf.mxu0
      %v4145 = vpop.f32.mrf.mxu0
      %v4146 = vadd.f32 0.0, %v4145
      %v4147 = vpop.f32.mrf.mxu0
      %4148 = vmatprep.mubr.bf16.mxu0 0
      %4149 = vmatmul.mubr.bf16.gmra.mxu0 %v1938
      %v4150 = vpop.f32.mrf.mxu0
      %v4151 = vadd.f32 0.0, %v4150
      %v4152 = vpop.f32.mrf.mxu0
      %v4153 = vpop.f32.mrf.mxu0
      %v4154 = vadd.f32 0.0, %v4153
      %v4155 = vpop.f32.mrf.mxu0
      %4156 = vmatprep.mubr.bf16.mxu0 0
      %4157 = vmatmul.mubr.bf16.gmra.mxu0 %v1939
      %v4158 = vpop.f32.mrf.mxu0
      %v4159 = vadd.f32 0.0, %v4158
      %v4160 = vpop.f32.mrf.mxu0
      %v4161 = vpop.f32.mrf.mxu0
      %v4162 = vadd.f32 0.0, %v4161
      %v4163 = vpop.f32.mrf.mxu0
      %4164 = vdwg.mxu0
      %v4165 = vadd.f32 %v3907, %v4039
      %v4166 = vadd.f32 %v3908, %v4042
      %v4167 = vadd.f32 %v3909, %v4047
      %v4168 = vadd.f32 %v3910, %v4050
      %v4169 = vadd.f32 %v3911, %v4055
      %v4170 = vadd.f32 %v3912, %v4058
      %v4171 = vadd.f32 %v3913, %v4063
      %v4172 = vadd.f32 %v3914, %v4066
      %v4173 = vadd.f32 %v3915, %v4071
      %v4174 = vadd.f32 %v3916, %v4074
      %v4175 = vadd.f32 %v3917, %v4079
      %v4176 = vadd.f32 %v3918, %v4082
      %v4177 = vadd.f32 %v3919, %v4087
      %v4178 = vadd.f32 %v3920, %v4090
      %v4179 = vadd.f32 %v3921, %v4095
      %v4180 = vadd.f32 %v3922, %v4098
      %v4181 = vadd.f32 %v3923, %v4103
      %v4182 = vadd.f32 %v3924, %v4106
      %v4183 = vadd.f32 %v3925, %v4111
      %v4184 = vadd.f32 %v3926, %v4114
      %v4185 = vadd.f32 %v3927, %v4119
      %v4186 = vadd.f32 %v3928, %v4122
      %v4187 = vadd.f32 %v3929, %v4127
      %v4188 = vadd.f32 %v3930, %v4130
      %v4189 = vadd.f32 %v3931, %v4135
      %v4190 = vadd.f32 %v3932, %v4138
      %v4191 = vadd.f32 %v3933, %v4143
      %v4192 = vadd.f32 %v3934, %v4146
      %v4193 = vadd.f32 %v3935, %v4151
      %v4194 = vadd.f32 %v3936, %v4154
      %v4195 = vadd.f32 %v3937, %v4159
      %v4196 = vadd.f32 %v3938, %v4162
      %v4197 = vld [vmem:[%s4] sm:$0x1]
      %v4199 = vlaneseq
      %v4200 = vshrl.u32 %v4199, 7
      %v4201 = vsub.s32 0, %v4200
      %v4202 = vrot.slane %v4197, %v4201
      %v4204 = vadd.f32 %v4165, %v4202
      %v4205 = vadd.f32 %v4166, %v4202
      %v4206 = vadd.f32 %v4167, %v4202
      %v4207 = vadd.f32 %v4168, %v4202
      %v4208 = vadd.f32 %v4169, %v4202
      %v4209 = vadd.f32 %v4170, %v4202
      %v4210 = vadd.f32 %v4171, %v4202
      %v4211 = vadd.f32 %v4172, %v4202
      %v4212 = vadd.f32 %v4173, %v4202
      %v4213 = vadd.f32 %v4174, %v4202
      %v4214 = vadd.f32 %v4175, %v4202
      %v4215 = vadd.f32 %v4176, %v4202
      %v4216 = vadd.f32 %v4177, %v4202
      %v4217 = vadd.f32 %v4178, %v4202
      %v4218 = vadd.f32 %v4179, %v4202
      %v4219 = vadd.f32 %v4180, %v4202
      %v4220 = vadd.f32 %v4181, %v4202
      %v4221 = vadd.f32 %v4182, %v4202
      %v4222 = vadd.f32 %v4183, %v4202
      %v4223 = vadd.f32 %v4184, %v4202
      %v4224 = vadd.f32 %v4185, %v4202
      %v4225 = vadd.f32 %v4186, %v4202
      %v4226 = vadd.f32 %v4187, %v4202
      %v4227 = vadd.f32 %v4188, %v4202
      %v4228 = vadd.f32 %v4189, %v4202
      %v4229 = vadd.f32 %v4190, %v4202
      %v4230 = vadd.f32 %v4191, %v4202
      %v4231 = vadd.f32 %v4192, %v4202
      %v4232 = vadd.f32 %v4193, %v4202
      %v4233 = vadd.f32 %v4194, %v4202
      %v4234 = vadd.f32 %v4195, %v4202
      %v4235 = vadd.f32 %v4196, %v4202
      %v4236 = vmax.f32 %v4204, 0.0
      %v4237 = vmax.f32 %v4205, 0.0
      %v4238 = vmax.f32 %v4206, 0.0
      %v4239 = vmax.f32 %v4207, 0.0
      %v4240 = vmax.f32 %v4208, 0.0
      %v4241 = vmax.f32 %v4209, 0.0
      %v4242 = vmax.f32 %v4210, 0.0
      %v4243 = vmax.f32 %v4211, 0.0
      %v4244 = vmax.f32 %v4212, 0.0
      %v4245 = vmax.f32 %v4213, 0.0
      %v4246 = vmax.f32 %v4214, 0.0
      %v4247 = vmax.f32 %v4215, 0.0
      %v4248 = vmax.f32 %v4216, 0.0
      %v4249 = vmax.f32 %v4217, 0.0
      %v4250 = vmax.f32 %v4218, 0.0
      %v4251 = vmax.f32 %v4219, 0.0
      %v4252 = vmax.f32 %v4220, 0.0
      %v4253 = vmax.f32 %v4221, 0.0
      %v4254 = vmax.f32 %v4222, 0.0
      %v4255 = vmax.f32 %v4223, 0.0
      %v4256 = vmax.f32 %v4224, 0.0
      %v4257 = vmax.f32 %v4225, 0.0
      %v4258 = vmax.f32 %v4226, 0.0
      %v4259 = vmax.f32 %v4227, 0.0
      %v4260 = vmax.f32 %v4228, 0.0
      %v4261 = vmax.f32 %v4229, 0.0
      %v4262 = vmax.f32 %v4230, 0.0
      %v4263 = vmax.f32 %v4231, 0.0
      %v4264 = vmax.f32 %v4232, 0.0
      %v4265 = vmax.f32 %v4233, 0.0
      %v4266 = vmax.f32 %v4234, 0.0
      %v4267 = vmax.f32 %v4235, 0.0
      %v4268 = vrot.slane %v4236, 1
      %v4269 = vrot.slane %v4237, 1
      %v4270 = vrot.slane %v4238, 1
      %v4271 = vrot.slane %v4239, 1
      %v4272 = vrot.slane %v4240, 1
      %v4273 = vrot.slane %v4241, 1
      %v4274 = vrot.slane %v4242, 1
      %v4275 = vrot.slane %v4243, 1
      %v4276 = vrot.slane %v4244, 1
      %v4277 = vrot.slane %v4245, 1
      %v4278 = vrot.slane %v4246, 1
      %v4279 = vrot.slane %v4247, 1
      %v4280 = vrot.slane %v4248, 1
      %v4281 = vrot.slane %v4249, 1
      %v4282 = vrot.slane %v4250, 1
      %v4283 = vrot.slane %v4251, 1
      %v4284 = vrot.slane %v4252, 1
      %v4285 = vrot.slane %v4253, 1
      %v4286 = vrot.slane %v4254, 1
      %v4287 = vrot.slane %v4255, 1
      %v4288 = vrot.slane %v4256, 1
      %v4289 = vrot.slane %v4257, 1
      %v4290 = vrot.slane %v4258, 1
      %v4291 = vrot.slane %v4259, 1
      %v4292 = vrot.slane %v4260, 1
      %v4293 = vrot.slane %v4261, 1
      %v4294 = vrot.slane %v4262, 1
      %v4295 = vrot.slane %v4263, 1
      %v4296 = vrot.slane %v4264, 1
      %v4297 = vrot.slane %v4265, 1
      %v4298 = vrot.slane %v4266, 1
      %v4299 = vrot.slane %v4267, 1
      %v4300 = vsel %vm1741, %v4298, %v4299
      %v4301 = vsel %vm1741, %v4297, %v4298
      %v4302 = vsel %vm1741, %v4296, %v4297
      %v4303 = vsel %vm1741, %v4295, %v4296
      %v4304 = vsel %vm1741, %v4294, %v4295
      %v4305 = vsel %vm1741, %v4293, %v4294
      %v4306 = vsel %vm1741, %v4292, %v4293
      %v4307 = vsel %vm1741, %v4291, %v4292
      %v4308 = vsel %vm1741, %v4290, %v4291
      %v4309 = vsel %vm1741, %v4289, %v4290
      %v4310 = vsel %vm1741, %v4288, %v4289
      %v4311 = vsel %vm1741, %v4287, %v4288
      %v4312 = vsel %vm1741, %v4286, %v4287
      %v4313 = vsel %vm1741, %v4285, %v4286
      %v4314 = vsel %vm1741, %v4284, %v4285
      %v4315 = vsel %vm1741, %v4283, %v4284
      %v4316 = vsel %vm1741, %v4282, %v4283
      %v4317 = vsel %vm1741, %v4281, %v4282
      %v4318 = vsel %vm1741, %v4280, %v4281
      %v4319 = vsel %vm1741, %v4279, %v4280
      %v4320 = vsel %vm1741, %v4278, %v4279
      %v4321 = vsel %vm1741, %v4277, %v4278
      %v4322 = vsel %vm1741, %v4276, %v4277
      %v4323 = vsel %vm1741, %v4275, %v4276
      %v4324 = vsel %vm1741, %v4274, %v4275
      %v4325 = vsel %vm1741, %v4273, %v4274
      %v4326 = vsel %vm1741, %v4272, %v4273
      %v4327 = vsel %vm1741, %v4271, %v4272
      %v4328 = vsel %vm1741, %v4270, %v4271
      %v4329 = vsel %vm1741, %v4269, %v4270
      %v4330 = vsel %vm1741, %v4268, %v4269
      %v4331 = vsel %vm1741, %v4299, %v4268
      %v4332 = vmax.f32 %v4236, %v4330
      %v4333 = vmax.f32 %v4237, %v4329
      %v4334 = vmax.f32 %v4238, %v4328
      %v4335 = vmax.f32 %v4239, %v4327
      %v4336 = vmax.f32 %v4240, %v4326
      %v4337 = vmax.f32 %v4241, %v4325
      %v4338 = vmax.f32 %v4242, %v4324
      %v4339 = vmax.f32 %v4243, %v4323
      %v4340 = vmax.f32 %v4244, %v4322
      %v4341 = vmax.f32 %v4245, %v4321
      %v4342 = vmax.f32 %v4246, %v4320
      %v4343 = vmax.f32 %v4247, %v4319
      %v4344 = vmax.f32 %v4248, %v4318
      %v4345 = vmax.f32 %v4249, %v4317
      %v4346 = vmax.f32 %v4250, %v4316
      %v4347 = vmax.f32 %v4251, %v4315
      %v4348 = vmax.f32 %v4252, %v4314
      %v4349 = vmax.f32 %v4253, %v4313
      %v4350 = vmax.f32 %v4254, %v4312
      %v4351 = vmax.f32 %v4255, %v4311
      %v4352 = vmax.f32 %v4256, %v4310
      %v4353 = vmax.f32 %v4257, %v4309
      %v4354 = vmax.f32 %v4258, %v4308
      %v4355 = vmax.f32 %v4259, %v4307
      %v4356 = vmax.f32 %v4260, %v4306
      %v4357 = vmax.f32 %v4261, %v4305
      %v4358 = vmax.f32 %v4262, %v4304
      %v4359 = vmax.f32 %v4263, %v4303
      %v4360 = vmax.f32 %v4264, %v4302
      %v4361 = vmax.f32 %v4265, %v4301
      %v4362 = vmax.f32 %v4266, %v4300
      %v4363 = vmax.f32 %v4267, %v4331
      %v4364 = vmax.f32 %v4332, %v4334
      %v4365 = vmax.f32 %v4333, %v4335
      %v4366 = vmax.f32 %v4336, %v4338
      %v4367 = vmax.f32 %v4337, %v4339
      %v4368 = vmax.f32 %v4340, %v4342
      %v4369 = vmax.f32 %v4341, %v4343
      %v4370 = vmax.f32 %v4344, %v4346
      %v4371 = vmax.f32 %v4345, %v4347
      %v4372 = vmax.f32 %v4348, %v4350
      %v4373 = vmax.f32 %v4349, %v4351
      %v4374 = vmax.f32 %v4352, %v4354
      %v4375 = vmax.f32 %v4353, %v4355
      %v4376 = vmax.f32 %v4356, %v4358
      %v4377 = vmax.f32 %v4357, %v4359
      %v4378 = vmax.f32 %v4360, %v4362
      %v4379 = vmax.f32 %v4361, %v4363
      %4380 = vst [vmem:[#allocation2] sm:$0xff] %v4364
      %4381 = vst [vmem:[#allocation2 + $0x8] sm:$0xff] %v4365
      %4382 = vst [vmem:[#allocation2 + $0x10] sm:$0xff] %v4366
      %4383 = vst [vmem:[#allocation2 + $0x18] sm:$0xff] %v4367
      %4384 = vst [vmem:[#allocation2 + $0x20] sm:$0xff] %v4368
      %4385 = vst [vmem:[#allocation2 + $0x28] sm:$0xff] %v4369
      %4386 = vst [vmem:[#allocation2 + $0x30] sm:$0xff] %v4370
      %4387 = vst [vmem:[#allocation2 + $0x38] sm:$0xff] %v4371
      %4388 = vst [vmem:[#allocation2 + $0x40] sm:$0xff] %v4372
      %4389 = vst [vmem:[#allocation2 + $0x48] sm:$0xff] %v4373
      %4390 = vst [vmem:[#allocation2 + $0x50] sm:$0xff] %v4374
      %4391 = vst [vmem:[#allocation2 + $0x58] sm:$0xff] %v4375
      %4392 = vst [vmem:[#allocation2 + $0x60] sm:$0xff] %v4376
      %4393 = vst [vmem:[#allocation2 + $0x68] sm:$0xff] %v4377
      %4394 = vst [vmem:[#allocation2 + $0x70] sm:$0xff] %v4378
      %4395 = vst [vmem:[#allocation2 + $0x78] sm:$0xff] %v4379
      %v4396 = vld [vmem:[#allocation2] ss:$2 sm:$0xff]
      %s4397 = scalar_lea.vmem [#allocation2], 16
      %v4398 = vld [vmem:[%s4397] ss:$2 sm:$0xff]
      %s4399 = scalar_lea.vmem [#allocation2], 32
      %v4400 = vld [vmem:[%s4399] ss:$2 sm:$0xff]
      %s4401 = scalar_lea.vmem [#allocation2], 48
      %v4402 = vld [vmem:[%s4401] ss:$2 sm:$0xff]
      %s4403 = scalar_lea.vmem [#allocation2], 64
      %v4404 = vld [vmem:[%s4403] ss:$2 sm:$0xff]
      %s4405 = scalar_lea.vmem [#allocation2], 80
      %v4406 = vld [vmem:[%s4405] ss:$2 sm:$0xff]
      %s4407 = scalar_lea.vmem [#allocation2], 96
      %v4408 = vld [vmem:[%s4407] ss:$2 sm:$0xff]
      %s4409 = scalar_lea.vmem [#allocation2], 112
      %v4410 = vld [vmem:[%s4409] ss:$2 sm:$0xff]
      %v4411 = vpack.c.bf16 %v4396, %v4396
      %v4412 = vpack.c.bf16 %v4398, %v4398
      %v4413 = vpack.c.bf16 %v4400, %v4400
      %v4414 = vpack.c.bf16 %v4402, %v4402
      %v4415 = vpack.c.bf16 %v4404, %v4404
      %v4416 = vpack.c.bf16 %v4406, %v4406
      %v4417 = vpack.c.bf16 %v4408, %v4408
      %v4418 = vpack.c.bf16 %v4410, %v4410
      %4419 = vst [vmem:[%s260] sm:$0xf] %v4411
      %4420 = vst [vmem:[%s260 + $0x4] sm:$0xf] %v4412
      %4421 = vst [vmem:[%s260 + $0x8] sm:$0xf] %v4413
      %4422 = vst [vmem:[%s260 + $0xc] sm:$0xf] %v4414
      %4423 = vst [vmem:[%s260 + $0x10] sm:$0xf] %v4415
      %4424 = vst [vmem:[%s260 + $0x14] sm:$0xf] %v4416
      %4425 = vst [vmem:[%s260 + $0x18] sm:$0xf] %v4417
      %4426 = vst [vmem:[%s260 + $0x1c] sm:$0xf] %v4418
      %s4427 = smul.u32 8, %s21
      %p4428 = scmp.lt.s32.totalorder %s20, 1
      %s4429 = scalar_select %p4428, %s20, 1
      %p4430 = scmp.lt.s32.totalorder %s4427, 7
      %s4431 = scalar_select %p4430, %s4427, 7
      %s4432 = smul.addr %s4429, 8
      %s4433 = sadd.s32 %s4431, %s4432
      %s4434 = smul.addr %s4433, 4
      %s4435 = scalar_lea.vmem %s5, %s4434
      // Predicated region
      $region41: #{encoder_block_forward.1} parent=39 // pred_check
        %p4436 = pneg %p160
      $region42: #{encoder_block_forward.1} parent=39 // pred_check_branch
        %4438 = sbr.rel (%p4436) target = $region44
      $region43: #{encoder_block_forward.1} parent=39 // pred_region
        %s4439 = smul.u32 8, %s21
      $region44: #{encoder_block_forward.1} parent=39 // pred_fallthru
        _
    $region40: #{encoder_block_forward.1} parent=5 // pred_fallthru
      _
    %p4440 = scmp.le.s32.totalorder 2, %s11
    // Predicated region
    $region45: #{encoder_block_forward.1} parent=5 // pred_check
      %p4441 = pneg %p4440
    $region46: #{encoder_block_forward.1} parent=5 // pred_check_branch
      %4443 = sbr.rel (%p4441) target = $region48
    $region47: #{encoder_block_forward.1} parent=5 // pred_region
      %s4444 = ssub.s32 %s11, 2
      // Predicated region
      $region49: #{encoder_block_forward.1} parent=47 // pred_check
        %p4445 = pneg %p166
      $region50: #{encoder_block_forward.1} parent=47 // pred_check_branch
        %4447 = sbr.rel (%p4445) target = $region52
      $region51: #{encoder_block_forward.1} parent=47 // pred_region
        %s4448 = smul.u32 8, %s23
        %p4449 = scmp.lt.s32.totalorder %s22, 1
        %s4450 = scalar_select %p4449, %s22, 1
        %p4451 = scmp.lt.s32.totalorder %s4448, 7
        %s4452 = scalar_select %p4451, %s4448, 7
        %s4453 = smul.addr %s4450, 8
        %s4454 = sadd.s32 %s4452, %s4453
        %s4455 = smul.addr %s4454, 4
        %s4456 = scalar_lea.vmem %s5, %s4455
      $region52: #{encoder_block_forward.1} parent=47 // pred_fallthru
        _
    $region48: #{encoder_block_forward.1} parent=5 // pred_fallthru
      _
  $region6: #{encoder_block_forward.1} parent=0 // loop_footer
    %s15 = sadd.s32 1, %s11
  $region7: #{encoder_block_forward.1} parent=0 // loop_footer_branch
    %10 = sbr.rel target = $region3
  $region8: #{encoder_block_forward.1} parent=0 // loop_exit
    _

</llo_original>
